<compile_context>
chip_gen: v5e
topology: v5e:2x2
jax: 0.10.0
libtpu: 0.0.40
codegen_flags: <defaults>
</compile_context>

<pallas_src>
import functools

import jax
import jax.numpy as jnp
from jax import lax
from jax.experimental import pallas as pl
from jax.experimental.pallas import tpu as pltpu


def _res_block_kernel(xpad_ref, xc_ref, w1_ref, b1_ref, w2_ref, b2_ref,
                      out_ref, hpad_ref, *, compute_dtype):
    # Block shapes:
    #   xpad_ref : (1, H+2, W+2, Cin)   spatially padded input
    #   xc_ref   : (1, H, W, Cin)       unpadded input (for the 1x1 skip)
    #   w1_ref   : (9*Cin, Cout)        conv1 weights, im2col layout
    #   b1_ref   : (1, Cout)
    #   w2_ref   : (9*Cout + Cin, Cout) conv2 weights (im2col) stacked over ws
    #   b2_ref   : (1, Cout)            b2 + bs (fused bias)
    #   out_ref  : (1, H*W, Cout)
    #   hpad_ref : (H+2, W+2, Cout)     VMEM scratch: zero-padded hidden map
    H = xc_ref.shape[1]
    W = xc_ref.shape[2]
    Cin = xc_ref.shape[3]
    Cout = out_ref.shape[2]

    xpad = xpad_ref[0]                       # (H+2, W+2, Cin) f32

    # ---- conv1 (3x3, SAME): single im2col matmul, K = 9*Cin ----
    p1 = jnp.concatenate(
        [xpad[kh:kh + H, kw:kw + W, :].reshape(H * W, Cin)
         for kh in range(3) for kw in range(3)],
        axis=1)                              # (H*W, 9*Cin)
    h = jnp.dot(p1.astype(compute_dtype), w1_ref[...],
                preferred_element_type=jnp.float32) + b1_ref[0]
    # LeakyReLU, PyTorch default negative_slope = 0.01
    h = jnp.where(h >= 0, h, 0.01 * h)

    # ---- zero-pad the hidden map through the VMEM scratch ----
    # Zeroed every step (see module comment: program_id==0 does not run on
    # every core when the grid axis is megacore-parallel).
    hpad_ref[...] = jnp.zeros_like(hpad_ref)
    hpad_ref[1:1 + H, 1:1 + W, :] = h.reshape(H, W, Cout)
    hpad = hpad_ref[...]                     # (H+2, W+2, Cout)

    # ---- conv2 (3x3, SAME) + 1x1 skip, fused: K = 9*Cout + Cin ----
    p2 = jnp.concatenate(
        [hpad[kh:kh + H, kw:kw + W, :].reshape(H * W, Cout)
         for kh in range(3) for kw in range(3)]
        + [xc_ref[0].reshape(H * W, Cin)],
        axis=1)                              # (H*W, 9*Cout + Cin)
    out = jnp.dot(p2.astype(compute_dtype), w2_ref[...],
                  preferred_element_type=jnp.float32) + b2_ref[0]

    out_ref[0] = out                         # (H*W, Cout)


@functools.partial(jax.jit, static_argnames=("compute_dtype",))
def res_block(x_nchw, params, compute_dtype=jnp.float32):
    """x_nchw: (B, Cin, H, W) float32 -> (B, Cout, H, W) float32."""
    w1, b1 = params["w1"], params["b1"]          # (3,3,Cin,Cout), (Cout,)
    w2, b2 = params["w2"], params["b2"]          # (3,3,Cout,Cout), (Cout,)
    ws, bs = params["ws"], params["bs"]          # (Cin,Cout), (Cout,)

    x = jnp.transpose(x_nchw, (0, 2, 3, 1)).astype(jnp.float32)  # NHWC
    B, H, W, Cin = x.shape
    Cout = w1.shape[-1]

    xpad = jnp.pad(x, ((0, 0), (1, 1), (1, 1), (0, 0)))          # (B, H+2, W+2, Cin)

    # im2col weight layouts (match the kernel's (kh, kw, c) concat order),
    # conv2 weights stacked over the 1x1 skip weights, biases fused.
    w1c = w1.reshape(9 * Cin, Cout).astype(compute_dtype)
    w2c = jnp.concatenate([w2.reshape(9 * Cout, Cout), ws],
                          axis=0).astype(compute_dtype)          # (9*Cout+Cin, Cout)
    b1r = b1.reshape(1, Cout).astype(jnp.float32)
    b2r = (b2 + bs).reshape(1, Cout).astype(jnp.float32)

    kernel = functools.partial(_res_block_kernel, compute_dtype=compute_dtype)

    out_flat = pl.pallas_call(
        kernel,
        out_shape=jax.ShapeDtypeStruct((B, H * W, Cout), jnp.float32),
        grid=(B,),
        in_specs=[
            pl.BlockSpec((1, H + 2, W + 2, Cin), lambda b: (b, 0, 0, 0)),
            pl.BlockSpec((1, H, W, Cin), lambda b: (b, 0, 0, 0)),
            pl.BlockSpec((9 * Cin, Cout), lambda b: (0, 0)),
            pl.BlockSpec((1, Cout), lambda b: (0, 0)),
            pl.BlockSpec((9 * Cout + Cin, Cout), lambda b: (0, 0)),
            pl.BlockSpec((1, Cout), lambda b: (0, 0)),
        ],
        out_specs=pl.BlockSpec((1, H * W, Cout), lambda b: (b, 0, 0)),
        scratch_shapes=[pltpu.VMEM((H + 2, W + 2, Cout), jnp.float32)],
        compiler_params=pltpu.CompilerParams(
            dimension_semantics=("parallel",)),
    )(xpad, x, w1c, b1r, w2c, b2r)

    out_nhwc = out_flat.reshape(B, H, W, Cout)
    return jnp.transpose(out_nhwc, (0, 3, 1, 2))  # back to NCHW


def res_block_ref(x_nchw, params):
    """Plain-JAX reference (NHWC convs) for verification."""
    x = jnp.transpose(x_nchw, (0, 2, 3, 1)).astype(jnp.float32)
    dn = ("NHWC", "HWIO", "NHWC")
    Cin = x.shape[-1]
    Cout = params["w1"].shape[-1]

    h = lax.conv_general_dilated(x, params["w1"], (1, 1), "SAME",
                                 dimension_numbers=dn) + params["b1"]
    h = jnp.where(h >= 0, h, 0.01 * h)
    h = lax.conv_general_dilated(h, params["w2"], (1, 1), "SAME",
                                 dimension_numbers=dn) + params["b2"]
    skip = lax.conv_general_dilated(
        x, params["ws"].reshape(1, 1, Cin, Cout), (1, 1), "SAME",
        dimension_numbers=dn) + params["bs"]
    return jnp.transpose(h + skip, (0, 3, 1, 2))


def init_params(key, in_channels, out_channels):
    ks = jax.random.split(key, 6)
    scale1 = 1.0 / (in_channels * 9) ** 0.5
    scale2 = 1.0 / (out_channels * 9) ** 0.5
    scales = 1.0 / in_channels ** 0.5
    return {
        "w1": scale1 * jax.random.normal(ks[0], (3, 3, in_channels, out_channels), jnp.float32),
        "b1": scale1 * jax.random.normal(ks[1], (out_channels,), jnp.float32),
        "w2": scale2 * jax.random.normal(ks[2], (3, 3, out_channels, out_channels), jnp.float32),
        "b2": scale2 * jax.random.normal(ks[3], (out_channels,), jnp.float32),
        "ws": scales * jax.random.normal(ks[4], (in_channels, out_channels), jnp.float32),
        "bs": scales * jax.random.normal(ks[5], (out_channels,), jnp.float32),
    }


if __name__ == "__main__":
    key = jax.random.PRNGKey(0)
    k_x, k_p = jax.random.split(key)

    B, Cin, Cout, H, W = 2, 4, 8, 16, 16
    x = jax.random.normal(k_x, (B, Cin, H, W), jnp.float32)   # PyTorch NCHW input
    params = init_params(k_p, Cin, Cout)

    out = res_block(x, params)
    jax.block_until_ready(out)

    ref = res_block_ref(x, params)
    assert out.shape == (B, Cout, H, W)
    assert jnp.allclose(out, ref, atol=1e-4, rtol=1e-4), \
        f"max abs err {jnp.max(jnp.abs(out - ref))}"

    print("KERNEL_OK")
</pallas_src>

<mosaic_0001>
module attributes {stable_mosaic.version = 11 : i64} {
  func.func @_res_block_kernel(%arg0: i32, %arg1: memref<1x18x18x4xf32, #tpu.memory_space<vmem>>, %arg2: memref<1x16x16x4xf32, #tpu.memory_space<vmem>>, %arg3: memref<36x8xf32, #tpu.memory_space<vmem>>, %arg4: memref<1x8xf32, #tpu.memory_space<vmem>>, %arg5: memref<76x8xf32, #tpu.memory_space<vmem>>, %arg6: memref<1x8xf32, #tpu.memory_space<vmem>>, %arg7: memref<1x256x8xf32, #tpu.memory_space<vmem>>, %arg8: memref<18x18x8xf32, #tpu.memory_space<vmem>>) attributes {dimension_semantics = [#tpu.dimension_semantics<parallel>], iteration_bounds = array<i64: 2>, scalar_prefetch = 0 : i64, scratch_operands = 1 : i64, tpu.core_type = #tpu.core_type<tc>, window_params = [{transform_indices = @transform_0, window_bounds = array<i64: 1, 18, 18, 4>}, {transform_indices = @transform_1, window_bounds = array<i64: 1, 16, 16, 4>}, {pipeline_mode = #tpu.pipeline_mode<synchronous>, transform_indices = @transform_2, window_bounds = array<i64: 36, 8>}, {pipeline_mode = #tpu.pipeline_mode<synchronous>, transform_indices = @transform_3, window_bounds = array<i64: 1, 8>}, {pipeline_mode = #tpu.pipeline_mode<synchronous>, transform_indices = @transform_4, window_bounds = array<i64: 76, 8>}, {pipeline_mode = #tpu.pipeline_mode<synchronous>, transform_indices = @transform_5, window_bounds = array<i64: 1, 8>}, {transform_indices = @transform_6, window_bounds = array<i64: 1, 256, 8>}]} {
    %c0 = arith.constant 0 : index
    %c0_0 = arith.constant 0 : index
    %c0_1 = arith.constant 0 : index
    %c0_2 = arith.constant 0 : index
    %0 = vector.load %arg1[%c0, %c0_0, %c0_1, %c0_2] : memref<1x18x18x4xf32, #tpu.memory_space<vmem>>, vector<1x18x18x4xf32>
    %1 = vector.shape_cast %0 : vector<1x18x18x4xf32> to vector<18x18x4xf32>
    %2 = vector.extract_strided_slice %1 {offsets = [0, 0, 0], sizes = [16, 16, 4], strides = [1, 1, 1]} : vector<18x18x4xf32> to vector<16x16x4xf32>
    %3 = vector.shape_cast %2 : vector<16x16x4xf32> to vector<256x4xf32>
    %4 = vector.extract_strided_slice %1 {offsets = [0, 1, 0], sizes = [16, 16, 4], strides = [1, 1, 1]} : vector<18x18x4xf32> to vector<16x16x4xf32>
    %5 = vector.shape_cast %4 : vector<16x16x4xf32> to vector<256x4xf32>
    %6 = vector.extract_strided_slice %1 {offsets = [0, 2, 0], sizes = [16, 16, 4], strides = [1, 1, 1]} : vector<18x18x4xf32> to vector<16x16x4xf32>
    %7 = vector.shape_cast %6 : vector<16x16x4xf32> to vector<256x4xf32>
    %8 = vector.extract_strided_slice %1 {offsets = [1, 0, 0], sizes = [16, 16, 4], strides = [1, 1, 1]} : vector<18x18x4xf32> to vector<16x16x4xf32>
    %9 = vector.shape_cast %8 : vector<16x16x4xf32> to vector<256x4xf32>
    %10 = vector.extract_strided_slice %1 {offsets = [1, 1, 0], sizes = [16, 16, 4], strides = [1, 1, 1]} : vector<18x18x4xf32> to vector<16x16x4xf32>
    %11 = vector.shape_cast %10 : vector<16x16x4xf32> to vector<256x4xf32>
    %12 = vector.extract_strided_slice %1 {offsets = [1, 2, 0], sizes = [16, 16, 4], strides = [1, 1, 1]} : vector<18x18x4xf32> to vector<16x16x4xf32>
    %13 = vector.shape_cast %12 : vector<16x16x4xf32> to vector<256x4xf32>
    %14 = vector.extract_strided_slice %1 {offsets = [2, 0, 0], sizes = [16, 16, 4], strides = [1, 1, 1]} : vector<18x18x4xf32> to vector<16x16x4xf32>
    %15 = vector.shape_cast %14 : vector<16x16x4xf32> to vector<256x4xf32>
    %16 = vector.extract_strided_slice %1 {offsets = [2, 1, 0], sizes = [16, 16, 4], strides = [1, 1, 1]} : vector<18x18x4xf32> to vector<16x16x4xf32>
    %17 = vector.shape_cast %16 : vector<16x16x4xf32> to vector<256x4xf32>
    %18 = vector.extract_strided_slice %1 {offsets = [2, 2, 0], sizes = [16, 16, 4], strides = [1, 1, 1]} : vector<18x18x4xf32> to vector<16x16x4xf32>
    %19 = vector.shape_cast %18 : vector<16x16x4xf32> to vector<256x4xf32>
    %20 = tpu.concatenate %3, %5, %7, %9, %11, %13, %15, %17, %19 in 1 : vector<256x4xf32>, vector<256x4xf32>, vector<256x4xf32>, vector<256x4xf32>, vector<256x4xf32>, vector<256x4xf32>, vector<256x4xf32>, vector<256x4xf32>, vector<256x4xf32> -> vector<256x36xf32>
    %c0_3 = arith.constant 0 : index
    %c0_4 = arith.constant 0 : index
    %21 = vector.load %arg3[%c0_3, %c0_4] : memref<36x8xf32, #tpu.memory_space<vmem>>, vector<36x8xf32>
    %cst = arith.constant dense<0.000000e+00> : vector<256x8xf32>
    %22 = tpu.matmul %20, %21, %cst {dimension_numbers = #tpu.dot_dimension_numbers<[1], [0], [0], [1], [0, 0, 1, 1], [], []>} : vector<256x36xf32>, vector<36x8xf32>, vector<256x8xf32> -> vector<256x8xf32>
    %c0_5 = arith.constant 0 : index
    %c0_6 = arith.constant 0 : index
    %23 = vector.load %arg4[%c0_5, %c0_6] : memref<1x8xf32, #tpu.memory_space<vmem>>, vector<1x8xf32>
    %24 = vector.shape_cast %23 : vector<1x8xf32> to vector<8xf32>
    %25 = vector.shape_cast %24 : vector<8xf32> to vector<1x8xf32>
    %26 = vector.broadcast %25 : vector<1x8xf32> to vector<256x8xf32>
    %27 = arith.addf %22, %26 : vector<256x8xf32>
    %cst_7 = arith.constant 0.000000e+00 : f32
    %28 = vector.broadcast %cst_7 : f32 to vector<256x8xf32>
    %29 = arith.cmpf oge, %27, %28 : vector<256x8xf32>
    %cst_8 = arith.constant 0.00999999977 : f32
    %30 = vector.broadcast %cst_8 : f32 to vector<256x8xf32>
    %31 = arith.mulf %30, %27 : vector<256x8xf32>
    %32 = arith.select %29, %27, %31 : vector<256x8xi1>, vector<256x8xf32>
    %cst_9 = arith.constant 0.000000e+00 : f32
    %33 = vector.broadcast %cst_9 : f32 to vector<18x18x8xf32>
    %c0_10 = arith.constant 0 : index
    %c0_11 = arith.constant 0 : index
    %c0_12 = arith.constant 0 : index
    %34 = vector.load %arg8[%c0_10, %c0_11, %c0_12] : memref<18x18x8xf32, #tpu.memory_space<vmem>>, vector<18x18x8xf32>
    tpu.vector_store %arg8[%c0_10, %c0_11, %c0_12], %33 {strides = array<i32>} : memref<18x18x8xf32, #tpu.memory_space<vmem>>, vector<18x18x8xf32>,
    %35 = vector.shape_cast %32 : vector<256x8xf32> to vector<16x16x8xf32>
    %c1 = arith.constant 1 : index
    %c1_13 = arith.constant 1 : index
    %c0_14 = arith.constant 0 : index
    %36 = vector.load %arg8[%c1, %c1_13, %c0_14] : memref<18x18x8xf32, #tpu.memory_space<vmem>>, vector<16x16x8xf32>
    tpu.vector_store %arg8[%c1, %c1_13, %c0_14], %35 {strides = array<i32>} : memref<18x18x8xf32, #tpu.memory_space<vmem>>, vector<16x16x8xf32>,
    %c0_15 = arith.constant 0 : index
    %c0_16 = arith.constant 0 : index
    %c0_17 = arith.constant 0 : index
    %37 = vector.load %arg8[%c0_15, %c0_16, %c0_17] : memref<18x18x8xf32, #tpu.memory_space<vmem>>, vector<18x18x8xf32>
    %38 = vector.extract_strided_slice %37 {offsets = [0, 0, 0], sizes = [16, 16, 8], strides = [1, 1, 1]} : vector<18x18x8xf32> to vector<16x16x8xf32>
    %39 = vector.shape_cast %38 : vector<16x16x8xf32> to vector<256x8xf32>
    %40 = vector.extract_strided_slice %37 {offsets = [0, 1, 0], sizes = [16, 16, 8], strides = [1, 1, 1]} : vector<18x18x8xf32> to vector<16x16x8xf32>
    %41 = vector.shape_cast %40 : vector<16x16x8xf32> to vector<256x8xf32>
    %42 = vector.extract_strided_slice %37 {offsets = [0, 2, 0], sizes = [16, 16, 8], strides = [1, 1, 1]} : vector<18x18x8xf32> to vector<16x16x8xf32>
    %43 = vector.shape_cast %42 : vector<16x16x8xf32> to vector<256x8xf32>
    %44 = vector.extract_strided_slice %37 {offsets = [1, 0, 0], sizes = [16, 16, 8], strides = [1, 1, 1]} : vector<18x18x8xf32> to vector<16x16x8xf32>
    %45 = vector.shape_cast %44 : vector<16x16x8xf32> to vector<256x8xf32>
    %46 = vector.extract_strided_slice %37 {offsets = [1, 1, 0], sizes = [16, 16, 8], strides = [1, 1, 1]} : vector<18x18x8xf32> to vector<16x16x8xf32>
    %47 = vector.shape_cast %46 : vector<16x16x8xf32> to vector<256x8xf32>
    %48 = vector.extract_strided_slice %37 {offsets = [1, 2, 0], sizes = [16, 16, 8], strides = [1, 1, 1]} : vector<18x18x8xf32> to vector<16x16x8xf32>
    %49 = vector.shape_cast %48 : vector<16x16x8xf32> to vector<256x8xf32>
    %50 = vector.extract_strided_slice %37 {offsets = [2, 0, 0], sizes = [16, 16, 8], strides = [1, 1, 1]} : vector<18x18x8xf32> to vector<16x16x8xf32>
    %51 = vector.shape_cast %50 : vector<16x16x8xf32> to vector<256x8xf32>
    %52 = vector.extract_strided_slice %37 {offsets = [2, 1, 0], sizes = [16, 16, 8], strides = [1, 1, 1]} : vector<18x18x8xf32> to vector<16x16x8xf32>
    %53 = vector.shape_cast %52 : vector<16x16x8xf32> to vector<256x8xf32>
    %54 = vector.extract_strided_slice %37 {offsets = [2, 2, 0], sizes = [16, 16, 8], strides = [1, 1, 1]} : vector<18x18x8xf32> to vector<16x16x8xf32>
    %55 = vector.shape_cast %54 : vector<16x16x8xf32> to vector<256x8xf32>
    %c0_18 = arith.constant 0 : index
    %c0_19 = arith.constant 0 : index
    %c0_20 = arith.constant 0 : index
    %c0_21 = arith.constant 0 : index
    %56 = vector.load %arg2[%c0_18, %c0_19, %c0_20, %c0_21] : memref<1x16x16x4xf32, #tpu.memory_space<vmem>>, vector<1x16x16x4xf32>
    %57 = vector.shape_cast %56 : vector<1x16x16x4xf32> to vector<16x16x4xf32>
    %58 = vector.shape_cast %57 : vector<16x16x4xf32> to vector<256x4xf32>
    %59 = tpu.concatenate %39, %41, %43, %45, %47, %49, %51, %53, %55, %58 in 1 : vector<256x8xf32>, vector<256x8xf32>, vector<256x8xf32>, vector<256x8xf32>, vector<256x8xf32>, vector<256x8xf32>, vector<256x8xf32>, vector<256x8xf32>, vector<256x8xf32>, vector<256x4xf32> -> vector<256x76xf32>
    %c0_22 = arith.constant 0 : index
    %c0_23 = arith.constant 0 : index
    %60 = vector.load %arg5[%c0_22, %c0_23] : memref<76x8xf32, #tpu.memory_space<vmem>>, vector<76x8xf32>
    %cst_24 = arith.constant dense<0.000000e+00> : vector<256x8xf32>
    %61 = tpu.matmul %59, %60, %cst_24 {dimension_numbers = #tpu.dot_dimension_numbers<[1], [0], [0], [1], [0, 0, 1, 1], [], []>} : vector<256x76xf32>, vector<76x8xf32>, vector<256x8xf32> -> vector<256x8xf32>
    %c0_25 = arith.constant 0 : index
    %c0_26 = arith.constant 0 : index
    %62 = vector.load %arg6[%c0_25, %c0_26] : memref<1x8xf32, #tpu.memory_space<vmem>>, vector<1x8xf32>
    %63 = vector.shape_cast %62 : vector<1x8xf32> to vector<8xf32>
    %64 = vector.shape_cast %63 : vector<8xf32> to vector<1x8xf32>
    %65 = vector.broadcast %64 : vector<1x8xf32> to vector<256x8xf32>
    %66 = arith.addf %61, %65 : vector<256x8xf32>
    %c0_27 = arith.constant 0 : index
    %c0_28 = arith.constant 0 : index
    %c0_29 = arith.constant 0 : index
    %67 = vector.load %arg7[%c0_27, %c0_28, %c0_29] : memref<1x256x8xf32, #tpu.memory_space<vmem>>, vector<1x256x8xf32>
    %68 = vector.shape_cast %67 : vector<1x256x8xf32> to vector<256x8xf32>
    %69 = vector.shape_cast %66 : vector<256x8xf32> to vector<1x256x8xf32>
    tpu.vector_store %arg7[%c0_27, %c0_28, %c0_29], %69 {strides = array<i32>} : memref<1x256x8xf32, #tpu.memory_space<vmem>>, vector<1x256x8xf32>,
    return
  }
  func.func @transform_0(%arg0: i32) -> (i32, i32, i32, i32) {
    %c0_i32 = arith.constant 0 : i32
    %c0_i32_0 = arith.constant 0 : i32
    %c0_i32_1 = arith.constant 0 : i32
    %c0_i32_2 = arith.constant 0 : i32
    return %arg0, %c0_i32, %c0_i32_0, %c0_i32_1 : i32, i32, i32, i32
  }
  func.func @transform_1(%arg0: i32) -> (i32, i32, i32, i32) {
    %c0_i32 = arith.constant 0 : i32
    %c0_i32_0 = arith.constant 0 : i32
    %c0_i32_1 = arith.constant 0 : i32
    %c0_i32_2 = arith.constant 0 : i32
    return %arg0, %c0_i32, %c0_i32_0, %c0_i32_1 : i32, i32, i32, i32
  }
  func.func @transform_2(%arg0: i32) -> (i32, i32) {
    %c0_i32 = arith.constant 0 : i32
    %c0_i32_0 = arith.constant 0 : i32
    %c0_i32_1 = arith.constant 0 : i32
    return %c0_i32, %c0_i32_0 : i32, i32
  }
  func.func @transform_3(%arg0: i32) -> (i32, i32) {
    %c0_i32 = arith.constant 0 : i32
    %c0_i32_0 = arith.constant 0 : i32
    %c0_i32_1 = arith.constant 0 : i32
    return %c0_i32, %c0_i32_0 : i32, i32
  }
  func.func @transform_4(%arg0: i32) -> (i32, i32) {
    %c0_i32 = arith.constant 0 : i32
    %c0_i32_0 = arith.constant 0 : i32
    %c0_i32_1 = arith.constant 0 : i32
    return %c0_i32, %c0_i32_0 : i32, i32
  }
  func.func @transform_5(%arg0: i32) -> (i32, i32) {
    %c0_i32 = arith.constant 0 : i32
    %c0_i32_0 = arith.constant 0 : i32
    %c0_i32_1 = arith.constant 0 : i32
    return %c0_i32, %c0_i32_0 : i32, i32
  }
  func.func @transform_6(%arg0: i32) -> (i32, i32, i32) {
    %c0_i32 = arith.constant 0 : i32
    %c0_i32_0 = arith.constant 0 : i32
    %c0_i32_1 = arith.constant 0 : i32
    return %arg0, %c0_i32, %c0_i32_0 : i32, i32, i32
  }
}

</mosaic_0001>

<llo_original>
// kernel: res_block.1
$region0: #{res_block.1}
  #allocation0 [shape = 'u32[]', space=smem, size = 0x4, offset = 0x4, fixed_abs, tag = 'smem constant byte address 0x4 - core index']
  #allocation1 [shape = 'u32[72,128]{1,0:T(1,128)}', space=vmem, size = 0x9000, scoped, tag = 'internal scratch']
  #allocation2 [shape = 'f32[18,18,8]{2,1,0:T(8,128)}', space=vmem, size = 0x36000, scoped, tag = 'scratch operand']
  %s0 = inlined_call_operand.vmem [shape: f32[2,18,18,4], index: 0, kind: input, shape index: {}]
  %s1 = inlined_call_operand.vmem [shape: f32[2,16,16,4], index: 1, kind: input, shape index: {}]
  %s2 = inlined_call_operand.vmem [shape: f32[36,8], index: 2, kind: input, shape index: {}]
  %s3 = inlined_call_operand.vmem [shape: f32[1,8], index: 3, kind: input, shape index: {}]
  %s4 = inlined_call_operand.vmem [shape: f32[76,8], index: 4, kind: input, shape index: {}]
  %s5 = inlined_call_operand.vmem [shape: f32[1,8], index: 5, kind: input, shape index: {}]
  %s6 = inlined_call_operand.vmem [shape: f32[2,256,8], index: 6, kind: output, shape index: {}]
  %s7 = sld [smem:[#allocation0]]
  $region57: #{res_block.1} parent=0
    _
  %s9 = ssub.s32 1, %s7
  %s10 = scalar_select 0, %s9, %s7
  loop: start=0, step=1, limit=4
  $region2: #{res_block.1} parent=0 // loop_pre_header
    _
  $region3: #{res_block.1} parent=0 // loop_header
    %s12 = sphi 0, %s16
    %p13 = scmp.ge.s32.totalorder %s12, 4
    %s22 = sphi 0, %s24
    %s25 = sphi 0, %s22
    %s26 = sphi 0, %s25
    %s42 = sphi 0, %s26
    %s48 = sphi 0, %s50
    %s51 = sphi 0, %s48
    %s52 = sphi 0, %s51
    %s68 = sphi 0, %s52
    %s72 = sphi 0, %s72
    %s74 = sphi 0, %s72
    %s75 = sphi 0, %s74
    %s89 = sphi 0, %s75
    %s93 = sphi 0, %s93
    %s95 = sphi 0, %s93
    %s96 = sphi 0, %s95
    %s110 = sphi 0, %s96
    %s114 = sphi 0, %s114
    %s116 = sphi 0, %s114
    %s117 = sphi 0, %s116
    %s131 = sphi 0, %s117
    %s135 = sphi 0, %s135
    %s137 = sphi 0, %s135
    %s138 = sphi 0, %s137
    %s152 = sphi 0, %s138
    %s158 = sphi 0, %s160
    %s161 = sphi 0, %s158
    %s162 = sphi 0, %s161
    %s178 = sphi 0, %s162
  $region4: #{res_block.1} parent=0 // loop_header_branch
    %15 = sbr.rel (%p13) target = $region8
  $region5: #{res_block.1} parent=0 // loop_body
    %s17 = ssub.s32 %s12, 1
    %s18 = ssub.s32 %s12, 2
    %s19 = sadd.s32 %s12, 1
    %s20 = ssub.s32 %s12, %s19
    %p21 = scmp.eq.s32.totalorder %s20, 0
    %s23 = sadd.s32 %s22, 1
    %s24 = scalar_select %p21, %s22, %s23
    %p27 = pneg %p21
    %p28 = scmp.eq.s32.totalorder %s12, 1
    %p29 = por %p27, %p28
    %p30 = scmp.ne.s32.totalorder %s22, %s25
    %p31 = scmp.eq.s32.totalorder %s12, 0
    %p32 = por %p30, %p31
    %p33 = scmp.ne.s32.totalorder %s22, %s25
    %p34 = scmp.eq.s32.totalorder %s17, 1
    %p35 = por %p33, %p34
    %p36 = scmp.ne.s32.totalorder %s25, %s26
    %p37 = scmp.eq.s32.totalorder %s17, 0
    %p38 = por %p36, %p37
    %p39 = scmp.ne.s32.totalorder %s25, %s26
    %p40 = scmp.eq.s32.totalorder %s18, 1
    %p41 = por %p39, %p40
    %p43 = scmp.ne.s32.totalorder %s26, %s42
    %p44 = scmp.eq.s32.totalorder %s18, 0
    %p45 = por %p43, %p44
    %s46 = ssub.s32 %s12, %s19
    %p47 = scmp.eq.s32.totalorder %s46, 0
    %s49 = sadd.s32 %s48, 1
    %s50 = scalar_select %p47, %s48, %s49
    %p53 = pneg %p47
    %p54 = scmp.eq.s32.totalorder %s12, 1
    %p55 = por %p53, %p54
    %p56 = scmp.ne.s32.totalorder %s48, %s51
    %p57 = scmp.eq.s32.totalorder %s12, 0
    %p58 = por %p56, %p57
    %p59 = scmp.ne.s32.totalorder %s48, %s51
    %p60 = scmp.eq.s32.totalorder %s17, 1
    %p61 = por %p59, %p60
    %p62 = scmp.ne.s32.totalorder %s51, %s52
    %p63 = scmp.eq.s32.totalorder %s17, 0
    %p64 = por %p62, %p63
    %p65 = scmp.ne.s32.totalorder %s51, %s52
    %p66 = scmp.eq.s32.totalorder %s18, 1
    %p67 = por %p65, %p66
    %p69 = scmp.ne.s32.totalorder %s52, %s68
    %p70 = scmp.eq.s32.totalorder %s18, 0
    %p71 = por %p69, %p70
    %s73 = sadd.s32 %s72, 1
    %p76 = scmp.eq.s32.totalorder %s12, 1
    %p77 = scmp.ne.s32.totalorder %s72, %s74
    %p78 = scmp.eq.s32.totalorder %s12, 0
    %p79 = por %p77, %p78
    %p80 = scmp.ne.s32.totalorder %s72, %s74
    %p81 = scmp.eq.s32.totalorder %s17, 1
    %p82 = por %p80, %p81
    %p83 = scmp.ne.s32.totalorder %s74, %s75
    %p84 = scmp.eq.s32.totalorder %s17, 0
    %p85 = por %p83, %p84
    %p86 = scmp.ne.s32.totalorder %s74, %s75
    %p87 = scmp.eq.s32.totalorder %s18, 1
    %p88 = por %p86, %p87
    %p90 = scmp.ne.s32.totalorder %s75, %s89
    %p91 = scmp.eq.s32.totalorder %s18, 0
    %p92 = por %p90, %p91
    %s94 = sadd.s32 %s93, 1
    %p97 = scmp.eq.s32.totalorder %s12, 1
    %p98 = scmp.ne.s32.totalorder %s93, %s95
    %p99 = scmp.eq.s32.totalorder %s12, 0
    %p100 = por %p98, %p99
    %p101 = scmp.ne.s32.totalorder %s93, %s95
    %p102 = scmp.eq.s32.totalorder %s17, 1
    %p103 = por %p101, %p102
    %p104 = scmp.ne.s32.totalorder %s95, %s96
    %p105 = scmp.eq.s32.totalorder %s17, 0
    %p106 = por %p104, %p105
    %p107 = scmp.ne.s32.totalorder %s95, %s96
    %p108 = scmp.eq.s32.totalorder %s18, 1
    %p109 = por %p107, %p108
    %p111 = scmp.ne.s32.totalorder %s96, %s110
    %p112 = scmp.eq.s32.totalorder %s18, 0
    %p113 = por %p111, %p112
    %s115 = sadd.s32 %s114, 1
    %p118 = scmp.eq.s32.totalorder %s12, 1
    %p119 = scmp.ne.s32.totalorder %s114, %s116
    %p120 = scmp.eq.s32.totalorder %s12, 0
    %p121 = por %p119, %p120
    %p122 = scmp.ne.s32.totalorder %s114, %s116
    %p123 = scmp.eq.s32.totalorder %s17, 1
    %p124 = por %p122, %p123
    %p125 = scmp.ne.s32.totalorder %s116, %s117
    %p126 = scmp.eq.s32.totalorder %s17, 0
    %p127 = por %p125, %p126
    %p128 = scmp.ne.s32.totalorder %s116, %s117
    %p129 = scmp.eq.s32.totalorder %s18, 1
    %p130 = por %p128, %p129
    %p132 = scmp.ne.s32.totalorder %s117, %s131
    %p133 = scmp.eq.s32.totalorder %s18, 0
    %p134 = por %p132, %p133
    %s136 = sadd.s32 %s135, 1
    %p139 = scmp.eq.s32.totalorder %s12, 1
    %p140 = scmp.ne.s32.totalorder %s135, %s137
    %p141 = scmp.eq.s32.totalorder %s12, 0
    %p142 = por %p140, %p141
    %p143 = scmp.ne.s32.totalorder %s135, %s137
    %p144 = scmp.eq.s32.totalorder %s17, 1
    %p145 = por %p143, %p144
    %p146 = scmp.ne.s32.totalorder %s137, %s138
    %p147 = scmp.eq.s32.totalorder %s17, 0
    %p148 = por %p146, %p147
    %p149 = scmp.ne.s32.totalorder %s137, %s138
    %p150 = scmp.eq.s32.totalorder %s18, 1
    %p151 = por %p149, %p150
    %p153 = scmp.ne.s32.totalorder %s138, %s152
    %p154 = scmp.eq.s32.totalorder %s18, 0
    %p155 = por %p153, %p154
    %s156 = ssub.s32 %s12, %s19
    %p157 = scmp.eq.s32.totalorder %s156, 0
    %s159 = sadd.s32 %s158, 1
    %s160 = scalar_select %p157, %s158, %s159
    %p163 = pneg %p157
    %p164 = scmp.eq.s32.totalorder %s12, 1
    %p165 = por %p163, %p164
    %p166 = scmp.ne.s32.totalorder %s158, %s161
    %p167 = scmp.eq.s32.totalorder %s12, 0
    %p168 = por %p166, %p167
    %p169 = scmp.ne.s32.totalorder %s158, %s161
    %p170 = scmp.eq.s32.totalorder %s17, 1
    %p171 = por %p169, %p170
    %p172 = scmp.ne.s32.totalorder %s161, %s162
    %p173 = scmp.eq.s32.totalorder %s17, 0
    %p174 = por %p172, %p173
    %p175 = scmp.ne.s32.totalorder %s161, %s162
    %p176 = scmp.eq.s32.totalorder %s18, 1
    %p177 = por %p175, %p176
    %p179 = scmp.ne.s32.totalorder %s162, %s178
    %p180 = scmp.eq.s32.totalorder %s18, 0
    %p181 = por %p179, %p180
    %p182 = scmp.le.s32.totalorder 1, %s12
    %p183 = scmp.lt.s32.totalorder %s12, 3
    %p184 = pnand %p182, %p183
    %p185 = pneg %p184
    // Predicated region
    $region9: #{res_block.1} parent=5 // pred_check
      _
    $region10: #{res_block.1} parent=5 // pred_check_branch
      %187 = sbr.rel (%p184) target = $region12
    $region11: #{res_block.1} parent=5 // pred_region
      %s188 = ssub.s32 %s12, 1
      // Predicated region
      $region13: #{res_block.1} parent=11 // pred_check
        %p189 = pneg %p85
      $region14: #{res_block.1} parent=11 // pred_check_branch
        %191 = sbr.rel (%p189) target = $region16
      $region15: #{res_block.1} parent=11 // pred_region
        _
      $region16: #{res_block.1} parent=11 // pred_fallthru
        _
      // Predicated region
      $region17: #{res_block.1} parent=11 // pred_check
        %p192 = pneg %p106
      $region18: #{res_block.1} parent=11 // pred_check_branch
        %194 = sbr.rel (%p192) target = $region20
      $region19: #{res_block.1} parent=11 // pred_region
        _
      $region20: #{res_block.1} parent=11 // pred_fallthru
        _
      // Predicated region
      $region21: #{res_block.1} parent=11 // pred_check
        %p195 = pneg %p127
      $region22: #{res_block.1} parent=11 // pred_check_branch
        %197 = sbr.rel (%p195) target = $region24
      $region23: #{res_block.1} parent=11 // pred_region
        _
      $region24: #{res_block.1} parent=11 // pred_fallthru
        _
      // Predicated region
      $region25: #{res_block.1} parent=11 // pred_check
        %p198 = pneg %p148
      $region26: #{res_block.1} parent=11 // pred_check_branch
        %200 = sbr.rel (%p198) target = $region28
      $region27: #{res_block.1} parent=11 // pred_region
        _
      $region28: #{res_block.1} parent=11 // pred_fallthru
        _
    $region12: #{res_block.1} parent=5 // pred_fallthru
      _
    %p201 = scmp.lt.s32.totalorder %s12, 2
    // Predicated region
    $region29: #{res_block.1} parent=5 // pred_check
      %p202 = pneg %p201
    $region30: #{res_block.1} parent=5 // pred_check_branch
      %204 = sbr.rel (%p202) target = $region32
    $region31: #{res_block.1} parent=5 // pred_region
      // Predicated region
      $region33: #{res_block.1} parent=31 // pred_check
        %p205 = pneg %p32
      $region34: #{res_block.1} parent=31 // pred_check_branch
        %207 = sbr.rel (%p205) target = $region36
      $region35: #{res_block.1} parent=31 // pred_region
        %p208 = scmp.lt.s32.totalorder %s12, 1
        %s209 = scalar_select %p208, %s12, 1
        %s210 = smul.addr %s209, 54
        %s211 = smul.addr %s210, 8
        %s212 = scalar_lea.vmem %s0, %s211
      $region36: #{res_block.1} parent=31 // pred_fallthru
        _
      // Predicated region
      $region37: #{res_block.1} parent=31 // pred_check
        %p213 = pneg %p58
      $region38: #{res_block.1} parent=31 // pred_check_branch
        %215 = sbr.rel (%p213) target = $region40
      $region39: #{res_block.1} parent=31 // pred_region
        %p216 = scmp.lt.s32.totalorder %s12, 1
        %s217 = scalar_select %p216, %s12, 1
        %s218 = smul.addr %s217, 32
        %s219 = smul.addr %s218, 8
        %s220 = scalar_lea.vmem %s1, %s219
      $region40: #{res_block.1} parent=31 // pred_fallthru
        _
    $region32: #{res_block.1} parent=5 // pred_fallthru
      _
    %p221 = scmp.le.s32.totalorder 1, %s12
    %p222 = scmp.lt.s32.totalorder %s12, 3
    %p223 = pnand %p221, %p222
    %p224 = pneg %p223
    // Predicated region
    $region41: #{res_block.1} parent=5 // pred_check
      _
    $region42: #{res_block.1} parent=5 // pred_check_branch
      %226 = sbr.rel (%p223) target = $region44
    $region43: #{res_block.1} parent=5 // pred_region
      %s227 = ssub.s32 %s12, 1
      %p228 = scmp.lt.s32.totalorder %s17, 1
      %s229 = scalar_select %p228, %s17, 1
      %s230 = smul.addr %s229, 54
      %s231 = smul.addr %s230, 8
      %s232 = scalar_lea.vmem %s0, %s231
      %p233 = pneg %p38
      %p234 = pneg %p35
      %p235 = scmp.lt.s32.totalorder %s17, 1
      %s236 = scalar_select %p235, %s17, 1
      %s237 = smul.addr %s236, 32
      %s238 = smul.addr %s237, 8
      %s239 = scalar_lea.vmem %s1, %s238
      %p240 = pneg %p64
      %p241 = pneg %p61
      %p242 = pneg %p85
      %p243 = pneg %p82
      %p244 = pneg %p106
      %p245 = pneg %p103
      %p246 = pneg %p127
      %p247 = pneg %p124
      %p248 = pneg %p148
      %p249 = pneg %p145
      %p250 = pneg %p174
      %p251 = pneg %p171
      %p252 = scmp.lt.s32.totalorder %s17, 1
      %s253 = scalar_select %p252, %s17, 1
      %s254 = smul.addr %s253, 32
      %s255 = smul.addr %s254, 8
      %s256 = scalar_lea.vmem %s6, %s255
      %p257 = scmp.lt.s32.totalorder %s17, 1
      %s258 = scalar_select %p257, %s17, 1
      %s259 = smul.addr %s258, 54
      %s260 = smul.addr %s259, 8
      %s261 = scalar_lea.vmem %s0, %s260
      %p262 = scmp.lt.s32.totalorder %s17, 1
      %s263 = scalar_select %p262, %s17, 1
      %s264 = smul.addr %s263, 32
      %s265 = smul.addr %s264, 8
      %s266 = scalar_lea.vmem %s1, %s265
      %p267 = scmp.lt.s32.totalorder %s17, 1
      %s268 = scalar_select %p267, %s17, 1
      %s269 = smul.addr %s268, 32
      %s270 = smul.addr %s269, 8
      %s271 = scalar_lea.vmem %s6, %s270
      %v272 = vld [vmem:[%s261] sm:$0xff]
      %v273 = vld [vmem:[%s261 + $0x8] sm:$0xff]
      %v274 = vld [vmem:[%s261 + $0x10] sm:$0x3]
      %v275 = vld [vmem:[%s261 + $0x18] sm:$0xff]
      %v276 = vld [vmem:[%s261 + $0x20] sm:$0xff]
      %v277 = vld [vmem:[%s261 + $0x28] sm:$0x3]
      %v278 = vld [vmem:[%s261 + $0x30] sm:$0xff]
      %v279 = vld [vmem:[%s261 + $0x38] sm:$0xff]
      %v280 = vld [vmem:[%s261 + $0x40] sm:$0x3]
      %v281 = vld [vmem:[%s261 + $0x48] sm:$0xff]
      %v282 = vld [vmem:[%s261 + $0x50] sm:$0xff]
      %v283 = vld [vmem:[%s261 + $0x58] sm:$0x3]
      %v284 = vld [vmem:[%s261 + $0x60] sm:$0xff]
      %v285 = vld [vmem:[%s261 + $0x68] sm:$0xff]
      %v286 = vld [vmem:[%s261 + $0x70] sm:$0x3]
      %v287 = vld [vmem:[%s261 + $0x78] sm:$0xff]
      %v288 = vld [vmem:[%s261 + $0x80] sm:$0xff]
      %v289 = vld [vmem:[%s261 + $0x88] sm:$0x3]
      %v290 = vld [vmem:[%s261 + $0x90] sm:$0xff]
      %v291 = vld [vmem:[%s261 + $0x98] sm:$0xff]
      %v292 = vld [vmem:[%s261 + $0xa0] sm:$0x3]
      %v293 = vld [vmem:[%s261 + $0xa8] sm:$0xff]
      %v294 = vld [vmem:[%s261 + $0xb0] sm:$0xff]
      %v295 = vld [vmem:[%s261 + $0xb8] sm:$0x3]
      %v296 = vld [vmem:[%s261 + $0xc0] sm:$0xff]
      %v297 = vld [vmem:[%s261 + $0xc8] sm:$0xff]
      %v298 = vld [vmem:[%s261 + $0xd0] sm:$0x3]
      %v299 = vld [vmem:[%s261 + $0xd8] sm:$0xff]
      %v300 = vld [vmem:[%s261 + $0xe0] sm:$0xff]
      %v301 = vld [vmem:[%s261 + $0xe8] sm:$0x3]
      %v302 = vld [vmem:[%s261 + $0xf0] sm:$0xff]
      %v303 = vld [vmem:[%s261 + $0xf8] sm:$0xff]
      %v304 = vld [vmem:[%s261 + $0x100] sm:$0x3]
      %v305 = vld [vmem:[%s261 + $0x108] sm:$0xff]
      %v306 = vld [vmem:[%s261 + $0x110] sm:$0xff]
      %v307 = vld [vmem:[%s261 + $0x118] sm:$0x3]
      %v308 = vld [vmem:[%s261 + $0x120] sm:$0xff]
      %v309 = vld [vmem:[%s261 + $0x128] sm:$0xff]
      %v310 = vld [vmem:[%s261 + $0x130] sm:$0x3]
      %v311 = vld [vmem:[%s261 + $0x138] sm:$0xff]
      %v312 = vld [vmem:[%s261 + $0x140] sm:$0xff]
      %v313 = vld [vmem:[%s261 + $0x148] sm:$0x3]
      %v314 = vld [vmem:[%s261 + $0x150] sm:$0xff]
      %v315 = vld [vmem:[%s261 + $0x158] sm:$0xff]
      %v316 = vld [vmem:[%s261 + $0x160] sm:$0x3]
      %v317 = vld [vmem:[%s261 + $0x168] sm:$0xff]
      %v318 = vld [vmem:[%s261 + $0x170] sm:$0xff]
      %v319 = vld [vmem:[%s261 + $0x178] sm:$0x3]
      %v320 = vld [vmem:[%s261 + $0x180] sm:$0xff]
      %v321 = vld [vmem:[%s261 + $0x188] sm:$0xff]
      %v322 = vld [vmem:[%s261 + $0x190] sm:$0x3]
      %v323 = vld [vmem:[%s261 + $0x198] sm:$0xff]
      %v324 = vld [vmem:[%s261 + $0x1a0] sm:$0xff]
      %v325 = vld [vmem:[%s261 + $0x1a8] sm:$0x3]
      %vm374 = vcmask 1046528
      %v375 = vrot.slane %v272, 1
      %v376 = vrot.slane %v273, 1
      %v377 = vsel %vm374, %v375, %v376
      %v378 = vrot.slane %v274, 1
      %v379 = vsel %vm374, %v376, %v378
      %v380 = vrot.slane %v275, 1
      %v381 = vrot.slane %v276, 1
      %v382 = vsel %vm374, %v380, %v381
      %v383 = vrot.slane %v277, 1
      %v384 = vsel %vm374, %v381, %v383
      %v385 = vrot.slane %v278, 1
      %v386 = vrot.slane %v279, 1
      %v387 = vsel %vm374, %v385, %v386
      %v388 = vrot.slane %v280, 1
      %v389 = vsel %vm374, %v386, %v388
      %v390 = vrot.slane %v281, 1
      %v391 = vrot.slane %v282, 1
      %v392 = vsel %vm374, %v390, %v391
      %v393 = vrot.slane %v283, 1
      %v394 = vsel %vm374, %v391, %v393
      %v395 = vrot.slane %v284, 1
      %v396 = vrot.slane %v285, 1
      %v397 = vsel %vm374, %v395, %v396
      %v398 = vrot.slane %v286, 1
      %v399 = vsel %vm374, %v396, %v398
      %v400 = vrot.slane %v287, 1
      %v401 = vrot.slane %v288, 1
      %v402 = vsel %vm374, %v400, %v401
      %v403 = vrot.slane %v289, 1
      %v404 = vsel %vm374, %v401, %v403
      %v405 = vrot.slane %v290, 1
      %v406 = vrot.slane %v291, 1
      %v407 = vsel %vm374, %v405, %v406
      %v408 = vrot.slane %v292, 1
      %v409 = vsel %vm374, %v406, %v408
      %v410 = vrot.slane %v293, 1
      %v411 = vrot.slane %v294, 1
      %v412 = vsel %vm374, %v410, %v411
      %v413 = vrot.slane %v295, 1
      %v414 = vsel %vm374, %v411, %v413
      %v415 = vrot.slane %v296, 1
      %v416 = vrot.slane %v297, 1
      %v417 = vsel %vm374, %v415, %v416
      %v418 = vrot.slane %v298, 1
      %v419 = vsel %vm374, %v416, %v418
      %v420 = vrot.slane %v299, 1
      %v421 = vrot.slane %v300, 1
      %v422 = vsel %vm374, %v420, %v421
      %v423 = vrot.slane %v301, 1
      %v424 = vsel %vm374, %v421, %v423
      %v425 = vrot.slane %v302, 1
      %v426 = vrot.slane %v303, 1
      %v427 = vsel %vm374, %v425, %v426
      %v428 = vrot.slane %v304, 1
      %v429 = vsel %vm374, %v426, %v428
      %v430 = vrot.slane %v305, 1
      %v431 = vrot.slane %v306, 1
      %v432 = vsel %vm374, %v430, %v431
      %v433 = vrot.slane %v307, 1
      %v434 = vsel %vm374, %v431, %v433
      %v435 = vrot.slane %v308, 1
      %v436 = vrot.slane %v309, 1
      %v437 = vsel %vm374, %v435, %v436
      %v438 = vrot.slane %v310, 1
      %v439 = vsel %vm374, %v436, %v438
      %v440 = vrot.slane %v311, 1
      %v441 = vrot.slane %v312, 1
      %v442 = vsel %vm374, %v440, %v441
      %v443 = vrot.slane %v313, 1
      %v444 = vsel %vm374, %v441, %v443
      %v445 = vrot.slane %v314, 1
      %v446 = vrot.slane %v315, 1
      %v447 = vsel %vm374, %v445, %v446
      %v448 = vrot.slane %v316, 1
      %v449 = vsel %vm374, %v446, %v448
      %v450 = vrot.slane %v317, 1
      %v451 = vrot.slane %v318, 1
      %v452 = vsel %vm374, %v450, %v451
      %v453 = vrot.slane %v319, 1
      %v454 = vsel %vm374, %v451, %v453
      %vm455 = vcmask 1045504
      %v456 = vrot.slane %v272, 2
      %v457 = vrot.slane %v273, 2
      %v458 = vsel %vm455, %v456, %v457
      %v459 = vrot.slane %v274, 2
      %v460 = vsel %vm455, %v457, %v459
      %v461 = vrot.slane %v275, 2
      %v462 = vrot.slane %v276, 2
      %v463 = vsel %vm455, %v461, %v462
      %v464 = vrot.slane %v277, 2
      %v465 = vsel %vm455, %v462, %v464
      %v466 = vrot.slane %v278, 2
      %v467 = vrot.slane %v279, 2
      %v468 = vsel %vm455, %v466, %v467
      %v469 = vrot.slane %v280, 2
      %v470 = vsel %vm455, %v467, %v469
      %v471 = vrot.slane %v281, 2
      %v472 = vrot.slane %v282, 2
      %v473 = vsel %vm455, %v471, %v472
      %v474 = vrot.slane %v283, 2
      %v475 = vsel %vm455, %v472, %v474
      %v476 = vrot.slane %v284, 2
      %v477 = vrot.slane %v285, 2
      %v478 = vsel %vm455, %v476, %v477
      %v479 = vrot.slane %v286, 2
      %v480 = vsel %vm455, %v477, %v479
      %v481 = vrot.slane %v287, 2
      %v482 = vrot.slane %v288, 2
      %v483 = vsel %vm455, %v481, %v482
      %v484 = vrot.slane %v289, 2
      %v485 = vsel %vm455, %v482, %v484
      %v486 = vrot.slane %v290, 2
      %v487 = vrot.slane %v291, 2
      %v488 = vsel %vm455, %v486, %v487
      %v489 = vrot.slane %v292, 2
      %v490 = vsel %vm455, %v487, %v489
      %v491 = vrot.slane %v293, 2
      %v492 = vrot.slane %v294, 2
      %v493 = vsel %vm455, %v491, %v492
      %v494 = vrot.slane %v295, 2
      %v495 = vsel %vm455, %v492, %v494
      %v496 = vrot.slane %v296, 2
      %v497 = vrot.slane %v297, 2
      %v498 = vsel %vm455, %v496, %v497
      %v499 = vrot.slane %v298, 2
      %v500 = vsel %vm455, %v497, %v499
      %v501 = vrot.slane %v299, 2
      %v502 = vrot.slane %v300, 2
      %v503 = vsel %vm455, %v501, %v502
      %v504 = vrot.slane %v301, 2
      %v505 = vsel %vm455, %v502, %v504
      %v506 = vrot.slane %v302, 2
      %v507 = vrot.slane %v303, 2
      %v508 = vsel %vm455, %v506, %v507
      %v509 = vrot.slane %v304, 2
      %v510 = vsel %vm455, %v507, %v509
      %v511 = vrot.slane %v305, 2
      %v512 = vrot.slane %v306, 2
      %v513 = vsel %vm455, %v511, %v512
      %v514 = vrot.slane %v307, 2
      %v515 = vsel %vm455, %v512, %v514
      %v516 = vrot.slane %v308, 2
      %v517 = vrot.slane %v309, 2
      %v518 = vsel %vm455, %v516, %v517
      %v519 = vrot.slane %v310, 2
      %v520 = vsel %vm455, %v517, %v519
      %v521 = vrot.slane %v311, 2
      %v522 = vrot.slane %v312, 2
      %v523 = vsel %vm455, %v521, %v522
      %v524 = vrot.slane %v313, 2
      %v525 = vsel %vm455, %v522, %v524
      %v526 = vrot.slane %v314, 2
      %v527 = vrot.slane %v315, 2
      %v528 = vsel %vm455, %v526, %v527
      %v529 = vrot.slane %v316, 2
      %v530 = vsel %vm455, %v527, %v529
      %v531 = vrot.slane %v317, 2
      %v532 = vrot.slane %v318, 2
      %v533 = vsel %vm455, %v531, %v532
      %v534 = vrot.slane %v319, 2
      %v535 = vsel %vm455, %v532, %v534
      %v539 = vrot.slane %v320, 1
      %v540 = vrot.slane %v321, 1
      %v541 = vsel %vm374, %v539, %v540
      %v542 = vrot.slane %v322, 1
      %v543 = vsel %vm374, %v540, %v542
      %v544 = vrot.slane %v320, 2
      %v545 = vrot.slane %v321, 2
      %v546 = vsel %vm455, %v544, %v545
      %v547 = vrot.slane %v322, 2
      %v548 = vsel %vm455, %v545, %v547
      %v552 = vrot.slane %v323, 1
      %v553 = vrot.slane %v324, 1
      %v554 = vsel %vm374, %v552, %v553
      %v555 = vrot.slane %v325, 1
      %v556 = vsel %vm374, %v553, %v555
      %v557 = vrot.slane %v323, 2
      %v558 = vrot.slane %v324, 2
      %v559 = vsel %vm455, %v557, %v558
      %v560 = vrot.slane %v325, 2
      %v561 = vsel %vm455, %v558, %v560
      %562 = vrot.lane.b32.xlu0 %v377, 4
      %v563 = vpop.permute.xlu0 %562
      %564 = vrot.lane.b32.xlu0 %v379, 4
      %v565 = vpop.permute.xlu0 %564
      %566 = vrot.lane.b32.xlu0 %v382, 4
      %v567 = vpop.permute.xlu0 %566
      %568 = vrot.lane.b32.xlu0 %v384, 4
      %v569 = vpop.permute.xlu0 %568
      %570 = vrot.lane.b32.xlu0 %v387, 4
      %v571 = vpop.permute.xlu0 %570
      %572 = vrot.lane.b32.xlu0 %v389, 4
      %v573 = vpop.permute.xlu0 %572
      %574 = vrot.lane.b32.xlu0 %v392, 4
      %v575 = vpop.permute.xlu0 %574
      %576 = vrot.lane.b32.xlu0 %v394, 4
      %v577 = vpop.permute.xlu0 %576
      %578 = vrot.lane.b32.xlu0 %v397, 4
      %v579 = vpop.permute.xlu0 %578
      %580 = vrot.lane.b32.xlu0 %v399, 4
      %v581 = vpop.permute.xlu0 %580
      %582 = vrot.lane.b32.xlu0 %v402, 4
      %v583 = vpop.permute.xlu0 %582
      %584 = vrot.lane.b32.xlu0 %v404, 4
      %v585 = vpop.permute.xlu0 %584
      %586 = vrot.lane.b32.xlu0 %v407, 4
      %v587 = vpop.permute.xlu0 %586
      %588 = vrot.lane.b32.xlu0 %v409, 4
      %v589 = vpop.permute.xlu0 %588
      %590 = vrot.lane.b32.xlu0 %v412, 4
      %v591 = vpop.permute.xlu0 %590
      %592 = vrot.lane.b32.xlu0 %v414, 4
      %v593 = vpop.permute.xlu0 %592
      %594 = vrot.lane.b32.xlu0 %v417, 4
      %v595 = vpop.permute.xlu0 %594
      %596 = vrot.lane.b32.xlu0 %v419, 4
      %v597 = vpop.permute.xlu0 %596
      %598 = vrot.lane.b32.xlu0 %v422, 4
      %v599 = vpop.permute.xlu0 %598
      %600 = vrot.lane.b32.xlu0 %v424, 4
      %v601 = vpop.permute.xlu0 %600
      %602 = vrot.lane.b32.xlu0 %v427, 4
      %v603 = vpop.permute.xlu0 %602
      %604 = vrot.lane.b32.xlu0 %v429, 4
      %v605 = vpop.permute.xlu0 %604
      %606 = vrot.lane.b32.xlu0 %v432, 4
      %v607 = vpop.permute.xlu0 %606
      %608 = vrot.lane.b32.xlu0 %v434, 4
      %v609 = vpop.permute.xlu0 %608
      %610 = vrot.lane.b32.xlu0 %v437, 4
      %v611 = vpop.permute.xlu0 %610
      %612 = vrot.lane.b32.xlu0 %v439, 4
      %v613 = vpop.permute.xlu0 %612
      %614 = vrot.lane.b32.xlu0 %v442, 4
      %v615 = vpop.permute.xlu0 %614
      %616 = vrot.lane.b32.xlu0 %v444, 4
      %v617 = vpop.permute.xlu0 %616
      %618 = vrot.lane.b32.xlu0 %v447, 4
      %v619 = vpop.permute.xlu0 %618
      %620 = vrot.lane.b32.xlu0 %v449, 4
      %v621 = vpop.permute.xlu0 %620
      %622 = vrot.lane.b32.xlu0 %v452, 4
      %v623 = vpop.permute.xlu0 %622
      %624 = vrot.lane.b32.xlu0 %v454, 4
      %v625 = vpop.permute.xlu0 %624
      %658 = vrot.lane.b32.xlu0 %v458, 8
      %v659 = vpop.permute.xlu0 %658
      %660 = vrot.lane.b32.xlu0 %v460, 8
      %v661 = vpop.permute.xlu0 %660
      %662 = vrot.lane.b32.xlu0 %v463, 8
      %v663 = vpop.permute.xlu0 %662
      %664 = vrot.lane.b32.xlu0 %v465, 8
      %v665 = vpop.permute.xlu0 %664
      %666 = vrot.lane.b32.xlu0 %v468, 8
      %v667 = vpop.permute.xlu0 %666
      %668 = vrot.lane.b32.xlu0 %v470, 8
      %v669 = vpop.permute.xlu0 %668
      %670 = vrot.lane.b32.xlu0 %v473, 8
      %v671 = vpop.permute.xlu0 %670
      %672 = vrot.lane.b32.xlu0 %v475, 8
      %v673 = vpop.permute.xlu0 %672
      %674 = vrot.lane.b32.xlu0 %v478, 8
      %v675 = vpop.permute.xlu0 %674
      %676 = vrot.lane.b32.xlu0 %v480, 8
      %v677 = vpop.permute.xlu0 %676
      %678 = vrot.lane.b32.xlu0 %v483, 8
      %v679 = vpop.permute.xlu0 %678
      %680 = vrot.lane.b32.xlu0 %v485, 8
      %v681 = vpop.permute.xlu0 %680
      %682 = vrot.lane.b32.xlu0 %v488, 8
      %v683 = vpop.permute.xlu0 %682
      %684 = vrot.lane.b32.xlu0 %v490, 8
      %v685 = vpop.permute.xlu0 %684
      %686 = vrot.lane.b32.xlu0 %v493, 8
      %v687 = vpop.permute.xlu0 %686
      %688 = vrot.lane.b32.xlu0 %v495, 8
      %v689 = vpop.permute.xlu0 %688
      %690 = vrot.lane.b32.xlu0 %v498, 8
      %v691 = vpop.permute.xlu0 %690
      %692 = vrot.lane.b32.xlu0 %v500, 8
      %v693 = vpop.permute.xlu0 %692
      %694 = vrot.lane.b32.xlu0 %v503, 8
      %v695 = vpop.permute.xlu0 %694
      %696 = vrot.lane.b32.xlu0 %v505, 8
      %v697 = vpop.permute.xlu0 %696
      %698 = vrot.lane.b32.xlu0 %v508, 8
      %v699 = vpop.permute.xlu0 %698
      %700 = vrot.lane.b32.xlu0 %v510, 8
      %v701 = vpop.permute.xlu0 %700
      %702 = vrot.lane.b32.xlu0 %v513, 8
      %v703 = vpop.permute.xlu0 %702
      %704 = vrot.lane.b32.xlu0 %v515, 8
      %v705 = vpop.permute.xlu0 %704
      %706 = vrot.lane.b32.xlu0 %v518, 8
      %v707 = vpop.permute.xlu0 %706
      %708 = vrot.lane.b32.xlu0 %v520, 8
      %v709 = vpop.permute.xlu0 %708
      %710 = vrot.lane.b32.xlu0 %v523, 8
      %v711 = vpop.permute.xlu0 %710
      %712 = vrot.lane.b32.xlu0 %v525, 8
      %v713 = vpop.permute.xlu0 %712
      %714 = vrot.lane.b32.xlu0 %v528, 8
      %v715 = vpop.permute.xlu0 %714
      %716 = vrot.lane.b32.xlu0 %v530, 8
      %v717 = vpop.permute.xlu0 %716
      %718 = vrot.lane.b32.xlu0 %v533, 8
      %v719 = vpop.permute.xlu0 %718
      %720 = vrot.lane.b32.xlu0 %v535, 8
      %v721 = vpop.permute.xlu0 %720
      %754 = vrot.lane.b32.xlu0 %v275, 12
      %v755 = vpop.permute.xlu0 %754
      %756 = vrot.lane.b32.xlu0 %v276, 12
      %v757 = vpop.permute.xlu0 %756
      %758 = vrot.lane.b32.xlu0 %v278, 12
      %v759 = vpop.permute.xlu0 %758
      %760 = vrot.lane.b32.xlu0 %v279, 12
      %v761 = vpop.permute.xlu0 %760
      %762 = vrot.lane.b32.xlu0 %v281, 12
      %v763 = vpop.permute.xlu0 %762
      %764 = vrot.lane.b32.xlu0 %v282, 12
      %v765 = vpop.permute.xlu0 %764
      %766 = vrot.lane.b32.xlu0 %v284, 12
      %v767 = vpop.permute.xlu0 %766
      %768 = vrot.lane.b32.xlu0 %v285, 12
      %v769 = vpop.permute.xlu0 %768
      %770 = vrot.lane.b32.xlu0 %v287, 12
      %v771 = vpop.permute.xlu0 %770
      %772 = vrot.lane.b32.xlu0 %v288, 12
      %v773 = vpop.permute.xlu0 %772
      %774 = vrot.lane.b32.xlu0 %v290, 12
      %v775 = vpop.permute.xlu0 %774
      %776 = vrot.lane.b32.xlu0 %v291, 12
      %v777 = vpop.permute.xlu0 %776
      %778 = vrot.lane.b32.xlu0 %v293, 12
      %v779 = vpop.permute.xlu0 %778
      %780 = vrot.lane.b32.xlu0 %v294, 12
      %v781 = vpop.permute.xlu0 %780
      %782 = vrot.lane.b32.xlu0 %v296, 12
      %v783 = vpop.permute.xlu0 %782
      %784 = vrot.lane.b32.xlu0 %v297, 12
      %v785 = vpop.permute.xlu0 %784
      %786 = vrot.lane.b32.xlu0 %v299, 12
      %v787 = vpop.permute.xlu0 %786
      %788 = vrot.lane.b32.xlu0 %v300, 12
      %v789 = vpop.permute.xlu0 %788
      %790 = vrot.lane.b32.xlu0 %v302, 12
      %v791 = vpop.permute.xlu0 %790
      %792 = vrot.lane.b32.xlu0 %v303, 12
      %v793 = vpop.permute.xlu0 %792
      %794 = vrot.lane.b32.xlu0 %v305, 12
      %v795 = vpop.permute.xlu0 %794
      %796 = vrot.lane.b32.xlu0 %v306, 12
      %v797 = vpop.permute.xlu0 %796
      %798 = vrot.lane.b32.xlu0 %v308, 12
      %v799 = vpop.permute.xlu0 %798
      %800 = vrot.lane.b32.xlu0 %v309, 12
      %v801 = vpop.permute.xlu0 %800
      %802 = vrot.lane.b32.xlu0 %v311, 12
      %v803 = vpop.permute.xlu0 %802
      %804 = vrot.lane.b32.xlu0 %v312, 12
      %v805 = vpop.permute.xlu0 %804
      %806 = vrot.lane.b32.xlu0 %v314, 12
      %v807 = vpop.permute.xlu0 %806
      %808 = vrot.lane.b32.xlu0 %v315, 12
      %v809 = vpop.permute.xlu0 %808
      %810 = vrot.lane.b32.xlu0 %v317, 12
      %v811 = vpop.permute.xlu0 %810
      %812 = vrot.lane.b32.xlu0 %v318, 12
      %v813 = vpop.permute.xlu0 %812
      %814 = vrot.lane.b32.xlu0 %v320, 12
      %v815 = vpop.permute.xlu0 %814
      %816 = vrot.lane.b32.xlu0 %v321, 12
      %v817 = vpop.permute.xlu0 %816
      %850 = vrot.lane.b32.xlu0 %v382, 16
      %v851 = vpop.permute.xlu0 %850
      %852 = vrot.lane.b32.xlu0 %v384, 16
      %v853 = vpop.permute.xlu0 %852
      %854 = vrot.lane.b32.xlu0 %v387, 16
      %v855 = vpop.permute.xlu0 %854
      %856 = vrot.lane.b32.xlu0 %v389, 16
      %v857 = vpop.permute.xlu0 %856
      %858 = vrot.lane.b32.xlu0 %v392, 16
      %v859 = vpop.permute.xlu0 %858
      %860 = vrot.lane.b32.xlu0 %v394, 16
      %v861 = vpop.permute.xlu0 %860
      %862 = vrot.lane.b32.xlu0 %v397, 16
      %v863 = vpop.permute.xlu0 %862
      %864 = vrot.lane.b32.xlu0 %v399, 16
      %v865 = vpop.permute.xlu0 %864
      %866 = vrot.lane.b32.xlu0 %v402, 16
      %v867 = vpop.permute.xlu0 %866
      %868 = vrot.lane.b32.xlu0 %v404, 16
      %v869 = vpop.permute.xlu0 %868
      %870 = vrot.lane.b32.xlu0 %v407, 16
      %v871 = vpop.permute.xlu0 %870
      %872 = vrot.lane.b32.xlu0 %v409, 16
      %v873 = vpop.permute.xlu0 %872
      %874 = vrot.lane.b32.xlu0 %v412, 16
      %v875 = vpop.permute.xlu0 %874
      %876 = vrot.lane.b32.xlu0 %v414, 16
      %v877 = vpop.permute.xlu0 %876
      %878 = vrot.lane.b32.xlu0 %v417, 16
      %v879 = vpop.permute.xlu0 %878
      %880 = vrot.lane.b32.xlu0 %v419, 16
      %v881 = vpop.permute.xlu0 %880
      %882 = vrot.lane.b32.xlu0 %v422, 16
      %v883 = vpop.permute.xlu0 %882
      %884 = vrot.lane.b32.xlu0 %v424, 16
      %v885 = vpop.permute.xlu0 %884
      %886 = vrot.lane.b32.xlu0 %v427, 16
      %v887 = vpop.permute.xlu0 %886
      %888 = vrot.lane.b32.xlu0 %v429, 16
      %v889 = vpop.permute.xlu0 %888
      %890 = vrot.lane.b32.xlu0 %v432, 16
      %v891 = vpop.permute.xlu0 %890
      %892 = vrot.lane.b32.xlu0 %v434, 16
      %v893 = vpop.permute.xlu0 %892
      %894 = vrot.lane.b32.xlu0 %v437, 16
      %v895 = vpop.permute.xlu0 %894
      %896 = vrot.lane.b32.xlu0 %v439, 16
      %v897 = vpop.permute.xlu0 %896
      %898 = vrot.lane.b32.xlu0 %v442, 16
      %v899 = vpop.permute.xlu0 %898
      %900 = vrot.lane.b32.xlu0 %v444, 16
      %v901 = vpop.permute.xlu0 %900
      %902 = vrot.lane.b32.xlu0 %v447, 16
      %v903 = vpop.permute.xlu0 %902
      %904 = vrot.lane.b32.xlu0 %v449, 16
      %v905 = vpop.permute.xlu0 %904
      %906 = vrot.lane.b32.xlu0 %v452, 16
      %v907 = vpop.permute.xlu0 %906
      %908 = vrot.lane.b32.xlu0 %v454, 16
      %v909 = vpop.permute.xlu0 %908
      %910 = vrot.lane.b32.xlu0 %v541, 16
      %v911 = vpop.permute.xlu0 %910
      %912 = vrot.lane.b32.xlu0 %v543, 16
      %v913 = vpop.permute.xlu0 %912
      %946 = vrot.lane.b32.xlu0 %v463, 20
      %v947 = vpop.permute.xlu0 %946
      %948 = vrot.lane.b32.xlu0 %v465, 20
      %v949 = vpop.permute.xlu0 %948
      %950 = vrot.lane.b32.xlu0 %v468, 20
      %v951 = vpop.permute.xlu0 %950
      %952 = vrot.lane.b32.xlu0 %v470, 20
      %v953 = vpop.permute.xlu0 %952
      %954 = vrot.lane.b32.xlu0 %v473, 20
      %v955 = vpop.permute.xlu0 %954
      %956 = vrot.lane.b32.xlu0 %v475, 20
      %v957 = vpop.permute.xlu0 %956
      %958 = vrot.lane.b32.xlu0 %v478, 20
      %v959 = vpop.permute.xlu0 %958
      %960 = vrot.lane.b32.xlu0 %v480, 20
      %v961 = vpop.permute.xlu0 %960
      %962 = vrot.lane.b32.xlu0 %v483, 20
      %v963 = vpop.permute.xlu0 %962
      %964 = vrot.lane.b32.xlu0 %v485, 20
      %v965 = vpop.permute.xlu0 %964
      %966 = vrot.lane.b32.xlu0 %v488, 20
      %v967 = vpop.permute.xlu0 %966
      %968 = vrot.lane.b32.xlu0 %v490, 20
      %v969 = vpop.permute.xlu0 %968
      %970 = vrot.lane.b32.xlu0 %v493, 20
      %v971 = vpop.permute.xlu0 %970
      %972 = vrot.lane.b32.xlu0 %v495, 20
      %v973 = vpop.permute.xlu0 %972
      %974 = vrot.lane.b32.xlu0 %v498, 20
      %v975 = vpop.permute.xlu0 %974
      %976 = vrot.lane.b32.xlu0 %v500, 20
      %v977 = vpop.permute.xlu0 %976
      %978 = vrot.lane.b32.xlu0 %v503, 20
      %v979 = vpop.permute.xlu0 %978
      %980 = vrot.lane.b32.xlu0 %v505, 20
      %v981 = vpop.permute.xlu0 %980
      %982 = vrot.lane.b32.xlu0 %v508, 20
      %v983 = vpop.permute.xlu0 %982
      %984 = vrot.lane.b32.xlu0 %v510, 20
      %v985 = vpop.permute.xlu0 %984
      %986 = vrot.lane.b32.xlu0 %v513, 20
      %v987 = vpop.permute.xlu0 %986
      %988 = vrot.lane.b32.xlu0 %v515, 20
      %v989 = vpop.permute.xlu0 %988
      %990 = vrot.lane.b32.xlu0 %v518, 20
      %v991 = vpop.permute.xlu0 %990
      %992 = vrot.lane.b32.xlu0 %v520, 20
      %v993 = vpop.permute.xlu0 %992
      %994 = vrot.lane.b32.xlu0 %v523, 20
      %v995 = vpop.permute.xlu0 %994
      %996 = vrot.lane.b32.xlu0 %v525, 20
      %v997 = vpop.permute.xlu0 %996
      %998 = vrot.lane.b32.xlu0 %v528, 20
      %v999 = vpop.permute.xlu0 %998
      %1000 = vrot.lane.b32.xlu0 %v530, 20
      %v1001 = vpop.permute.xlu0 %1000
      %1002 = vrot.lane.b32.xlu0 %v533, 20
      %v1003 = vpop.permute.xlu0 %1002
      %1004 = vrot.lane.b32.xlu0 %v535, 20
      %v1005 = vpop.permute.xlu0 %1004
      %1006 = vrot.lane.b32.xlu0 %v546, 20
      %v1007 = vpop.permute.xlu0 %1006
      %1008 = vrot.lane.b32.xlu0 %v548, 20
      %v1009 = vpop.permute.xlu0 %1008
      %1042 = vrot.lane.b32.xlu0 %v278, 24
      %v1043 = vpop.permute.xlu0 %1042
      %1044 = vrot.lane.b32.xlu0 %v279, 24
      %v1045 = vpop.permute.xlu0 %1044
      %1046 = vrot.lane.b32.xlu0 %v281, 24
      %v1047 = vpop.permute.xlu0 %1046
      %1048 = vrot.lane.b32.xlu0 %v282, 24
      %v1049 = vpop.permute.xlu0 %1048
      %1050 = vrot.lane.b32.xlu0 %v284, 24
      %v1051 = vpop.permute.xlu0 %1050
      %1052 = vrot.lane.b32.xlu0 %v285, 24
      %v1053 = vpop.permute.xlu0 %1052
      %1054 = vrot.lane.b32.xlu0 %v287, 24
      %v1055 = vpop.permute.xlu0 %1054
      %1056 = vrot.lane.b32.xlu0 %v288, 24
      %v1057 = vpop.permute.xlu0 %1056
      %1058 = vrot.lane.b32.xlu0 %v290, 24
      %v1059 = vpop.permute.xlu0 %1058
      %1060 = vrot.lane.b32.xlu0 %v291, 24
      %v1061 = vpop.permute.xlu0 %1060
      %1062 = vrot.lane.b32.xlu0 %v293, 24
      %v1063 = vpop.permute.xlu0 %1062
      %1064 = vrot.lane.b32.xlu0 %v294, 24
      %v1065 = vpop.permute.xlu0 %1064
      %1066 = vrot.lane.b32.xlu0 %v296, 24
      %v1067 = vpop.permute.xlu0 %1066
      %1068 = vrot.lane.b32.xlu0 %v297, 24
      %v1069 = vpop.permute.xlu0 %1068
      %1070 = vrot.lane.b32.xlu0 %v299, 24
      %v1071 = vpop.permute.xlu0 %1070
      %1072 = vrot.lane.b32.xlu0 %v300, 24
      %v1073 = vpop.permute.xlu0 %1072
      %1074 = vrot.lane.b32.xlu0 %v302, 24
      %v1075 = vpop.permute.xlu0 %1074
      %1076 = vrot.lane.b32.xlu0 %v303, 24
      %v1077 = vpop.permute.xlu0 %1076
      %1078 = vrot.lane.b32.xlu0 %v305, 24
      %v1079 = vpop.permute.xlu0 %1078
      %1080 = vrot.lane.b32.xlu0 %v306, 24
      %v1081 = vpop.permute.xlu0 %1080
      %1082 = vrot.lane.b32.xlu0 %v308, 24
      %v1083 = vpop.permute.xlu0 %1082
      %1084 = vrot.lane.b32.xlu0 %v309, 24
      %v1085 = vpop.permute.xlu0 %1084
      %1086 = vrot.lane.b32.xlu0 %v311, 24
      %v1087 = vpop.permute.xlu0 %1086
      %1088 = vrot.lane.b32.xlu0 %v312, 24
      %v1089 = vpop.permute.xlu0 %1088
      %1090 = vrot.lane.b32.xlu0 %v314, 24
      %v1091 = vpop.permute.xlu0 %1090
      %1092 = vrot.lane.b32.xlu0 %v315, 24
      %v1093 = vpop.permute.xlu0 %1092
      %1094 = vrot.lane.b32.xlu0 %v317, 24
      %v1095 = vpop.permute.xlu0 %1094
      %1096 = vrot.lane.b32.xlu0 %v318, 24
      %v1097 = vpop.permute.xlu0 %1096
      %1098 = vrot.lane.b32.xlu0 %v320, 24
      %v1099 = vpop.permute.xlu0 %1098
      %1100 = vrot.lane.b32.xlu0 %v321, 24
      %v1101 = vpop.permute.xlu0 %1100
      %1102 = vrot.lane.b32.xlu0 %v323, 24
      %v1103 = vpop.permute.xlu0 %1102
      %1104 = vrot.lane.b32.xlu0 %v324, 24
      %v1105 = vpop.permute.xlu0 %1104
      %1138 = vrot.lane.b32.xlu0 %v387, 28
      %v1139 = vpop.permute.xlu0 %1138
      %1140 = vrot.lane.b32.xlu0 %v389, 28
      %v1141 = vpop.permute.xlu0 %1140
      %1142 = vrot.lane.b32.xlu0 %v392, 28
      %v1143 = vpop.permute.xlu0 %1142
      %1144 = vrot.lane.b32.xlu0 %v394, 28
      %v1145 = vpop.permute.xlu0 %1144
      %1146 = vrot.lane.b32.xlu0 %v397, 28
      %v1147 = vpop.permute.xlu0 %1146
      %1148 = vrot.lane.b32.xlu0 %v399, 28
      %v1149 = vpop.permute.xlu0 %1148
      %1150 = vrot.lane.b32.xlu0 %v402, 28
      %v1151 = vpop.permute.xlu0 %1150
      %1152 = vrot.lane.b32.xlu0 %v404, 28
      %v1153 = vpop.permute.xlu0 %1152
      %1154 = vrot.lane.b32.xlu0 %v407, 28
      %v1155 = vpop.permute.xlu0 %1154
      %1156 = vrot.lane.b32.xlu0 %v409, 28
      %v1157 = vpop.permute.xlu0 %1156
      %1158 = vrot.lane.b32.xlu0 %v412, 28
      %v1159 = vpop.permute.xlu0 %1158
      %1160 = vrot.lane.b32.xlu0 %v414, 28
      %v1161 = vpop.permute.xlu0 %1160
      %1162 = vrot.lane.b32.xlu0 %v417, 28
      %v1163 = vpop.permute.xlu0 %1162
      %1164 = vrot.lane.b32.xlu0 %v419, 28
      %v1165 = vpop.permute.xlu0 %1164
      %1166 = vrot.lane.b32.xlu0 %v422, 28
      %v1167 = vpop.permute.xlu0 %1166
      %1168 = vrot.lane.b32.xlu0 %v424, 28
      %v1169 = vpop.permute.xlu0 %1168
      %1170 = vrot.lane.b32.xlu0 %v427, 28
      %v1171 = vpop.permute.xlu0 %1170
      %1172 = vrot.lane.b32.xlu0 %v429, 28
      %v1173 = vpop.permute.xlu0 %1172
      %1174 = vrot.lane.b32.xlu0 %v432, 28
      %v1175 = vpop.permute.xlu0 %1174
      %1176 = vrot.lane.b32.xlu0 %v434, 28
      %v1177 = vpop.permute.xlu0 %1176
      %1178 = vrot.lane.b32.xlu0 %v437, 28
      %v1179 = vpop.permute.xlu0 %1178
      %1180 = vrot.lane.b32.xlu0 %v439, 28
      %v1181 = vpop.permute.xlu0 %1180
      %1182 = vrot.lane.b32.xlu0 %v442, 28
      %v1183 = vpop.permute.xlu0 %1182
      %1184 = vrot.lane.b32.xlu0 %v444, 28
      %v1185 = vpop.permute.xlu0 %1184
      %1186 = vrot.lane.b32.xlu0 %v447, 28
      %v1187 = vpop.permute.xlu0 %1186
      %1188 = vrot.lane.b32.xlu0 %v449, 28
      %v1189 = vpop.permute.xlu0 %1188
      %1190 = vrot.lane.b32.xlu0 %v452, 28
      %v1191 = vpop.permute.xlu0 %1190
      %1192 = vrot.lane.b32.xlu0 %v454, 28
      %v1193 = vpop.permute.xlu0 %1192
      %1194 = vrot.lane.b32.xlu0 %v541, 28
      %v1195 = vpop.permute.xlu0 %1194
      %1196 = vrot.lane.b32.xlu0 %v543, 28
      %v1197 = vpop.permute.xlu0 %1196
      %1198 = vrot.lane.b32.xlu0 %v554, 28
      %v1199 = vpop.permute.xlu0 %1198
      %1200 = vrot.lane.b32.xlu0 %v556, 28
      %v1201 = vpop.permute.xlu0 %1200
      %1234 = vrot.lane.b32.xlu0 %v468, 32
      %v1235 = vpop.permute.xlu0 %1234
      %1236 = vrot.lane.b32.xlu0 %v470, 32
      %v1237 = vpop.permute.xlu0 %1236
      %1238 = vrot.lane.b32.xlu0 %v473, 32
      %v1239 = vpop.permute.xlu0 %1238
      %1240 = vrot.lane.b32.xlu0 %v475, 32
      %v1241 = vpop.permute.xlu0 %1240
      %1242 = vrot.lane.b32.xlu0 %v478, 32
      %v1243 = vpop.permute.xlu0 %1242
      %1244 = vrot.lane.b32.xlu0 %v480, 32
      %v1245 = vpop.permute.xlu0 %1244
      %1246 = vrot.lane.b32.xlu0 %v483, 32
      %v1247 = vpop.permute.xlu0 %1246
      %1248 = vrot.lane.b32.xlu0 %v485, 32
      %v1249 = vpop.permute.xlu0 %1248
      %1250 = vrot.lane.b32.xlu0 %v488, 32
      %v1251 = vpop.permute.xlu0 %1250
      %1252 = vrot.lane.b32.xlu0 %v490, 32
      %v1253 = vpop.permute.xlu0 %1252
      %1254 = vrot.lane.b32.xlu0 %v493, 32
      %v1255 = vpop.permute.xlu0 %1254
      %1256 = vrot.lane.b32.xlu0 %v495, 32
      %v1257 = vpop.permute.xlu0 %1256
      %1258 = vrot.lane.b32.xlu0 %v498, 32
      %v1259 = vpop.permute.xlu0 %1258
      %1260 = vrot.lane.b32.xlu0 %v500, 32
      %v1261 = vpop.permute.xlu0 %1260
      %1262 = vrot.lane.b32.xlu0 %v503, 32
      %v1263 = vpop.permute.xlu0 %1262
      %1264 = vrot.lane.b32.xlu0 %v505, 32
      %v1265 = vpop.permute.xlu0 %1264
      %1266 = vrot.lane.b32.xlu0 %v508, 32
      %v1267 = vpop.permute.xlu0 %1266
      %1268 = vrot.lane.b32.xlu0 %v510, 32
      %v1269 = vpop.permute.xlu0 %1268
      %1270 = vrot.lane.b32.xlu0 %v513, 32
      %v1271 = vpop.permute.xlu0 %1270
      %1272 = vrot.lane.b32.xlu0 %v515, 32
      %v1273 = vpop.permute.xlu0 %1272
      %1274 = vrot.lane.b32.xlu0 %v518, 32
      %v1275 = vpop.permute.xlu0 %1274
      %1276 = vrot.lane.b32.xlu0 %v520, 32
      %v1277 = vpop.permute.xlu0 %1276
      %1278 = vrot.lane.b32.xlu0 %v523, 32
      %v1279 = vpop.permute.xlu0 %1278
      %1280 = vrot.lane.b32.xlu0 %v525, 32
      %v1281 = vpop.permute.xlu0 %1280
      %1282 = vrot.lane.b32.xlu0 %v528, 32
      %v1283 = vpop.permute.xlu0 %1282
      %1284 = vrot.lane.b32.xlu0 %v530, 32
      %v1285 = vpop.permute.xlu0 %1284
      %1286 = vrot.lane.b32.xlu0 %v533, 32
      %v1287 = vpop.permute.xlu0 %1286
      %1288 = vrot.lane.b32.xlu0 %v535, 32
      %v1289 = vpop.permute.xlu0 %1288
      %1290 = vrot.lane.b32.xlu0 %v546, 32
      %v1291 = vpop.permute.xlu0 %1290
      %1292 = vrot.lane.b32.xlu0 %v548, 32
      %v1293 = vpop.permute.xlu0 %1292
      %1294 = vrot.lane.b32.xlu0 %v559, 32
      %v1295 = vpop.permute.xlu0 %1294
      %1296 = vrot.lane.b32.xlu0 %v561, 32
      %v1297 = vpop.permute.xlu0 %1296
      %vm1330 = vcmask 31744
      %v1331 = vsel %vm1330, %v272, %v563
      %v1332 = vsel %vm1330, %v273, %v565
      %v1333 = vsel %vm1330, %v275, %v567
      %v1334 = vsel %vm1330, %v276, %v569
      %v1335 = vsel %vm1330, %v278, %v571
      %v1336 = vsel %vm1330, %v279, %v573
      %v1337 = vsel %vm1330, %v281, %v575
      %v1338 = vsel %vm1330, %v282, %v577
      %v1339 = vsel %vm1330, %v284, %v579
      %v1340 = vsel %vm1330, %v285, %v581
      %v1341 = vsel %vm1330, %v287, %v583
      %v1342 = vsel %vm1330, %v288, %v585
      %v1343 = vsel %vm1330, %v290, %v587
      %v1344 = vsel %vm1330, %v291, %v589
      %v1345 = vsel %vm1330, %v293, %v591
      %v1346 = vsel %vm1330, %v294, %v593
      %v1347 = vsel %vm1330, %v296, %v595
      %v1348 = vsel %vm1330, %v297, %v597
      %v1349 = vsel %vm1330, %v299, %v599
      %v1350 = vsel %vm1330, %v300, %v601
      %v1351 = vsel %vm1330, %v302, %v603
      %v1352 = vsel %vm1330, %v303, %v605
      %v1353 = vsel %vm1330, %v305, %v607
      %v1354 = vsel %vm1330, %v306, %v609
      %v1355 = vsel %vm1330, %v308, %v611
      %v1356 = vsel %vm1330, %v309, %v613
      %v1357 = vsel %vm1330, %v311, %v615
      %v1358 = vsel %vm1330, %v312, %v617
      %v1359 = vsel %vm1330, %v314, %v619
      %v1360 = vsel %vm1330, %v315, %v621
      %v1361 = vsel %vm1330, %v317, %v623
      %v1362 = vsel %vm1330, %v318, %v625
      %vm1363 = vcmask 64512
      %v1364 = vsel %vm1363, %v1331, %v659
      %v1365 = vsel %vm1363, %v1332, %v661
      %v1366 = vsel %vm1363, %v1333, %v663
      %v1367 = vsel %vm1363, %v1334, %v665
      %v1368 = vsel %vm1363, %v1335, %v667
      %v1369 = vsel %vm1363, %v1336, %v669
      %v1370 = vsel %vm1363, %v1337, %v671
      %v1371 = vsel %vm1363, %v1338, %v673
      %v1372 = vsel %vm1363, %v1339, %v675
      %v1373 = vsel %vm1363, %v1340, %v677
      %v1374 = vsel %vm1363, %v1341, %v679
      %v1375 = vsel %vm1363, %v1342, %v681
      %v1376 = vsel %vm1363, %v1343, %v683
      %v1377 = vsel %vm1363, %v1344, %v685
      %v1378 = vsel %vm1363, %v1345, %v687
      %v1379 = vsel %vm1363, %v1346, %v689
      %v1380 = vsel %vm1363, %v1347, %v691
      %v1381 = vsel %vm1363, %v1348, %v693
      %v1382 = vsel %vm1363, %v1349, %v695
      %v1383 = vsel %vm1363, %v1350, %v697
      %v1384 = vsel %vm1363, %v1351, %v699
      %v1385 = vsel %vm1363, %v1352, %v701
      %v1386 = vsel %vm1363, %v1353, %v703
      %v1387 = vsel %vm1363, %v1354, %v705
      %v1388 = vsel %vm1363, %v1355, %v707
      %v1389 = vsel %vm1363, %v1356, %v709
      %v1390 = vsel %vm1363, %v1357, %v711
      %v1391 = vsel %vm1363, %v1358, %v713
      %v1392 = vsel %vm1363, %v1359, %v715
      %v1393 = vsel %vm1363, %v1360, %v717
      %v1394 = vsel %vm1363, %v1361, %v719
      %v1395 = vsel %vm1363, %v1362, %v721
      %vm1396 = vcmask 97280
      %v1397 = vsel %vm1396, %v1364, %v755
      %v1398 = vsel %vm1396, %v1365, %v757
      %v1399 = vsel %vm1396, %v1366, %v759
      %v1400 = vsel %vm1396, %v1367, %v761
      %v1401 = vsel %vm1396, %v1368, %v763
      %v1402 = vsel %vm1396, %v1369, %v765
      %v1403 = vsel %vm1396, %v1370, %v767
      %v1404 = vsel %vm1396, %v1371, %v769
      %v1405 = vsel %vm1396, %v1372, %v771
      %v1406 = vsel %vm1396, %v1373, %v773
      %v1407 = vsel %vm1396, %v1374, %v775
      %v1408 = vsel %vm1396, %v1375, %v777
      %v1409 = vsel %vm1396, %v1376, %v779
      %v1410 = vsel %vm1396, %v1377, %v781
      %v1411 = vsel %vm1396, %v1378, %v783
      %v1412 = vsel %vm1396, %v1379, %v785
      %v1413 = vsel %vm1396, %v1380, %v787
      %v1414 = vsel %vm1396, %v1381, %v789
      %v1415 = vsel %vm1396, %v1382, %v791
      %v1416 = vsel %vm1396, %v1383, %v793
      %v1417 = vsel %vm1396, %v1384, %v795
      %v1418 = vsel %vm1396, %v1385, %v797
      %v1419 = vsel %vm1396, %v1386, %v799
      %v1420 = vsel %vm1396, %v1387, %v801
      %v1421 = vsel %vm1396, %v1388, %v803
      %v1422 = vsel %vm1396, %v1389, %v805
      %v1423 = vsel %vm1396, %v1390, %v807
      %v1424 = vsel %vm1396, %v1391, %v809
      %v1425 = vsel %vm1396, %v1392, %v811
      %v1426 = vsel %vm1396, %v1393, %v813
      %v1427 = vsel %vm1396, %v1394, %v815
      %v1428 = vsel %vm1396, %v1395, %v817
      %vm1429 = vcmask 130048
      %v1430 = vsel %vm1429, %v1397, %v851
      %v1431 = vsel %vm1429, %v1398, %v853
      %v1432 = vsel %vm1429, %v1399, %v855
      %v1433 = vsel %vm1429, %v1400, %v857
      %v1434 = vsel %vm1429, %v1401, %v859
      %v1435 = vsel %vm1429, %v1402, %v861
      %v1436 = vsel %vm1429, %v1403, %v863
      %v1437 = vsel %vm1429, %v1404, %v865
      %v1438 = vsel %vm1429, %v1405, %v867
      %v1439 = vsel %vm1429, %v1406, %v869
      %v1440 = vsel %vm1429, %v1407, %v871
      %v1441 = vsel %vm1429, %v1408, %v873
      %v1442 = vsel %vm1429, %v1409, %v875
      %v1443 = vsel %vm1429, %v1410, %v877
      %v1444 = vsel %vm1429, %v1411, %v879
      %v1445 = vsel %vm1429, %v1412, %v881
      %v1446 = vsel %vm1429, %v1413, %v883
      %v1447 = vsel %vm1429, %v1414, %v885
      %v1448 = vsel %vm1429, %v1415, %v887
      %v1449 = vsel %vm1429, %v1416, %v889
      %v1450 = vsel %vm1429, %v1417, %v891
      %v1451 = vsel %vm1429, %v1418, %v893
      %v1452 = vsel %vm1429, %v1419, %v895
      %v1453 = vsel %vm1429, %v1420, %v897
      %v1454 = vsel %vm1429, %v1421, %v899
      %v1455 = vsel %vm1429, %v1422, %v901
      %v1456 = vsel %vm1429, %v1423, %v903
      %v1457 = vsel %vm1429, %v1424, %v905
      %v1458 = vsel %vm1429, %v1425, %v907
      %v1459 = vsel %vm1429, %v1426, %v909
      %v1460 = vsel %vm1429, %v1427, %v911
      %v1461 = vsel %vm1429, %v1428, %v913
      %vm1462 = vcmask 162816
      %v1463 = vsel %vm1462, %v1430, %v947
      %v1464 = vsel %vm1462, %v1431, %v949
      %v1465 = vsel %vm1462, %v1432, %v951
      %v1466 = vsel %vm1462, %v1433, %v953
      %v1467 = vsel %vm1462, %v1434, %v955
      %v1468 = vsel %vm1462, %v1435, %v957
      %v1469 = vsel %vm1462, %v1436, %v959
      %v1470 = vsel %vm1462, %v1437, %v961
      %v1471 = vsel %vm1462, %v1438, %v963
      %v1472 = vsel %vm1462, %v1439, %v965
      %v1473 = vsel %vm1462, %v1440, %v967
      %v1474 = vsel %vm1462, %v1441, %v969
      %v1475 = vsel %vm1462, %v1442, %v971
      %v1476 = vsel %vm1462, %v1443, %v973
      %v1477 = vsel %vm1462, %v1444, %v975
      %v1478 = vsel %vm1462, %v1445, %v977
      %v1479 = vsel %vm1462, %v1446, %v979
      %v1480 = vsel %vm1462, %v1447, %v981
      %v1481 = vsel %vm1462, %v1448, %v983
      %v1482 = vsel %vm1462, %v1449, %v985
      %v1483 = vsel %vm1462, %v1450, %v987
      %v1484 = vsel %vm1462, %v1451, %v989
      %v1485 = vsel %vm1462, %v1452, %v991
      %v1486 = vsel %vm1462, %v1453, %v993
      %v1487 = vsel %vm1462, %v1454, %v995
      %v1488 = vsel %vm1462, %v1455, %v997
      %v1489 = vsel %vm1462, %v1456, %v999
      %v1490 = vsel %vm1462, %v1457, %v1001
      %v1491 = vsel %vm1462, %v1458, %v1003
      %v1492 = vsel %vm1462, %v1459, %v1005
      %v1493 = vsel %vm1462, %v1460, %v1007
      %v1494 = vsel %vm1462, %v1461, %v1009
      %vm1495 = vcmask 195584
      %v1496 = vsel %vm1495, %v1463, %v1043
      %v1497 = vsel %vm1495, %v1464, %v1045
      %v1498 = vsel %vm1495, %v1465, %v1047
      %v1499 = vsel %vm1495, %v1466, %v1049
      %v1500 = vsel %vm1495, %v1467, %v1051
      %v1501 = vsel %vm1495, %v1468, %v1053
      %v1502 = vsel %vm1495, %v1469, %v1055
      %v1503 = vsel %vm1495, %v1470, %v1057
      %v1504 = vsel %vm1495, %v1471, %v1059
      %v1505 = vsel %vm1495, %v1472, %v1061
      %v1506 = vsel %vm1495, %v1473, %v1063
      %v1507 = vsel %vm1495, %v1474, %v1065
      %v1508 = vsel %vm1495, %v1475, %v1067
      %v1509 = vsel %vm1495, %v1476, %v1069
      %v1510 = vsel %vm1495, %v1477, %v1071
      %v1511 = vsel %vm1495, %v1478, %v1073
      %v1512 = vsel %vm1495, %v1479, %v1075
      %v1513 = vsel %vm1495, %v1480, %v1077
      %v1514 = vsel %vm1495, %v1481, %v1079
      %v1515 = vsel %vm1495, %v1482, %v1081
      %v1516 = vsel %vm1495, %v1483, %v1083
      %v1517 = vsel %vm1495, %v1484, %v1085
      %v1518 = vsel %vm1495, %v1485, %v1087
      %v1519 = vsel %vm1495, %v1486, %v1089
      %v1520 = vsel %vm1495, %v1487, %v1091
      %v1521 = vsel %vm1495, %v1488, %v1093
      %v1522 = vsel %vm1495, %v1489, %v1095
      %v1523 = vsel %vm1495, %v1490, %v1097
      %v1524 = vsel %vm1495, %v1491, %v1099
      %v1525 = vsel %vm1495, %v1492, %v1101
      %v1526 = vsel %vm1495, %v1493, %v1103
      %v1527 = vsel %vm1495, %v1494, %v1105
      %vm1528 = vcmask 228352
      %v1529 = vsel %vm1528, %v1496, %v1139
      %v1530 = vsel %vm1528, %v1497, %v1141
      %v1531 = vsel %vm1528, %v1498, %v1143
      %v1532 = vsel %vm1528, %v1499, %v1145
      %v1533 = vsel %vm1528, %v1500, %v1147
      %v1534 = vsel %vm1528, %v1501, %v1149
      %v1535 = vsel %vm1528, %v1502, %v1151
      %v1536 = vsel %vm1528, %v1503, %v1153
      %v1537 = vsel %vm1528, %v1504, %v1155
      %v1538 = vsel %vm1528, %v1505, %v1157
      %v1539 = vsel %vm1528, %v1506, %v1159
      %v1540 = vsel %vm1528, %v1507, %v1161
      %v1541 = vsel %vm1528, %v1508, %v1163
      %v1542 = vsel %vm1528, %v1509, %v1165
      %v1543 = vsel %vm1528, %v1510, %v1167
      %v1544 = vsel %vm1528, %v1511, %v1169
      %v1545 = vsel %vm1528, %v1512, %v1171
      %v1546 = vsel %vm1528, %v1513, %v1173
      %v1547 = vsel %vm1528, %v1514, %v1175
      %v1548 = vsel %vm1528, %v1515, %v1177
      %v1549 = vsel %vm1528, %v1516, %v1179
      %v1550 = vsel %vm1528, %v1517, %v1181
      %v1551 = vsel %vm1528, %v1518, %v1183
      %v1552 = vsel %vm1528, %v1519, %v1185
      %v1553 = vsel %vm1528, %v1520, %v1187
      %v1554 = vsel %vm1528, %v1521, %v1189
      %v1555 = vsel %vm1528, %v1522, %v1191
      %v1556 = vsel %vm1528, %v1523, %v1193
      %v1557 = vsel %vm1528, %v1524, %v1195
      %v1558 = vsel %vm1528, %v1525, %v1197
      %v1559 = vsel %vm1528, %v1526, %v1199
      %v1560 = vsel %vm1528, %v1527, %v1201
      %vm1561 = vcmask 261120
      %v1562 = vsel %vm1561, %v1529, %v1235
      %v1563 = vsel %vm1561, %v1530, %v1237
      %v1564 = vsel %vm1561, %v1531, %v1239
      %v1565 = vsel %vm1561, %v1532, %v1241
      %v1566 = vsel %vm1561, %v1533, %v1243
      %v1567 = vsel %vm1561, %v1534, %v1245
      %v1568 = vsel %vm1561, %v1535, %v1247
      %v1569 = vsel %vm1561, %v1536, %v1249
      %v1570 = vsel %vm1561, %v1537, %v1251
      %v1571 = vsel %vm1561, %v1538, %v1253
      %v1572 = vsel %vm1561, %v1539, %v1255
      %v1573 = vsel %vm1561, %v1540, %v1257
      %v1574 = vsel %vm1561, %v1541, %v1259
      %v1575 = vsel %vm1561, %v1542, %v1261
      %v1576 = vsel %vm1561, %v1543, %v1263
      %v1577 = vsel %vm1561, %v1544, %v1265
      %v1578 = vsel %vm1561, %v1545, %v1267
      %v1579 = vsel %vm1561, %v1546, %v1269
      %v1580 = vsel %vm1561, %v1547, %v1271
      %v1581 = vsel %vm1561, %v1548, %v1273
      %v1582 = vsel %vm1561, %v1549, %v1275
      %v1583 = vsel %vm1561, %v1550, %v1277
      %v1584 = vsel %vm1561, %v1551, %v1279
      %v1585 = vsel %vm1561, %v1552, %v1281
      %v1586 = vsel %vm1561, %v1553, %v1283
      %v1587 = vsel %vm1561, %v1554, %v1285
      %v1588 = vsel %vm1561, %v1555, %v1287
      %v1589 = vsel %vm1561, %v1556, %v1289
      %v1590 = vsel %vm1561, %v1557, %v1291
      %v1591 = vsel %vm1561, %v1558, %v1293
      %v1592 = vsel %vm1561, %v1559, %v1295
      %v1593 = vsel %vm1561, %v1560, %v1297
      %v1594 = vld [vmem:[%s2] sm:$0xff]
      %v1595 = vld [vmem:[%s2 + $0x8] sm:$0xff]
      %v1596 = vld [vmem:[%s2 + $0x10] sm:$0xff]
      %v1597 = vld [vmem:[%s2 + $0x18] sm:$0xff]
      %v1598 = vld [vmem:[%s2 + $0x20] sm:$0xf]
      %v1599 = vld [vmem:[%s3] sm:$0x1]
      %v1601 = vperm.slane %v1599, 0
      %vm1603 = vcmask 293888
      %v1605 = vsel %vm1603, %v1562, 0
      %v1608 = vsel %vm1603, %v1563, 0
      %v1611 = vsel %vm1603, %v1564, 0
      %v1614 = vsel %vm1603, %v1565, 0
      %v1617 = vsel %vm1603, %v1566, 0
      %v1620 = vsel %vm1603, %v1567, 0
      %v1623 = vsel %vm1603, %v1568, 0
      %v1626 = vsel %vm1603, %v1569, 0
      %v1629 = vsel %vm1603, %v1570, 0
      %v1632 = vsel %vm1603, %v1571, 0
      %v1635 = vsel %vm1603, %v1572, 0
      %v1638 = vsel %vm1603, %v1573, 0
      %v1641 = vsel %vm1603, %v1574, 0
      %v1644 = vsel %vm1603, %v1575, 0
      %v1647 = vsel %vm1603, %v1576, 0
      %v1650 = vsel %vm1603, %v1577, 0
      %v1653 = vsel %vm1603, %v1578, 0
      %v1656 = vsel %vm1603, %v1579, 0
      %v1659 = vsel %vm1603, %v1580, 0
      %v1662 = vsel %vm1603, %v1581, 0
      %v1665 = vsel %vm1603, %v1582, 0
      %v1668 = vsel %vm1603, %v1583, 0
      %v1671 = vsel %vm1603, %v1584, 0
      %v1674 = vsel %vm1603, %v1585, 0
      %v1677 = vsel %vm1603, %v1586, 0
      %v1680 = vsel %vm1603, %v1587, 0
      %v1683 = vsel %vm1603, %v1588, 0
      %v1686 = vsel %vm1603, %v1589, 0
      %v1689 = vsel %vm1603, %v1590, 0
      %v1692 = vsel %vm1603, %v1591, 0
      %v1695 = vsel %vm1603, %v1592, 0
      %v1698 = vsel %vm1603, %v1593, 0
      %vm1700 = vcmask 1043456
      %v1702 = vsel %vm1700, %v1598, 0
      %1704 = vmatpush.msra.mxu0 0.0
      %1705 = vmatpush.msra.mxu0 0.0
      %1706 = vmatpush.msra.mxu0 0.0
      %1707 = vmatpush.msra.mxu0 0.0
      %1708 = vmatpush.msra.mxu0 0.0
      %1709 = vmatpush.msra.mxu0 0.0
      %1710 = vmatpush.msra.mxu0 0.0
      %1711 = vmatpush.msra.mxu0 0.0
      %1712 = vmatpush.msra.mxu0 0.0
      %1713 = vmatpush.msra.mxu0 0.0
      %1714 = vmatpush.msra.mxu0 0.0
      %1715 = vmatpush.msra.mxu0 %v1702
      %1716 = vmatpush.msra.mxu0 %v1597
      %1717 = vmatpush.msra.mxu0 %v1596
      %1718 = vmatpush.msra.mxu0 %v1595
      %1719 = vmatpush.msra.mxu0 %v1594
      %1720 = vmatmul.f32.gmra.mxu0 %v1605
      %v1721 = vpop.f32.mrf.mxu0
      %v1722 = vadd.f32 %v1601, %v1721
      %1723 = vmatmul.f32.gmra.mxu0 %v1608
      %v1724 = vpop.f32.mrf.mxu0
      %v1725 = vadd.f32 %v1601, %v1724
      %1726 = vmatmul.f32.gmra.mxu0 %v1611
      %v1727 = vpop.f32.mrf.mxu0
      %v1728 = vadd.f32 %v1601, %v1727
      %1729 = vmatmul.f32.gmra.mxu0 %v1614
      %v1730 = vpop.f32.mrf.mxu0
      %v1731 = vadd.f32 %v1601, %v1730
      %1732 = vmatmul.f32.gmra.mxu0 %v1617
      %v1733 = vpop.f32.mrf.mxu0
      %v1734 = vadd.f32 %v1601, %v1733
      %1735 = vmatmul.f32.gmra.mxu0 %v1620
      %v1736 = vpop.f32.mrf.mxu0
      %v1737 = vadd.f32 %v1601, %v1736
      %1738 = vmatmul.f32.gmra.mxu0 %v1623
      %v1739 = vpop.f32.mrf.mxu0
      %v1740 = vadd.f32 %v1601, %v1739
      %1741 = vmatmul.f32.gmra.mxu0 %v1626
      %v1742 = vpop.f32.mrf.mxu0
      %v1743 = vadd.f32 %v1601, %v1742
      %1744 = vmatmul.f32.gmra.mxu0 %v1629
      %v1745 = vpop.f32.mrf.mxu0
      %v1746 = vadd.f32 %v1601, %v1745
      %1747 = vmatmul.f32.gmra.mxu0 %v1632
      %v1748 = vpop.f32.mrf.mxu0
      %v1749 = vadd.f32 %v1601, %v1748
      %1750 = vmatmul.f32.gmra.mxu0 %v1635
      %v1751 = vpop.f32.mrf.mxu0
      %v1752 = vadd.f32 %v1601, %v1751
      %1753 = vmatmul.f32.gmra.mxu0 %v1638
      %v1754 = vpop.f32.mrf.mxu0
      %v1755 = vadd.f32 %v1601, %v1754
      %1756 = vmatmul.f32.gmra.mxu0 %v1641
      %v1757 = vpop.f32.mrf.mxu0
      %v1758 = vadd.f32 %v1601, %v1757
      %1759 = vmatmul.f32.gmra.mxu0 %v1644
      %v1760 = vpop.f32.mrf.mxu0
      %v1761 = vadd.f32 %v1601, %v1760
      %1762 = vmatmul.f32.gmra.mxu0 %v1647
      %v1763 = vpop.f32.mrf.mxu0
      %v1764 = vadd.f32 %v1601, %v1763
      %1765 = vmatmul.f32.gmra.mxu0 %v1650
      %v1766 = vpop.f32.mrf.mxu0
      %v1767 = vadd.f32 %v1601, %v1766
      %1768 = vmatmul.f32.gmra.mxu0 %v1653
      %v1769 = vpop.f32.mrf.mxu0
      %v1770 = vadd.f32 %v1601, %v1769
      %1771 = vmatmul.f32.gmra.mxu0 %v1656
      %v1772 = vpop.f32.mrf.mxu0
      %v1773 = vadd.f32 %v1601, %v1772
      %1774 = vmatmul.f32.gmra.mxu0 %v1659
      %v1775 = vpop.f32.mrf.mxu0
      %v1776 = vadd.f32 %v1601, %v1775
      %1777 = vmatmul.f32.gmra.mxu0 %v1662
      %v1778 = vpop.f32.mrf.mxu0
      %v1779 = vadd.f32 %v1601, %v1778
      %1780 = vmatmul.f32.gmra.mxu0 %v1665
      %v1781 = vpop.f32.mrf.mxu0
      %v1782 = vadd.f32 %v1601, %v1781
      %1783 = vmatmul.f32.gmra.mxu0 %v1668
      %v1784 = vpop.f32.mrf.mxu0
      %v1785 = vadd.f32 %v1601, %v1784
      %1786 = vmatmul.f32.gmra.mxu0 %v1671
      %v1787 = vpop.f32.mrf.mxu0
      %v1788 = vadd.f32 %v1601, %v1787
      %1789 = vmatmul.f32.gmra.mxu0 %v1674
      %v1790 = vpop.f32.mrf.mxu0
      %v1791 = vadd.f32 %v1601, %v1790
      %1792 = vmatmul.f32.gmra.mxu0 %v1677
      %v1793 = vpop.f32.mrf.mxu0
      %v1794 = vadd.f32 %v1601, %v1793
      %1795 = vmatmul.f32.gmra.mxu0 %v1680
      %v1796 = vpop.f32.mrf.mxu0
      %v1797 = vadd.f32 %v1601, %v1796
      %1798 = vmatmul.f32.gmra.mxu0 %v1683
      %v1799 = vpop.f32.mrf.mxu0
      %v1800 = vadd.f32 %v1601, %v1799
      %1801 = vmatmul.f32.gmra.mxu0 %v1686
      %v1802 = vpop.f32.mrf.mxu0
      %v1803 = vadd.f32 %v1601, %v1802
      %1804 = vmatmul.f32.gmra.mxu0 %v1689
      %v1805 = vpop.f32.mrf.mxu0
      %v1806 = vadd.f32 %v1601, %v1805
      %1807 = vmatmul.f32.gmra.mxu0 %v1692
      %v1808 = vpop.f32.mrf.mxu0
      %v1809 = vadd.f32 %v1601, %v1808
      %1810 = vmatmul.f32.gmra.mxu0 %v1695
      %v1811 = vpop.f32.mrf.mxu0
      %v1812 = vadd.f32 %v1601, %v1811
      %1813 = vmatmul.f32.gmra.mxu0 %v1698
      %v1814 = vpop.f32.mrf.mxu0
      %v1815 = vadd.f32 %v1601, %v1814
      %1816 = vdwg.mxu0
      %vm1817 = vcmp.ge.f32.partialorder %v1722, 0.0
      %vm1818 = vcmp.ge.f32.partialorder %v1725, 0.0
      %vm1819 = vcmp.ge.f32.partialorder %v1728, 0.0
      %vm1820 = vcmp.ge.f32.partialorder %v1731, 0.0
      %vm1821 = vcmp.ge.f32.partialorder %v1734, 0.0
      %vm1822 = vcmp.ge.f32.partialorder %v1737, 0.0
      %vm1823 = vcmp.ge.f32.partialorder %v1740, 0.0
      %vm1824 = vcmp.ge.f32.partialorder %v1743, 0.0
      %vm1825 = vcmp.ge.f32.partialorder %v1746, 0.0
      %vm1826 = vcmp.ge.f32.partialorder %v1749, 0.0
      %vm1827 = vcmp.ge.f32.partialorder %v1752, 0.0
      %vm1828 = vcmp.ge.f32.partialorder %v1755, 0.0
      %vm1829 = vcmp.ge.f32.partialorder %v1758, 0.0
      %vm1830 = vcmp.ge.f32.partialorder %v1761, 0.0
      %vm1831 = vcmp.ge.f32.partialorder %v1764, 0.0
      %vm1832 = vcmp.ge.f32.partialorder %v1767, 0.0
      %vm1833 = vcmp.ge.f32.partialorder %v1770, 0.0
      %vm1834 = vcmp.ge.f32.partialorder %v1773, 0.0
      %vm1835 = vcmp.ge.f32.partialorder %v1776, 0.0
      %vm1836 = vcmp.ge.f32.partialorder %v1779, 0.0
      %vm1837 = vcmp.ge.f32.partialorder %v1782, 0.0
      %vm1838 = vcmp.ge.f32.partialorder %v1785, 0.0
      %vm1839 = vcmp.ge.f32.partialorder %v1788, 0.0
      %vm1840 = vcmp.ge.f32.partialorder %v1791, 0.0
      %vm1841 = vcmp.ge.f32.partialorder %v1794, 0.0
      %vm1842 = vcmp.ge.f32.partialorder %v1797, 0.0
      %vm1843 = vcmp.ge.f32.partialorder %v1800, 0.0
      %vm1844 = vcmp.ge.f32.partialorder %v1803, 0.0
      %vm1845 = vcmp.ge.f32.partialorder %v1806, 0.0
      %vm1846 = vcmp.ge.f32.partialorder %v1809, 0.0
      %vm1847 = vcmp.ge.f32.partialorder %v1812, 0.0
      %vm1848 = vcmp.ge.f32.partialorder %v1815, 0.0
      %v1849 = vmul.f32 %v1722, 0.01
      %v1850 = vmul.f32 %v1725, 0.01
      %v1851 = vmul.f32 %v1728, 0.01
      %v1852 = vmul.f32 %v1731, 0.01
      %v1853 = vmul.f32 %v1734, 0.01
      %v1854 = vmul.f32 %v1737, 0.01
      %v1855 = vmul.f32 %v1740, 0.01
      %v1856 = vmul.f32 %v1743, 0.01
      %v1857 = vmul.f32 %v1746, 0.01
      %v1858 = vmul.f32 %v1749, 0.01
      %v1859 = vmul.f32 %v1752, 0.01
      %v1860 = vmul.f32 %v1755, 0.01
      %v1861 = vmul.f32 %v1758, 0.01
      %v1862 = vmul.f32 %v1761, 0.01
      %v1863 = vmul.f32 %v1764, 0.01
      %v1864 = vmul.f32 %v1767, 0.01
      %v1865 = vmul.f32 %v1770, 0.01
      %v1866 = vmul.f32 %v1773, 0.01
      %v1867 = vmul.f32 %v1776, 0.01
      %v1868 = vmul.f32 %v1779, 0.01
      %v1869 = vmul.f32 %v1782, 0.01
      %v1870 = vmul.f32 %v1785, 0.01
      %v1871 = vmul.f32 %v1788, 0.01
      %v1872 = vmul.f32 %v1791, 0.01
      %v1873 = vmul.f32 %v1794, 0.01
      %v1874 = vmul.f32 %v1797, 0.01
      %v1875 = vmul.f32 %v1800, 0.01
      %v1876 = vmul.f32 %v1803, 0.01
      %v1877 = vmul.f32 %v1806, 0.01
      %v1878 = vmul.f32 %v1809, 0.01
      %v1879 = vmul.f32 %v1812, 0.01
      %v1880 = vmul.f32 %v1815, 0.01
      %v1881 = vsel %vm1817, %v1722, %v1849
      %v1882 = vsel %vm1818, %v1725, %v1850
      %v1883 = vsel %vm1819, %v1728, %v1851
      %v1884 = vsel %vm1820, %v1731, %v1852
      %v1885 = vsel %vm1821, %v1734, %v1853
      %v1886 = vsel %vm1822, %v1737, %v1854
      %v1887 = vsel %vm1823, %v1740, %v1855
      %v1888 = vsel %vm1824, %v1743, %v1856
      %v1889 = vsel %vm1825, %v1746, %v1857
      %v1890 = vsel %vm1826, %v1749, %v1858
      %v1891 = vsel %vm1827, %v1752, %v1859
      %v1892 = vsel %vm1828, %v1755, %v1860
      %v1893 = vsel %vm1829, %v1758, %v1861
      %v1894 = vsel %vm1830, %v1761, %v1862
      %v1895 = vsel %vm1831, %v1764, %v1863
      %v1896 = vsel %vm1832, %v1767, %v1864
      %v1897 = vsel %vm1833, %v1770, %v1865
      %v1898 = vsel %vm1834, %v1773, %v1866
      %v1899 = vsel %vm1835, %v1776, %v1867
      %v1900 = vsel %vm1836, %v1779, %v1868
      %v1901 = vsel %vm1837, %v1782, %v1869
      %v1902 = vsel %vm1838, %v1785, %v1870
      %v1903 = vsel %vm1839, %v1788, %v1871
      %v1904 = vsel %vm1840, %v1791, %v1872
      %v1905 = vsel %vm1841, %v1794, %v1873
      %v1906 = vsel %vm1842, %v1797, %v1874
      %v1907 = vsel %vm1843, %v1800, %v1875
      %v1908 = vsel %vm1844, %v1803, %v1876
      %v1909 = vsel %vm1845, %v1806, %v1877
      %v1910 = vsel %vm1846, %v1809, %v1878
      %v1911 = vsel %vm1847, %v1812, %v1879
      %v1912 = vsel %vm1848, %v1815, %v1880
      %1913 = vst.msk [vmem:[#allocation2] sm:$0xff] %vm1363, 0.0
      %1914 = vst.msk [vmem:[#allocation2 + $0x8] sm:$0xff] %vm1363, 0.0
      %vm1915 = vcmask 58368
      %1916 = vst.msk [vmem:[#allocation2 + $0x10] sm:$0x3] %vm1915, 0.0
      %1917 = vst.msk [vmem:[#allocation2 + $0x18] sm:$0xff] %vm1363, 0.0
      %1918 = vst.msk [vmem:[#allocation2 + $0x20] sm:$0xff] %vm1363, 0.0
      %1919 = vst.msk [vmem:[#allocation2 + $0x28] sm:$0x3] %vm1915, 0.0
      %1920 = vst.msk [vmem:[#allocation2 + $0x30] sm:$0xff] %vm1363, 0.0
      %1921 = vst.msk [vmem:[#allocation2 + $0x38] sm:$0xff] %vm1363, 0.0
      %1922 = vst.msk [vmem:[#allocation2 + $0x40] sm:$0x3] %vm1915, 0.0
      %1923 = vst.msk [vmem:[#allocation2 + $0x48] sm:$0xff] %vm1363, 0.0
      %1924 = vst.msk [vmem:[#allocation2 + $0x50] sm:$0xff] %vm1363, 0.0
      %1925 = vst.msk [vmem:[#allocation2 + $0x58] sm:$0x3] %vm1915, 0.0
      %1926 = vst.msk [vmem:[#allocation2 + $0x60] sm:$0xff] %vm1363, 0.0
      %1927 = vst.msk [vmem:[#allocation2 + $0x68] sm:$0xff] %vm1363, 0.0
      %1928 = vst.msk [vmem:[#allocation2 + $0x70] sm:$0x3] %vm1915, 0.0
      %1929 = vst.msk [vmem:[#allocation2 + $0x78] sm:$0xff] %vm1363, 0.0
      %1930 = vst.msk [vmem:[#allocation2 + $0x80] sm:$0xff] %vm1363, 0.0
      %1931 = vst.msk [vmem:[#allocation2 + $0x88] sm:$0x3] %vm1915, 0.0
      %1932 = vst.msk [vmem:[#allocation2 + $0x90] sm:$0xff] %vm1363, 0.0
      %1933 = vst.msk [vmem:[#allocation2 + $0x98] sm:$0xff] %vm1363, 0.0
      %1934 = vst.msk [vmem:[#allocation2 + $0xa0] sm:$0x3] %vm1915, 0.0
      %1935 = vst.msk [vmem:[#allocation2 + $0xa8] sm:$0xff] %vm1363, 0.0
      %1936 = vst.msk [vmem:[#allocation2 + $0xb0] sm:$0xff] %vm1363, 0.0
      %1937 = vst.msk [vmem:[#allocation2 + $0xb8] sm:$0x3] %vm1915, 0.0
      %1938 = vst.msk [vmem:[#allocation2 + $0xc0] sm:$0xff] %vm1363, 0.0
      %1939 = vst.msk [vmem:[#allocation2 + $0xc8] sm:$0xff] %vm1363, 0.0
      %1940 = vst.msk [vmem:[#allocation2 + $0xd0] sm:$0x3] %vm1915, 0.0
      %1941 = vst.msk [vmem:[#allocation2 + $0xd8] sm:$0xff] %vm1363, 0.0
      %1942 = vst.msk [vmem:[#allocation2 + $0xe0] sm:$0xff] %vm1363, 0.0
      %1943 = vst.msk [vmem:[#allocation2 + $0xe8] sm:$0x3] %vm1915, 0.0
      %1944 = vst.msk [vmem:[#allocation2 + $0xf0] sm:$0xff] %vm1363, 0.0
      %1945 = vst.msk [vmem:[#allocation2 + $0xf8] sm:$0xff] %vm1363, 0.0
      %1946 = vst.msk [vmem:[#allocation2 + $0x100] sm:$0x3] %vm1915, 0.0
      %1947 = vst.msk [vmem:[#allocation2 + $0x108] sm:$0xff] %vm1363, 0.0
      %1948 = vst.msk [vmem:[#allocation2 + $0x110] sm:$0xff] %vm1363, 0.0
      %1949 = vst.msk [vmem:[#allocation2 + $0x118] sm:$0x3] %vm1915, 0.0
      %1950 = vst.msk [vmem:[#allocation2 + $0x120] sm:$0xff] %vm1363, 0.0
      %1951 = vst.msk [vmem:[#allocation2 + $0x128] sm:$0xff] %vm1363, 0.0
      %1952 = vst.msk [vmem:[#allocation2 + $0x130] sm:$0x3] %vm1915, 0.0
      %1953 = vst.msk [vmem:[#allocation2 + $0x138] sm:$0xff] %vm1363, 0.0
      %1954 = vst.msk [vmem:[#allocation2 + $0x140] sm:$0xff] %vm1363, 0.0
      %1955 = vst.msk [vmem:[#allocation2 + $0x148] sm:$0x3] %vm1915, 0.0
      %1956 = vst.msk [vmem:[#allocation2 + $0x150] sm:$0xff] %vm1363, 0.0
      %1957 = vst.msk [vmem:[#allocation2 + $0x158] sm:$0xff] %vm1363, 0.0
      %1958 = vst.msk [vmem:[#allocation2 + $0x160] sm:$0x3] %vm1915, 0.0
      %1959 = vst.msk [vmem:[#allocation2 + $0x168] sm:$0xff] %vm1363, 0.0
      %1960 = vst.msk [vmem:[#allocation2 + $0x170] sm:$0xff] %vm1363, 0.0
      %1961 = vst.msk [vmem:[#allocation2 + $0x178] sm:$0x3] %vm1915, 0.0
      %1962 = vst.msk [vmem:[#allocation2 + $0x180] sm:$0xff] %vm1363, 0.0
      %1963 = vst.msk [vmem:[#allocation2 + $0x188] sm:$0xff] %vm1363, 0.0
      %1964 = vst.msk [vmem:[#allocation2 + $0x190] sm:$0x3] %vm1915, 0.0
      %1965 = vst.msk [vmem:[#allocation2 + $0x198] sm:$0xff] %vm1363, 0.0
      %1966 = vst.msk [vmem:[#allocation2 + $0x1a0] sm:$0xff] %vm1363, 0.0
      %1967 = vst.msk [vmem:[#allocation2 + $0x1a8] sm:$0x3] %vm1915, 0.0
      %s1968 = scalar_lea.vmem [#allocation2], 24
      %1969 = vst.msk [vmem:[%s1968 + $0x1] sm:$0xff] %vm1363, %v1881
      %1970 = vst.msk [vmem:[%s1968 + $0x9] sm:$0xff] %vm1363, %v1882
      %1971 = vst.msk [vmem:[%s1968 + $0x19] sm:$0xff] %vm1363, %v1883
      %1972 = vst.msk [vmem:[%s1968 + $0x21] sm:$0xff] %vm1363, %v1884
      %1973 = vst.msk [vmem:[%s1968 + $0x31] sm:$0xff] %vm1363, %v1885
      %1974 = vst.msk [vmem:[%s1968 + $0x39] sm:$0xff] %vm1363, %v1886
      %1975 = vst.msk [vmem:[%s1968 + $0x49] sm:$0xff] %vm1363, %v1887
      %1976 = vst.msk [vmem:[%s1968 + $0x51] sm:$0xff] %vm1363, %v1888
      %1977 = vst.msk [vmem:[%s1968 + $0x61] sm:$0xff] %vm1363, %v1889
      %1978 = vst.msk [vmem:[%s1968 + $0x69] sm:$0xff] %vm1363, %v1890
      %1979 = vst.msk [vmem:[%s1968 + $0x79] sm:$0xff] %vm1363, %v1891
      %1980 = vst.msk [vmem:[%s1968 + $0x81] sm:$0xff] %vm1363, %v1892
      %1981 = vst.msk [vmem:[%s1968 + $0x91] sm:$0xff] %vm1363, %v1893
      %1982 = vst.msk [vmem:[%s1968 + $0x99] sm:$0xff] %vm1363, %v1894
      %1983 = vst.msk [vmem:[%s1968 + $0xa9] sm:$0xff] %vm1363, %v1895
      %1984 = vst.msk [vmem:[%s1968 + $0xb1] sm:$0xff] %vm1363, %v1896
      %1985 = vst.msk [vmem:[%s1968 + $0xc1] sm:$0xff] %vm1363, %v1897
      %1986 = vst.msk [vmem:[%s1968 + $0xc9] sm:$0xff] %vm1363, %v1898
      %1987 = vst.msk [vmem:[%s1968 + $0xd9] sm:$0xff] %vm1363, %v1899
      %1988 = vst.msk [vmem:[%s1968 + $0xe1] sm:$0xff] %vm1363, %v1900
      %1989 = vst.msk [vmem:[%s1968 + $0xf1] sm:$0xff] %vm1363, %v1901
      %1990 = vst.msk [vmem:[%s1968 + $0xf9] sm:$0xff] %vm1363, %v1902
      %1991 = vst.msk [vmem:[%s1968 + $0x109] sm:$0xff] %vm1363, %v1903
      %1992 = vst.msk [vmem:[%s1968 + $0x111] sm:$0xff] %vm1363, %v1904
      %1993 = vst.msk [vmem:[%s1968 + $0x121] sm:$0xff] %vm1363, %v1905
      %1994 = vst.msk [vmem:[%s1968 + $0x129] sm:$0xff] %vm1363, %v1906
      %1995 = vst.msk [vmem:[%s1968 + $0x139] sm:$0xff] %vm1363, %v1907
      %1996 = vst.msk [vmem:[%s1968 + $0x141] sm:$0xff] %vm1363, %v1908
      %1997 = vst.msk [vmem:[%s1968 + $0x151] sm:$0xff] %vm1363, %v1909
      %1998 = vst.msk [vmem:[%s1968 + $0x159] sm:$0xff] %vm1363, %v1910
      %1999 = vst.msk [vmem:[%s1968 + $0x169] sm:$0xff] %vm1363, %v1911
      %2000 = vst.msk [vmem:[%s1968 + $0x171] sm:$0xff] %vm1363, %v1912
      %v2001 = vld [vmem:[#allocation2] sm:$0xff]
      %v2002 = vld [vmem:[#allocation2 + $0x8] sm:$0xff]
      %v2003 = vld [vmem:[#allocation2 + $0x10] sm:$0x3]
      %v2004 = vld [vmem:[#allocation2 + $0x18] sm:$0xff]
      %v2005 = vld [vmem:[#allocation2 + $0x20] sm:$0xff]
      %v2006 = vld [vmem:[#allocation2 + $0x28] sm:$0x3]
      %v2007 = vld [vmem:[#allocation2 + $0x30] sm:$0xff]
      %v2008 = vld [vmem:[#allocation2 + $0x38] sm:$0xff]
      %v2009 = vld [vmem:[#allocation2 + $0x40] sm:$0x3]
      %v2010 = vld [vmem:[#allocation2 + $0x48] sm:$0xff]
      %v2011 = vld [vmem:[#allocation2 + $0x50] sm:$0xff]
      %v2012 = vld [vmem:[#allocation2 + $0x58] sm:$0x3]
      %v2013 = vld [vmem:[#allocation2 + $0x60] sm:$0xff]
      %v2014 = vld [vmem:[#allocation2 + $0x68] sm:$0xff]
      %v2015 = vld [vmem:[#allocation2 + $0x70] sm:$0x3]
      %v2016 = vld [vmem:[#allocation2 + $0x78] sm:$0xff]
      %v2017 = vld [vmem:[#allocation2 + $0x80] sm:$0xff]
      %v2018 = vld [vmem:[#allocation2 + $0x88] sm:$0x3]
      %v2019 = vld [vmem:[#allocation2 + $0x90] sm:$0xff]
      %v2020 = vld [vmem:[#allocation2 + $0x98] sm:$0xff]
      %v2021 = vld [vmem:[#allocation2 + $0xa0] sm:$0x3]
      %v2022 = vld [vmem:[#allocation2 + $0xa8] sm:$0xff]
      %v2023 = vld [vmem:[#allocation2 + $0xb0] sm:$0xff]
      %v2024 = vld [vmem:[#allocation2 + $0xb8] sm:$0x3]
      %v2025 = vld [vmem:[#allocation2 + $0xc0] sm:$0xff]
      %v2026 = vld [vmem:[#allocation2 + $0xc8] sm:$0xff]
      %v2027 = vld [vmem:[#allocation2 + $0xd0] sm:$0x3]
      %v2028 = vld [vmem:[#allocation2 + $0xd8] sm:$0xff]
      %v2029 = vld [vmem:[#allocation2 + $0xe0] sm:$0xff]
      %v2030 = vld [vmem:[#allocation2 + $0xe8] sm:$0x3]
      %v2031 = vld [vmem:[#allocation2 + $0xf0] sm:$0xff]
      %v2032 = vld [vmem:[#allocation2 + $0xf8] sm:$0xff]
      %v2033 = vld [vmem:[#allocation2 + $0x100] sm:$0x3]
      %v2034 = vld [vmem:[#allocation2 + $0x108] sm:$0xff]
      %v2035 = vld [vmem:[#allocation2 + $0x110] sm:$0xff]
      %v2036 = vld [vmem:[#allocation2 + $0x118] sm:$0x3]
      %v2037 = vld [vmem:[#allocation2 + $0x120] sm:$0xff]
      %v2038 = vld [vmem:[#allocation2 + $0x128] sm:$0xff]
      %v2039 = vld [vmem:[#allocation2 + $0x130] sm:$0x3]
      %v2040 = vld [vmem:[#allocation2 + $0x138] sm:$0xff]
      %v2041 = vld [vmem:[#allocation2 + $0x140] sm:$0xff]
      %v2042 = vld [vmem:[#allocation2 + $0x148] sm:$0x3]
      %v2043 = vld [vmem:[#allocation2 + $0x150] sm:$0xff]
      %v2044 = vld [vmem:[#allocation2 + $0x158] sm:$0xff]
      %v2045 = vld [vmem:[#allocation2 + $0x160] sm:$0x3]
      %v2046 = vld [vmem:[#allocation2 + $0x168] sm:$0xff]
      %v2047 = vld [vmem:[#allocation2 + $0x170] sm:$0xff]
      %v2048 = vld [vmem:[#allocation2 + $0x178] sm:$0x3]
      %v2049 = vld [vmem:[#allocation2 + $0x180] sm:$0xff]
      %v2050 = vld [vmem:[#allocation2 + $0x188] sm:$0xff]
      %v2051 = vld [vmem:[#allocation2 + $0x190] sm:$0x3]
      %v2052 = vld [vmem:[#allocation2 + $0x198] sm:$0xff]
      %v2053 = vld [vmem:[#allocation2 + $0x1a0] sm:$0xff]
      %v2054 = vld [vmem:[#allocation2 + $0x1a8] sm:$0x3]
      %v2103 = vrot.slane %v2001, 1
      %v2104 = vrot.slane %v2002, 1
      %v2105 = vsel %vm374, %v2103, %v2104
      %v2106 = vrot.slane %v2003, 1
      %v2107 = vsel %vm374, %v2104, %v2106
      %v2108 = vrot.slane %v2004, 1
      %v2109 = vrot.slane %v2005, 1
      %v2110 = vsel %vm374, %v2108, %v2109
      %v2111 = vrot.slane %v2006, 1
      %v2112 = vsel %vm374, %v2109, %v2111
      %v2113 = vrot.slane %v2007, 1
      %v2114 = vrot.slane %v2008, 1
      %v2115 = vsel %vm374, %v2113, %v2114
      %v2116 = vrot.slane %v2009, 1
      %v2117 = vsel %vm374, %v2114, %v2116
      %v2118 = vrot.slane %v2010, 1
      %v2119 = vrot.slane %v2011, 1
      %v2120 = vsel %vm374, %v2118, %v2119
      %v2121 = vrot.slane %v2012, 1
      %v2122 = vsel %vm374, %v2119, %v2121
      %v2123 = vrot.slane %v2013, 1
      %v2124 = vrot.slane %v2014, 1
      %v2125 = vsel %vm374, %v2123, %v2124
      %v2126 = vrot.slane %v2015, 1
      %v2127 = vsel %vm374, %v2124, %v2126
      %v2128 = vrot.slane %v2016, 1
      %v2129 = vrot.slane %v2017, 1
      %v2130 = vsel %vm374, %v2128, %v2129
      %v2131 = vrot.slane %v2018, 1
      %v2132 = vsel %vm374, %v2129, %v2131
      %v2133 = vrot.slane %v2019, 1
      %v2134 = vrot.slane %v2020, 1
      %v2135 = vsel %vm374, %v2133, %v2134
      %v2136 = vrot.slane %v2021, 1
      %v2137 = vsel %vm374, %v2134, %v2136
      %v2138 = vrot.slane %v2022, 1
      %v2139 = vrot.slane %v2023, 1
      %v2140 = vsel %vm374, %v2138, %v2139
      %v2141 = vrot.slane %v2024, 1
      %v2142 = vsel %vm374, %v2139, %v2141
      %v2143 = vrot.slane %v2025, 1
      %v2144 = vrot.slane %v2026, 1
      %v2145 = vsel %vm374, %v2143, %v2144
      %v2146 = vrot.slane %v2027, 1
      %v2147 = vsel %vm374, %v2144, %v2146
      %v2148 = vrot.slane %v2028, 1
      %v2149 = vrot.slane %v2029, 1
      %v2150 = vsel %vm374, %v2148, %v2149
      %v2151 = vrot.slane %v2030, 1
      %v2152 = vsel %vm374, %v2149, %v2151
      %v2153 = vrot.slane %v2031, 1
      %v2154 = vrot.slane %v2032, 1
      %v2155 = vsel %vm374, %v2153, %v2154
      %v2156 = vrot.slane %v2033, 1
      %v2157 = vsel %vm374, %v2154, %v2156
      %v2158 = vrot.slane %v2034, 1
      %v2159 = vrot.slane %v2035, 1
      %v2160 = vsel %vm374, %v2158, %v2159
      %v2161 = vrot.slane %v2036, 1
      %v2162 = vsel %vm374, %v2159, %v2161
      %v2163 = vrot.slane %v2037, 1
      %v2164 = vrot.slane %v2038, 1
      %v2165 = vsel %vm374, %v2163, %v2164
      %v2166 = vrot.slane %v2039, 1
      %v2167 = vsel %vm374, %v2164, %v2166
      %v2168 = vrot.slane %v2040, 1
      %v2169 = vrot.slane %v2041, 1
      %v2170 = vsel %vm374, %v2168, %v2169
      %v2171 = vrot.slane %v2042, 1
      %v2172 = vsel %vm374, %v2169, %v2171
      %v2173 = vrot.slane %v2043, 1
      %v2174 = vrot.slane %v2044, 1
      %v2175 = vsel %vm374, %v2173, %v2174
      %v2176 = vrot.slane %v2045, 1
      %v2177 = vsel %vm374, %v2174, %v2176
      %v2178 = vrot.slane %v2046, 1
      %v2179 = vrot.slane %v2047, 1
      %v2180 = vsel %vm374, %v2178, %v2179
      %v2181 = vrot.slane %v2048, 1
      %v2182 = vsel %vm374, %v2179, %v2181
      %v2183 = vrot.slane %v2001, 2
      %v2184 = vrot.slane %v2002, 2
      %v2185 = vsel %vm455, %v2183, %v2184
      %v2186 = vrot.slane %v2003, 2
      %v2187 = vsel %vm455, %v2184, %v2186
      %v2188 = vrot.slane %v2004, 2
      %v2189 = vrot.slane %v2005, 2
      %v2190 = vsel %vm455, %v2188, %v2189
      %v2191 = vrot.slane %v2006, 2
      %v2192 = vsel %vm455, %v2189, %v2191
      %v2193 = vrot.slane %v2007, 2
      %v2194 = vrot.slane %v2008, 2
      %v2195 = vsel %vm455, %v2193, %v2194
      %v2196 = vrot.slane %v2009, 2
      %v2197 = vsel %vm455, %v2194, %v2196
      %v2198 = vrot.slane %v2010, 2
      %v2199 = vrot.slane %v2011, 2
      %v2200 = vsel %vm455, %v2198, %v2199
      %v2201 = vrot.slane %v2012, 2
      %v2202 = vsel %vm455, %v2199, %v2201
      %v2203 = vrot.slane %v2013, 2
      %v2204 = vrot.slane %v2014, 2
      %v2205 = vsel %vm455, %v2203, %v2204
      %v2206 = vrot.slane %v2015, 2
      %v2207 = vsel %vm455, %v2204, %v2206
      %v2208 = vrot.slane %v2016, 2
      %v2209 = vrot.slane %v2017, 2
      %v2210 = vsel %vm455, %v2208, %v2209
      %v2211 = vrot.slane %v2018, 2
      %v2212 = vsel %vm455, %v2209, %v2211
      %v2213 = vrot.slane %v2019, 2
      %v2214 = vrot.slane %v2020, 2
      %v2215 = vsel %vm455, %v2213, %v2214
      %v2216 = vrot.slane %v2021, 2
      %v2217 = vsel %vm455, %v2214, %v2216
      %v2218 = vrot.slane %v2022, 2
      %v2219 = vrot.slane %v2023, 2
      %v2220 = vsel %vm455, %v2218, %v2219
      %v2221 = vrot.slane %v2024, 2
      %v2222 = vsel %vm455, %v2219, %v2221
      %v2223 = vrot.slane %v2025, 2
      %v2224 = vrot.slane %v2026, 2
      %v2225 = vsel %vm455, %v2223, %v2224
      %v2226 = vrot.slane %v2027, 2
      %v2227 = vsel %vm455, %v2224, %v2226
      %v2228 = vrot.slane %v2028, 2
      %v2229 = vrot.slane %v2029, 2
      %v2230 = vsel %vm455, %v2228, %v2229
      %v2231 = vrot.slane %v2030, 2
      %v2232 = vsel %vm455, %v2229, %v2231
      %v2233 = vrot.slane %v2031, 2
      %v2234 = vrot.slane %v2032, 2
      %v2235 = vsel %vm455, %v2233, %v2234
      %v2236 = vrot.slane %v2033, 2
      %v2237 = vsel %vm455, %v2234, %v2236
      %v2238 = vrot.slane %v2034, 2
      %v2239 = vrot.slane %v2035, 2
      %v2240 = vsel %vm455, %v2238, %v2239
      %v2241 = vrot.slane %v2036, 2
      %v2242 = vsel %vm455, %v2239, %v2241
      %v2243 = vrot.slane %v2037, 2
      %v2244 = vrot.slane %v2038, 2
      %v2245 = vsel %vm455, %v2243, %v2244
      %v2246 = vrot.slane %v2039, 2
      %v2247 = vsel %vm455, %v2244, %v2246
      %v2248 = vrot.slane %v2040, 2
      %v2249 = vrot.slane %v2041, 2
      %v2250 = vsel %vm455, %v2248, %v2249
      %v2251 = vrot.slane %v2042, 2
      %v2252 = vsel %vm455, %v2249, %v2251
      %v2253 = vrot.slane %v2043, 2
      %v2254 = vrot.slane %v2044, 2
      %v2255 = vsel %vm455, %v2253, %v2254
      %v2256 = vrot.slane %v2045, 2
      %v2257 = vsel %vm455, %v2254, %v2256
      %v2258 = vrot.slane %v2046, 2
      %v2259 = vrot.slane %v2047, 2
      %v2260 = vsel %vm455, %v2258, %v2259
      %v2261 = vrot.slane %v2048, 2
      %v2262 = vsel %vm455, %v2259, %v2261
      %v2266 = vrot.slane %v2049, 1
      %v2267 = vrot.slane %v2050, 1
      %v2268 = vsel %vm374, %v2266, %v2267
      %v2269 = vrot.slane %v2051, 1
      %v2270 = vsel %vm374, %v2267, %v2269
      %v2271 = vrot.slane %v2049, 2
      %v2272 = vrot.slane %v2050, 2
      %v2273 = vsel %vm455, %v2271, %v2272
      %v2274 = vrot.slane %v2051, 2
      %v2275 = vsel %vm455, %v2272, %v2274
      %v2279 = vrot.slane %v2052, 1
      %v2280 = vrot.slane %v2053, 1
      %v2281 = vsel %vm374, %v2279, %v2280
      %v2282 = vrot.slane %v2054, 1
      %v2283 = vsel %vm374, %v2280, %v2282
      %v2284 = vrot.slane %v2052, 2
      %v2285 = vrot.slane %v2053, 2
      %v2286 = vsel %vm455, %v2284, %v2285
      %v2287 = vrot.slane %v2054, 2
      %v2288 = vsel %vm455, %v2285, %v2287
      %v2289 = vld [vmem:[%s266] sm:$0xff]
      %v2290 = vld [vmem:[%s266 + $0x8] sm:$0xff]
      %v2291 = vld [vmem:[%s266 + $0x10] sm:$0xff]
      %v2292 = vld [vmem:[%s266 + $0x18] sm:$0xff]
      %v2293 = vld [vmem:[%s266 + $0x20] sm:$0xff]
      %v2294 = vld [vmem:[%s266 + $0x28] sm:$0xff]
      %v2295 = vld [vmem:[%s266 + $0x30] sm:$0xff]
      %v2296 = vld [vmem:[%s266 + $0x38] sm:$0xff]
      %v2297 = vld [vmem:[%s266 + $0x40] sm:$0xff]
      %v2298 = vld [vmem:[%s266 + $0x48] sm:$0xff]
      %v2299 = vld [vmem:[%s266 + $0x50] sm:$0xff]
      %v2300 = vld [vmem:[%s266 + $0x58] sm:$0xff]
      %v2301 = vld [vmem:[%s266 + $0x60] sm:$0xff]
      %v2302 = vld [vmem:[%s266 + $0x68] sm:$0xff]
      %v2303 = vld [vmem:[%s266 + $0x70] sm:$0xff]
      %v2304 = vld [vmem:[%s266 + $0x78] sm:$0xff]
      %v2305 = vld [vmem:[%s266 + $0x80] sm:$0xff]
      %v2306 = vld [vmem:[%s266 + $0x88] sm:$0xff]
      %v2307 = vld [vmem:[%s266 + $0x90] sm:$0xff]
      %v2308 = vld [vmem:[%s266 + $0x98] sm:$0xff]
      %v2309 = vld [vmem:[%s266 + $0xa0] sm:$0xff]
      %v2310 = vld [vmem:[%s266 + $0xa8] sm:$0xff]
      %v2311 = vld [vmem:[%s266 + $0xb0] sm:$0xff]
      %v2312 = vld [vmem:[%s266 + $0xb8] sm:$0xff]
      %v2313 = vld [vmem:[%s266 + $0xc0] sm:$0xff]
      %v2314 = vld [vmem:[%s266 + $0xc8] sm:$0xff]
      %v2315 = vld [vmem:[%s266 + $0xd0] sm:$0xff]
      %v2316 = vld [vmem:[%s266 + $0xd8] sm:$0xff]
      %v2317 = vld [vmem:[%s266 + $0xe0] sm:$0xff]
      %v2318 = vld [vmem:[%s266 + $0xe8] sm:$0xff]
      %v2319 = vld [vmem:[%s266 + $0xf0] sm:$0xff]
      %v2320 = vld [vmem:[%s266 + $0xf8] sm:$0xff]
      %2321 = vrot.lane.b32.xlu0 %v2105, 8
      %v2322 = vpop.permute.xlu0 %2321
      %2323 = vrot.lane.b32.xlu0 %v2107, 8
      %v2324 = vpop.permute.xlu0 %2323
      %2325 = vrot.lane.b32.xlu0 %v2110, 8
      %v2326 = vpop.permute.xlu0 %2325
      %2327 = vrot.lane.b32.xlu0 %v2112, 8
      %v2328 = vpop.permute.xlu0 %2327
      %2329 = vrot.lane.b32.xlu0 %v2115, 8
      %v2330 = vpop.permute.xlu0 %2329
      %2331 = vrot.lane.b32.xlu0 %v2117, 8
      %v2332 = vpop.permute.xlu0 %2331
      %2333 = vrot.lane.b32.xlu0 %v2120, 8
      %v2334 = vpop.permute.xlu0 %2333
      %2335 = vrot.lane.b32.xlu0 %v2122, 8
      %v2336 = vpop.permute.xlu0 %2335
      %2337 = vrot.lane.b32.xlu0 %v2125, 8
      %v2338 = vpop.permute.xlu0 %2337
      %2339 = vrot.lane.b32.xlu0 %v2127, 8
      %v2340 = vpop.permute.xlu0 %2339
      %2341 = vrot.lane.b32.xlu0 %v2130, 8
      %v2342 = vpop.permute.xlu0 %2341
      %2343 = vrot.lane.b32.xlu0 %v2132, 8
      %v2344 = vpop.permute.xlu0 %2343
      %2345 = vrot.lane.b32.xlu0 %v2135, 8
      %v2346 = vpop.permute.xlu0 %2345
      %2347 = vrot.lane.b32.xlu0 %v2137, 8
      %v2348 = vpop.permute.xlu0 %2347
      %2349 = vrot.lane.b32.xlu0 %v2140, 8
      %v2350 = vpop.permute.xlu0 %2349
      %2351 = vrot.lane.b32.xlu0 %v2142, 8
      %v2352 = vpop.permute.xlu0 %2351
      %2353 = vrot.lane.b32.xlu0 %v2145, 8
      %v2354 = vpop.permute.xlu0 %2353
      %2355 = vrot.lane.b32.xlu0 %v2147, 8
      %v2356 = vpop.permute.xlu0 %2355
      %2357 = vrot.lane.b32.xlu0 %v2150, 8
      %v2358 = vpop.permute.xlu0 %2357
      %2359 = vrot.lane.b32.xlu0 %v2152, 8
      %v2360 = vpop.permute.xlu0 %2359
      %2361 = vrot.lane.b32.xlu0 %v2155, 8
      %v2362 = vpop.permute.xlu0 %2361
      %2363 = vrot.lane.b32.xlu0 %v2157, 8
      %v2364 = vpop.permute.xlu0 %2363
      %2365 = vrot.lane.b32.xlu0 %v2160, 8
      %v2366 = vpop.permute.xlu0 %2365
      %2367 = vrot.lane.b32.xlu0 %v2162, 8
      %v2368 = vpop.permute.xlu0 %2367
      %2369 = vrot.lane.b32.xlu0 %v2165, 8
      %v2370 = vpop.permute.xlu0 %2369
      %2371 = vrot.lane.b32.xlu0 %v2167, 8
      %v2372 = vpop.permute.xlu0 %2371
      %2373 = vrot.lane.b32.xlu0 %v2170, 8
      %v2374 = vpop.permute.xlu0 %2373
      %2375 = vrot.lane.b32.xlu0 %v2172, 8
      %v2376 = vpop.permute.xlu0 %2375
      %2377 = vrot.lane.b32.xlu0 %v2175, 8
      %v2378 = vpop.permute.xlu0 %2377
      %2379 = vrot.lane.b32.xlu0 %v2177, 8
      %v2380 = vpop.permute.xlu0 %2379
      %2381 = vrot.lane.b32.xlu0 %v2180, 8
      %v2382 = vpop.permute.xlu0 %2381
      %2383 = vrot.lane.b32.xlu0 %v2182, 8
      %v2384 = vpop.permute.xlu0 %2383
      %2417 = vrot.lane.b32.xlu0 %v2185, 16
      %v2418 = vpop.permute.xlu0 %2417
      %2419 = vrot.lane.b32.xlu0 %v2187, 16
      %v2420 = vpop.permute.xlu0 %2419
      %2421 = vrot.lane.b32.xlu0 %v2190, 16
      %v2422 = vpop.permute.xlu0 %2421
      %2423 = vrot.lane.b32.xlu0 %v2192, 16
      %v2424 = vpop.permute.xlu0 %2423
      %2425 = vrot.lane.b32.xlu0 %v2195, 16
      %v2426 = vpop.permute.xlu0 %2425
      %2427 = vrot.lane.b32.xlu0 %v2197, 16
      %v2428 = vpop.permute.xlu0 %2427
      %2429 = vrot.lane.b32.xlu0 %v2200, 16
      %v2430 = vpop.permute.xlu0 %2429
      %2431 = vrot.lane.b32.xlu0 %v2202, 16
      %v2432 = vpop.permute.xlu0 %2431
      %2433 = vrot.lane.b32.xlu0 %v2205, 16
      %v2434 = vpop.permute.xlu0 %2433
      %2435 = vrot.lane.b32.xlu0 %v2207, 16
      %v2436 = vpop.permute.xlu0 %2435
      %2437 = vrot.lane.b32.xlu0 %v2210, 16
      %v2438 = vpop.permute.xlu0 %2437
      %2439 = vrot.lane.b32.xlu0 %v2212, 16
      %v2440 = vpop.permute.xlu0 %2439
      %2441 = vrot.lane.b32.xlu0 %v2215, 16
      %v2442 = vpop.permute.xlu0 %2441
      %2443 = vrot.lane.b32.xlu0 %v2217, 16
      %v2444 = vpop.permute.xlu0 %2443
      %2445 = vrot.lane.b32.xlu0 %v2220, 16
      %v2446 = vpop.permute.xlu0 %2445
      %2447 = vrot.lane.b32.xlu0 %v2222, 16
      %v2448 = vpop.permute.xlu0 %2447
      %2449 = vrot.lane.b32.xlu0 %v2225, 16
      %v2450 = vpop.permute.xlu0 %2449
      %2451 = vrot.lane.b32.xlu0 %v2227, 16
      %v2452 = vpop.permute.xlu0 %2451
      %2453 = vrot.lane.b32.xlu0 %v2230, 16
      %v2454 = vpop.permute.xlu0 %2453
      %2455 = vrot.lane.b32.xlu0 %v2232, 16
      %v2456 = vpop.permute.xlu0 %2455
      %2457 = vrot.lane.b32.xlu0 %v2235, 16
      %v2458 = vpop.permute.xlu0 %2457
      %2459 = vrot.lane.b32.xlu0 %v2237, 16
      %v2460 = vpop.permute.xlu0 %2459
      %2461 = vrot.lane.b32.xlu0 %v2240, 16
      %v2462 = vpop.permute.xlu0 %2461
      %2463 = vrot.lane.b32.xlu0 %v2242, 16
      %v2464 = vpop.permute.xlu0 %2463
      %2465 = vrot.lane.b32.xlu0 %v2245, 16
      %v2466 = vpop.permute.xlu0 %2465
      %2467 = vrot.lane.b32.xlu0 %v2247, 16
      %v2468 = vpop.permute.xlu0 %2467
      %2469 = vrot.lane.b32.xlu0 %v2250, 16
      %v2470 = vpop.permute.xlu0 %2469
      %2471 = vrot.lane.b32.xlu0 %v2252, 16
      %v2472 = vpop.permute.xlu0 %2471
      %2473 = vrot.lane.b32.xlu0 %v2255, 16
      %v2474 = vpop.permute.xlu0 %2473
      %2475 = vrot.lane.b32.xlu0 %v2257, 16
      %v2476 = vpop.permute.xlu0 %2475
      %2477 = vrot.lane.b32.xlu0 %v2260, 16
      %v2478 = vpop.permute.xlu0 %2477
      %2479 = vrot.lane.b32.xlu0 %v2262, 16
      %v2480 = vpop.permute.xlu0 %2479
      %2513 = vrot.lane.b32.xlu0 %v2004, 24
      %v2514 = vpop.permute.xlu0 %2513
      %2515 = vrot.lane.b32.xlu0 %v2005, 24
      %v2516 = vpop.permute.xlu0 %2515
      %2517 = vrot.lane.b32.xlu0 %v2007, 24
      %v2518 = vpop.permute.xlu0 %2517
      %2519 = vrot.lane.b32.xlu0 %v2008, 24
      %v2520 = vpop.permute.xlu0 %2519
      %2521 = vrot.lane.b32.xlu0 %v2010, 24
      %v2522 = vpop.permute.xlu0 %2521
      %2523 = vrot.lane.b32.xlu0 %v2011, 24
      %v2524 = vpop.permute.xlu0 %2523
      %2525 = vrot.lane.b32.xlu0 %v2013, 24
      %v2526 = vpop.permute.xlu0 %2525
      %2527 = vrot.lane.b32.xlu0 %v2014, 24
      %v2528 = vpop.permute.xlu0 %2527
      %2529 = vrot.lane.b32.xlu0 %v2016, 24
      %v2530 = vpop.permute.xlu0 %2529
      %2531 = vrot.lane.b32.xlu0 %v2017, 24
      %v2532 = vpop.permute.xlu0 %2531
      %2533 = vrot.lane.b32.xlu0 %v2019, 24
      %v2534 = vpop.permute.xlu0 %2533
      %2535 = vrot.lane.b32.xlu0 %v2020, 24
      %v2536 = vpop.permute.xlu0 %2535
      %2537 = vrot.lane.b32.xlu0 %v2022, 24
      %v2538 = vpop.permute.xlu0 %2537
      %2539 = vrot.lane.b32.xlu0 %v2023, 24
      %v2540 = vpop.permute.xlu0 %2539
      %2541 = vrot.lane.b32.xlu0 %v2025, 24
      %v2542 = vpop.permute.xlu0 %2541
      %2543 = vrot.lane.b32.xlu0 %v2026, 24
      %v2544 = vpop.permute.xlu0 %2543
      %2545 = vrot.lane.b32.xlu0 %v2028, 24
      %v2546 = vpop.permute.xlu0 %2545
      %2547 = vrot.lane.b32.xlu0 %v2029, 24
      %v2548 = vpop.permute.xlu0 %2547
      %2549 = vrot.lane.b32.xlu0 %v2031, 24
      %v2550 = vpop.permute.xlu0 %2549
      %2551 = vrot.lane.b32.xlu0 %v2032, 24
      %v2552 = vpop.permute.xlu0 %2551
      %2553 = vrot.lane.b32.xlu0 %v2034, 24
      %v2554 = vpop.permute.xlu0 %2553
      %2555 = vrot.lane.b32.xlu0 %v2035, 24
      %v2556 = vpop.permute.xlu0 %2555
      %2557 = vrot.lane.b32.xlu0 %v2037, 24
      %v2558 = vpop.permute.xlu0 %2557
      %2559 = vrot.lane.b32.xlu0 %v2038, 24
      %v2560 = vpop.permute.xlu0 %2559
      %2561 = vrot.lane.b32.xlu0 %v2040, 24
      %v2562 = vpop.permute.xlu0 %2561
      %2563 = vrot.lane.b32.xlu0 %v2041, 24
      %v2564 = vpop.permute.xlu0 %2563
      %2565 = vrot.lane.b32.xlu0 %v2043, 24
      %v2566 = vpop.permute.xlu0 %2565
      %2567 = vrot.lane.b32.xlu0 %v2044, 24
      %v2568 = vpop.permute.xlu0 %2567
      %2569 = vrot.lane.b32.xlu0 %v2046, 24
      %v2570 = vpop.permute.xlu0 %2569
      %2571 = vrot.lane.b32.xlu0 %v2047, 24
      %v2572 = vpop.permute.xlu0 %2571
      %2573 = vrot.lane.b32.xlu0 %v2049, 24
      %v2574 = vpop.permute.xlu0 %2573
      %2575 = vrot.lane.b32.xlu0 %v2050, 24
      %v2576 = vpop.permute.xlu0 %2575
      %2609 = vrot.lane.b32.xlu0 %v2110, 32
      %v2610 = vpop.permute.xlu0 %2609
      %2611 = vrot.lane.b32.xlu0 %v2112, 32
      %v2612 = vpop.permute.xlu0 %2611
      %2613 = vrot.lane.b32.xlu0 %v2115, 32
      %v2614 = vpop.permute.xlu0 %2613
      %2615 = vrot.lane.b32.xlu0 %v2117, 32
      %v2616 = vpop.permute.xlu0 %2615
      %2617 = vrot.lane.b32.xlu0 %v2120, 32
      %v2618 = vpop.permute.xlu0 %2617
      %2619 = vrot.lane.b32.xlu0 %v2122, 32
      %v2620 = vpop.permute.xlu0 %2619
      %2621 = vrot.lane.b32.xlu0 %v2125, 32
      %v2622 = vpop.permute.xlu0 %2621
      %2623 = vrot.lane.b32.xlu0 %v2127, 32
      %v2624 = vpop.permute.xlu0 %2623
      %2625 = vrot.lane.b32.xlu0 %v2130, 32
      %v2626 = vpop.permute.xlu0 %2625
      %2627 = vrot.lane.b32.xlu0 %v2132, 32
      %v2628 = vpop.permute.xlu0 %2627
      %2629 = vrot.lane.b32.xlu0 %v2135, 32
      %v2630 = vpop.permute.xlu0 %2629
      %2631 = vrot.lane.b32.xlu0 %v2137, 32
      %v2632 = vpop.permute.xlu0 %2631
      %2633 = vrot.lane.b32.xlu0 %v2140, 32
      %v2634 = vpop.permute.xlu0 %2633
      %2635 = vrot.lane.b32.xlu0 %v2142, 32
      %v2636 = vpop.permute.xlu0 %2635
      %2637 = vrot.lane.b32.xlu0 %v2145, 32
      %v2638 = vpop.permute.xlu0 %2637
      %2639 = vrot.lane.b32.xlu0 %v2147, 32
      %v2640 = vpop.permute.xlu0 %2639
      %2641 = vrot.lane.b32.xlu0 %v2150, 32
      %v2642 = vpop.permute.xlu0 %2641
      %2643 = vrot.lane.b32.xlu0 %v2152, 32
      %v2644 = vpop.permute.xlu0 %2643
      %2645 = vrot.lane.b32.xlu0 %v2155, 32
      %v2646 = vpop.permute.xlu0 %2645
      %2647 = vrot.lane.b32.xlu0 %v2157, 32
      %v2648 = vpop.permute.xlu0 %2647
      %2649 = vrot.lane.b32.xlu0 %v2160, 32
      %v2650 = vpop.permute.xlu0 %2649
      %2651 = vrot.lane.b32.xlu0 %v2162, 32
      %v2652 = vpop.permute.xlu0 %2651
      %2653 = vrot.lane.b32.xlu0 %v2165, 32
      %v2654 = vpop.permute.xlu0 %2653
      %2655 = vrot.lane.b32.xlu0 %v2167, 32
      %v2656 = vpop.permute.xlu0 %2655
      %2657 = vrot.lane.b32.xlu0 %v2170, 32
      %v2658 = vpop.permute.xlu0 %2657
      %2659 = vrot.lane.b32.xlu0 %v2172, 32
      %v2660 = vpop.permute.xlu0 %2659
      %2661 = vrot.lane.b32.xlu0 %v2175, 32
      %v2662 = vpop.permute.xlu0 %2661
      %2663 = vrot.lane.b32.xlu0 %v2177, 32
      %v2664 = vpop.permute.xlu0 %2663
      %2665 = vrot.lane.b32.xlu0 %v2180, 32
      %v2666 = vpop.permute.xlu0 %2665
      %2667 = vrot.lane.b32.xlu0 %v2182, 32
      %v2668 = vpop.permute.xlu0 %2667
      %2669 = vrot.lane.b32.xlu0 %v2268, 32
      %v2670 = vpop.permute.xlu0 %2669
      %2671 = vrot.lane.b32.xlu0 %v2270, 32
      %v2672 = vpop.permute.xlu0 %2671
      %2705 = vrot.lane.b32.xlu0 %v2190, 40
      %v2706 = vpop.permute.xlu0 %2705
      %2707 = vrot.lane.b32.xlu0 %v2192, 40
      %v2708 = vpop.permute.xlu0 %2707
      %2709 = vrot.lane.b32.xlu0 %v2195, 40
      %v2710 = vpop.permute.xlu0 %2709
      %2711 = vrot.lane.b32.xlu0 %v2197, 40
      %v2712 = vpop.permute.xlu0 %2711
      %2713 = vrot.lane.b32.xlu0 %v2200, 40
      %v2714 = vpop.permute.xlu0 %2713
      %2715 = vrot.lane.b32.xlu0 %v2202, 40
      %v2716 = vpop.permute.xlu0 %2715
      %2717 = vrot.lane.b32.xlu0 %v2205, 40
      %v2718 = vpop.permute.xlu0 %2717
      %2719 = vrot.lane.b32.xlu0 %v2207, 40
      %v2720 = vpop.permute.xlu0 %2719
      %2721 = vrot.lane.b32.xlu0 %v2210, 40
      %v2722 = vpop.permute.xlu0 %2721
      %2723 = vrot.lane.b32.xlu0 %v2212, 40
      %v2724 = vpop.permute.xlu0 %2723
      %2725 = vrot.lane.b32.xlu0 %v2215, 40
      %v2726 = vpop.permute.xlu0 %2725
      %2727 = vrot.lane.b32.xlu0 %v2217, 40
      %v2728 = vpop.permute.xlu0 %2727
      %2729 = vrot.lane.b32.xlu0 %v2220, 40
      %v2730 = vpop.permute.xlu0 %2729
      %2731 = vrot.lane.b32.xlu0 %v2222, 40
      %v2732 = vpop.permute.xlu0 %2731
      %2733 = vrot.lane.b32.xlu0 %v2225, 40
      %v2734 = vpop.permute.xlu0 %2733
      %2735 = vrot.lane.b32.xlu0 %v2227, 40
      %v2736 = vpop.permute.xlu0 %2735
      %2737 = vrot.lane.b32.xlu0 %v2230, 40
      %v2738 = vpop.permute.xlu0 %2737
      %2739 = vrot.lane.b32.xlu0 %v2232, 40
      %v2740 = vpop.permute.xlu0 %2739
      %2741 = vrot.lane.b32.xlu0 %v2235, 40
      %v2742 = vpop.permute.xlu0 %2741
      %2743 = vrot.lane.b32.xlu0 %v2237, 40
      %v2744 = vpop.permute.xlu0 %2743
      %2745 = vrot.lane.b32.xlu0 %v2240, 40
      %v2746 = vpop.permute.xlu0 %2745
      %2747 = vrot.lane.b32.xlu0 %v2242, 40
      %v2748 = vpop.permute.xlu0 %2747
      %2749 = vrot.lane.b32.xlu0 %v2245, 40
      %v2750 = vpop.permute.xlu0 %2749
      %2751 = vrot.lane.b32.xlu0 %v2247, 40
      %v2752 = vpop.permute.xlu0 %2751
      %2753 = vrot.lane.b32.xlu0 %v2250, 40
      %v2754 = vpop.permute.xlu0 %2753
      %2755 = vrot.lane.b32.xlu0 %v2252, 40
      %v2756 = vpop.permute.xlu0 %2755
      %2757 = vrot.lane.b32.xlu0 %v2255, 40
      %v2758 = vpop.permute.xlu0 %2757
      %2759 = vrot.lane.b32.xlu0 %v2257, 40
      %v2760 = vpop.permute.xlu0 %2759
      %2761 = vrot.lane.b32.xlu0 %v2260, 40
      %v2762 = vpop.permute.xlu0 %2761
      %2763 = vrot.lane.b32.xlu0 %v2262, 40
      %v2764 = vpop.permute.xlu0 %2763
      %2765 = vrot.lane.b32.xlu0 %v2273, 40
      %v2766 = vpop.permute.xlu0 %2765
      %2767 = vrot.lane.b32.xlu0 %v2275, 40
      %v2768 = vpop.permute.xlu0 %2767
      %2801 = vrot.lane.b32.xlu0 %v2007, 48
      %v2802 = vpop.permute.xlu0 %2801
      %2803 = vrot.lane.b32.xlu0 %v2008, 48
      %v2804 = vpop.permute.xlu0 %2803
      %2805 = vrot.lane.b32.xlu0 %v2010, 48
      %v2806 = vpop.permute.xlu0 %2805
      %2807 = vrot.lane.b32.xlu0 %v2011, 48
      %v2808 = vpop.permute.xlu0 %2807
      %2809 = vrot.lane.b32.xlu0 %v2013, 48
      %v2810 = vpop.permute.xlu0 %2809
      %2811 = vrot.lane.b32.xlu0 %v2014, 48
      %v2812 = vpop.permute.xlu0 %2811
      %2813 = vrot.lane.b32.xlu0 %v2016, 48
      %v2814 = vpop.permute.xlu0 %2813
      %2815 = vrot.lane.b32.xlu0 %v2017, 48
      %v2816 = vpop.permute.xlu0 %2815
      %2817 = vrot.lane.b32.xlu0 %v2019, 48
      %v2818 = vpop.permute.xlu0 %2817
      %2819 = vrot.lane.b32.xlu0 %v2020, 48
      %v2820 = vpop.permute.xlu0 %2819
      %2821 = vrot.lane.b32.xlu0 %v2022, 48
      %v2822 = vpop.permute.xlu0 %2821
      %2823 = vrot.lane.b32.xlu0 %v2023, 48
      %v2824 = vpop.permute.xlu0 %2823
      %2825 = vrot.lane.b32.xlu0 %v2025, 48
      %v2826 = vpop.permute.xlu0 %2825
      %2827 = vrot.lane.b32.xlu0 %v2026, 48
      %v2828 = vpop.permute.xlu0 %2827
      %2829 = vrot.lane.b32.xlu0 %v2028, 48
      %v2830 = vpop.permute.xlu0 %2829
      %2831 = vrot.lane.b32.xlu0 %v2029, 48
      %v2832 = vpop.permute.xlu0 %2831
      %2833 = vrot.lane.b32.xlu0 %v2031, 48
      %v2834 = vpop.permute.xlu0 %2833
      %2835 = vrot.lane.b32.xlu0 %v2032, 48
      %v2836 = vpop.permute.xlu0 %2835
      %2837 = vrot.lane.b32.xlu0 %v2034, 48
      %v2838 = vpop.permute.xlu0 %2837
      %2839 = vrot.lane.b32.xlu0 %v2035, 48
      %v2840 = vpop.permute.xlu0 %2839
      %2841 = vrot.lane.b32.xlu0 %v2037, 48
      %v2842 = vpop.permute.xlu0 %2841
      %2843 = vrot.lane.b32.xlu0 %v2038, 48
      %v2844 = vpop.permute.xlu0 %2843
      %2845 = vrot.lane.b32.xlu0 %v2040, 48
      %v2846 = vpop.permute.xlu0 %2845
      %2847 = vrot.lane.b32.xlu0 %v2041, 48
      %v2848 = vpop.permute.xlu0 %2847
      %2849 = vrot.lane.b32.xlu0 %v2043, 48
      %v2850 = vpop.permute.xlu0 %2849
      %2851 = vrot.lane.b32.xlu0 %v2044, 48
      %v2852 = vpop.permute.xlu0 %2851
      %2853 = vrot.lane.b32.xlu0 %v2046, 48
      %v2854 = vpop.permute.xlu0 %2853
      %2855 = vrot.lane.b32.xlu0 %v2047, 48
      %v2856 = vpop.permute.xlu0 %2855
      %2857 = vrot.lane.b32.xlu0 %v2049, 48
      %v2858 = vpop.permute.xlu0 %2857
      %2859 = vrot.lane.b32.xlu0 %v2050, 48
      %v2860 = vpop.permute.xlu0 %2859
      %2861 = vrot.lane.b32.xlu0 %v2052, 48
      %v2862 = vpop.permute.xlu0 %2861
      %2863 = vrot.lane.b32.xlu0 %v2053, 48
      %v2864 = vpop.permute.xlu0 %2863
      %2897 = vrot.lane.b32.xlu0 %v2115, 56
      %v2898 = vpop.permute.xlu0 %2897
      %2899 = vrot.lane.b32.xlu0 %v2117, 56
      %v2900 = vpop.permute.xlu0 %2899
      %2901 = vrot.lane.b32.xlu0 %v2120, 56
      %v2902 = vpop.permute.xlu0 %2901
      %2903 = vrot.lane.b32.xlu0 %v2122, 56
      %v2904 = vpop.permute.xlu0 %2903
      %2905 = vrot.lane.b32.xlu0 %v2125, 56
      %v2906 = vpop.permute.xlu0 %2905
      %2907 = vrot.lane.b32.xlu0 %v2127, 56
      %v2908 = vpop.permute.xlu0 %2907
      %2909 = vrot.lane.b32.xlu0 %v2130, 56
      %v2910 = vpop.permute.xlu0 %2909
      %2911 = vrot.lane.b32.xlu0 %v2132, 56
      %v2912 = vpop.permute.xlu0 %2911
      %2913 = vrot.lane.b32.xlu0 %v2135, 56
      %v2914 = vpop.permute.xlu0 %2913
      %2915 = vrot.lane.b32.xlu0 %v2137, 56
      %v2916 = vpop.permute.xlu0 %2915
      %2917 = vrot.lane.b32.xlu0 %v2140, 56
      %v2918 = vpop.permute.xlu0 %2917
      %2919 = vrot.lane.b32.xlu0 %v2142, 56
      %v2920 = vpop.permute.xlu0 %2919
      %2921 = vrot.lane.b32.xlu0 %v2145, 56
      %v2922 = vpop.permute.xlu0 %2921
      %2923 = vrot.lane.b32.xlu0 %v2147, 56
      %v2924 = vpop.permute.xlu0 %2923
      %2925 = vrot.lane.b32.xlu0 %v2150, 56
      %v2926 = vpop.permute.xlu0 %2925
      %2927 = vrot.lane.b32.xlu0 %v2152, 56
      %v2928 = vpop.permute.xlu0 %2927
      %2929 = vrot.lane.b32.xlu0 %v2155, 56
      %v2930 = vpop.permute.xlu0 %2929
      %2931 = vrot.lane.b32.xlu0 %v2157, 56
      %v2932 = vpop.permute.xlu0 %2931
      %2933 = vrot.lane.b32.xlu0 %v2160, 56
      %v2934 = vpop.permute.xlu0 %2933
      %2935 = vrot.lane.b32.xlu0 %v2162, 56
      %v2936 = vpop.permute.xlu0 %2935
      %2937 = vrot.lane.b32.xlu0 %v2165, 56
      %v2938 = vpop.permute.xlu0 %2937
      %2939 = vrot.lane.b32.xlu0 %v2167, 56
      %v2940 = vpop.permute.xlu0 %2939
      %2941 = vrot.lane.b32.xlu0 %v2170, 56
      %v2942 = vpop.permute.xlu0 %2941
      %2943 = vrot.lane.b32.xlu0 %v2172, 56
      %v2944 = vpop.permute.xlu0 %2943
      %2945 = vrot.lane.b32.xlu0 %v2175, 56
      %v2946 = vpop.permute.xlu0 %2945
      %2947 = vrot.lane.b32.xlu0 %v2177, 56
      %v2948 = vpop.permute.xlu0 %2947
      %2949 = vrot.lane.b32.xlu0 %v2180, 56
      %v2950 = vpop.permute.xlu0 %2949
      %2951 = vrot.lane.b32.xlu0 %v2182, 56
      %v2952 = vpop.permute.xlu0 %2951
      %2953 = vrot.lane.b32.xlu0 %v2268, 56
      %v2954 = vpop.permute.xlu0 %2953
      %2955 = vrot.lane.b32.xlu0 %v2270, 56
      %v2956 = vpop.permute.xlu0 %2955
      %2957 = vrot.lane.b32.xlu0 %v2281, 56
      %v2958 = vpop.permute.xlu0 %2957
      %2959 = vrot.lane.b32.xlu0 %v2283, 56
      %v2960 = vpop.permute.xlu0 %2959
      %2993 = vrot.lane.b32.xlu0 %v2195, 64
      %v2994 = vpop.permute.xlu0 %2993
      %2995 = vrot.lane.b32.xlu0 %v2197, 64
      %v2996 = vpop.permute.xlu0 %2995
      %2997 = vrot.lane.b32.xlu0 %v2200, 64
      %v2998 = vpop.permute.xlu0 %2997
      %2999 = vrot.lane.b32.xlu0 %v2202, 64
      %v3000 = vpop.permute.xlu0 %2999
      %3001 = vrot.lane.b32.xlu0 %v2205, 64
      %v3002 = vpop.permute.xlu0 %3001
      %3003 = vrot.lane.b32.xlu0 %v2207, 64
      %v3004 = vpop.permute.xlu0 %3003
      %3005 = vrot.lane.b32.xlu0 %v2210, 64
      %v3006 = vpop.permute.xlu0 %3005
      %3007 = vrot.lane.b32.xlu0 %v2212, 64
      %v3008 = vpop.permute.xlu0 %3007
      %3009 = vrot.lane.b32.xlu0 %v2215, 64
      %v3010 = vpop.permute.xlu0 %3009
      %3011 = vrot.lane.b32.xlu0 %v2217, 64
      %v3012 = vpop.permute.xlu0 %3011
      %3013 = vrot.lane.b32.xlu0 %v2220, 64
      %v3014 = vpop.permute.xlu0 %3013
      %3015 = vrot.lane.b32.xlu0 %v2222, 64
      %v3016 = vpop.permute.xlu0 %3015
      %3017 = vrot.lane.b32.xlu0 %v2225, 64
      %v3018 = vpop.permute.xlu0 %3017
      %3019 = vrot.lane.b32.xlu0 %v2227, 64
      %v3020 = vpop.permute.xlu0 %3019
      %3021 = vrot.lane.b32.xlu0 %v2230, 64
      %v3022 = vpop.permute.xlu0 %3021
      %3023 = vrot.lane.b32.xlu0 %v2232, 64
      %v3024 = vpop.permute.xlu0 %3023
      %3025 = vrot.lane.b32.xlu0 %v2235, 64
      %v3026 = vpop.permute.xlu0 %3025
      %3027 = vrot.lane.b32.xlu0 %v2237, 64
      %v3028 = vpop.permute.xlu0 %3027
      %3029 = vrot.lane.b32.xlu0 %v2240, 64
      %v3030 = vpop.permute.xlu0 %3029
      %3031 = vrot.lane.b32.xlu0 %v2242, 64
      %v3032 = vpop.permute.xlu0 %3031
      %3033 = vrot.lane.b32.xlu0 %v2245, 64
      %v3034 = vpop.permute.xlu0 %3033
      %3035 = vrot.lane.b32.xlu0 %v2247, 64
      %v3036 = vpop.permute.xlu0 %3035
      %3037 = vrot.lane.b32.xlu0 %v2250, 64
      %v3038 = vpop.permute.xlu0 %3037
      %3039 = vrot.lane.b32.xlu0 %v2252, 64
      %v3040 = vpop.permute.xlu0 %3039
      %3041 = vrot.lane.b32.xlu0 %v2255, 64
      %v3042 = vpop.permute.xlu0 %3041
      %3043 = vrot.lane.b32.xlu0 %v2257, 64
      %v3044 = vpop.permute.xlu0 %3043
      %3045 = vrot.lane.b32.xlu0 %v2260, 64
      %v3046 = vpop.permute.xlu0 %3045
      %3047 = vrot.lane.b32.xlu0 %v2262, 64
      %v3048 = vpop.permute.xlu0 %3047
      %3049 = vrot.lane.b32.xlu0 %v2273, 64
      %v3050 = vpop.permute.xlu0 %3049
      %3051 = vrot.lane.b32.xlu0 %v2275, 64
      %v3052 = vpop.permute.xlu0 %3051
      %3053 = vrot.lane.b32.xlu0 %v2286, 64
      %v3054 = vpop.permute.xlu0 %3053
      %3055 = vrot.lane.b32.xlu0 %v2288, 64
      %v3056 = vpop.permute.xlu0 %3055
      %3121 = vrot.lane.b32.xlu0 %v2289, 72
      %v3122 = vpop.permute.xlu0 %3121
      %3123 = vrot.lane.b32.xlu0 %v2290, 72
      %v3124 = vpop.permute.xlu0 %3123
      %3125 = vrot.lane.b32.xlu0 %v2291, 72
      %v3126 = vpop.permute.xlu0 %3125
      %3127 = vrot.lane.b32.xlu0 %v2292, 72
      %v3128 = vpop.permute.xlu0 %3127
      %3129 = vrot.lane.b32.xlu0 %v2293, 72
      %v3130 = vpop.permute.xlu0 %3129
      %3131 = vrot.lane.b32.xlu0 %v2294, 72
      %v3132 = vpop.permute.xlu0 %3131
      %3133 = vrot.lane.b32.xlu0 %v2295, 72
      %v3134 = vpop.permute.xlu0 %3133
      %3135 = vrot.lane.b32.xlu0 %v2296, 72
      %v3136 = vpop.permute.xlu0 %3135
      %3137 = vrot.lane.b32.xlu0 %v2297, 72
      %v3138 = vpop.permute.xlu0 %3137
      %3139 = vrot.lane.b32.xlu0 %v2298, 72
      %v3140 = vpop.permute.xlu0 %3139
      %3141 = vrot.lane.b32.xlu0 %v2299, 72
      %v3142 = vpop.permute.xlu0 %3141
      %3143 = vrot.lane.b32.xlu0 %v2300, 72
      %v3144 = vpop.permute.xlu0 %3143
      %3145 = vrot.lane.b32.xlu0 %v2301, 72
      %v3146 = vpop.permute.xlu0 %3145
      %3147 = vrot.lane.b32.xlu0 %v2302, 72
      %v3148 = vpop.permute.xlu0 %3147
      %3149 = vrot.lane.b32.xlu0 %v2303, 72
      %v3150 = vpop.permute.xlu0 %3149
      %3151 = vrot.lane.b32.xlu0 %v2304, 72
      %v3152 = vpop.permute.xlu0 %3151
      %3153 = vrot.lane.b32.xlu0 %v2305, 72
      %v3154 = vpop.permute.xlu0 %3153
      %3155 = vrot.lane.b32.xlu0 %v2306, 72
      %v3156 = vpop.permute.xlu0 %3155
      %3157 = vrot.lane.b32.xlu0 %v2307, 72
      %v3158 = vpop.permute.xlu0 %3157
      %3159 = vrot.lane.b32.xlu0 %v2308, 72
      %v3160 = vpop.permute.xlu0 %3159
      %3161 = vrot.lane.b32.xlu0 %v2309, 72
      %v3162 = vpop.permute.xlu0 %3161
      %3163 = vrot.lane.b32.xlu0 %v2310, 72
      %v3164 = vpop.permute.xlu0 %3163
      %3165 = vrot.lane.b32.xlu0 %v2311, 72
      %v3166 = vpop.permute.xlu0 %3165
      %3167 = vrot.lane.b32.xlu0 %v2312, 72
      %v3168 = vpop.permute.xlu0 %3167
      %3169 = vrot.lane.b32.xlu0 %v2313, 72
      %v3170 = vpop.permute.xlu0 %3169
      %3171 = vrot.lane.b32.xlu0 %v2314, 72
      %v3172 = vpop.permute.xlu0 %3171
      %3173 = vrot.lane.b32.xlu0 %v2315, 72
      %v3174 = vpop.permute.xlu0 %3173
      %3175 = vrot.lane.b32.xlu0 %v2316, 72
      %v3176 = vpop.permute.xlu0 %3175
      %3177 = vrot.lane.b32.xlu0 %v2317, 72
      %v3178 = vpop.permute.xlu0 %3177
      %3179 = vrot.lane.b32.xlu0 %v2318, 72
      %v3180 = vpop.permute.xlu0 %3179
      %3181 = vrot.lane.b32.xlu0 %v2319, 72
      %v3182 = vpop.permute.xlu0 %3181
      %3183 = vrot.lane.b32.xlu0 %v2320, 72
      %v3184 = vpop.permute.xlu0 %3183
      %v3217 = vsel %vm1363, %v2001, %v2322
      %v3218 = vsel %vm1363, %v2002, %v2324
      %v3219 = vsel %vm1363, %v2004, %v2326
      %v3220 = vsel %vm1363, %v2005, %v2328
      %v3221 = vsel %vm1363, %v2007, %v2330
      %v3222 = vsel %vm1363, %v2008, %v2332
      %v3223 = vsel %vm1363, %v2010, %v2334
      %v3224 = vsel %vm1363, %v2011, %v2336
      %v3225 = vsel %vm1363, %v2013, %v2338
      %v3226 = vsel %vm1363, %v2014, %v2340
      %v3227 = vsel %vm1363, %v2016, %v2342
      %v3228 = vsel %vm1363, %v2017, %v2344
      %v3229 = vsel %vm1363, %v2019, %v2346
      %v3230 = vsel %vm1363, %v2020, %v2348
      %v3231 = vsel %vm1363, %v2022, %v2350
      %v3232 = vsel %vm1363, %v2023, %v2352
      %v3233 = vsel %vm1363, %v2025, %v2354
      %v3234 = vsel %vm1363, %v2026, %v2356
      %v3235 = vsel %vm1363, %v2028, %v2358
      %v3236 = vsel %vm1363, %v2029, %v2360
      %v3237 = vsel %vm1363, %v2031, %v2362
      %v3238 = vsel %vm1363, %v2032, %v2364
      %v3239 = vsel %vm1363, %v2034, %v2366
      %v3240 = vsel %vm1363, %v2035, %v2368
      %v3241 = vsel %vm1363, %v2037, %v2370
      %v3242 = vsel %vm1363, %v2038, %v2372
      %v3243 = vsel %vm1363, %v2040, %v2374
      %v3244 = vsel %vm1363, %v2041, %v2376
      %v3245 = vsel %vm1363, %v2043, %v2378
      %v3246 = vsel %vm1363, %v2044, %v2380
      %v3247 = vsel %vm1363, %v2046, %v2382
      %v3248 = vsel %vm1363, %v2047, %v2384
      %v3249 = vsel %vm1429, %v3217, %v2418
      %v3250 = vsel %vm1429, %v3218, %v2420
      %v3251 = vsel %vm1429, %v3219, %v2422
      %v3252 = vsel %vm1429, %v3220, %v2424
      %v3253 = vsel %vm1429, %v3221, %v2426
      %v3254 = vsel %vm1429, %v3222, %v2428
      %v3255 = vsel %vm1429, %v3223, %v2430
      %v3256 = vsel %vm1429, %v3224, %v2432
      %v3257 = vsel %vm1429, %v3225, %v2434
      %v3258 = vsel %vm1429, %v3226, %v2436
      %v3259 = vsel %vm1429, %v3227, %v2438
      %v3260 = vsel %vm1429, %v3228, %v2440
      %v3261 = vsel %vm1429, %v3229, %v2442
      %v3262 = vsel %vm1429, %v3230, %v2444
      %v3263 = vsel %vm1429, %v3231, %v2446
      %v3264 = vsel %vm1429, %v3232, %v2448
      %v3265 = vsel %vm1429, %v3233, %v2450
      %v3266 = vsel %vm1429, %v3234, %v2452
      %v3267 = vsel %vm1429, %v3235, %v2454
      %v3268 = vsel %vm1429, %v3236, %v2456
      %v3269 = vsel %vm1429, %v3237, %v2458
      %v3270 = vsel %vm1429, %v3238, %v2460
      %v3271 = vsel %vm1429, %v3239, %v2462
      %v3272 = vsel %vm1429, %v3240, %v2464
      %v3273 = vsel %vm1429, %v3241, %v2466
      %v3274 = vsel %vm1429, %v3242, %v2468
      %v3275 = vsel %vm1429, %v3243, %v2470
      %v3276 = vsel %vm1429, %v3244, %v2472
      %v3277 = vsel %vm1429, %v3245, %v2474
      %v3278 = vsel %vm1429, %v3246, %v2476
      %v3279 = vsel %vm1429, %v3247, %v2478
      %v3280 = vsel %vm1429, %v3248, %v2480
      %v3281 = vsel %vm1495, %v3249, %v2514
      %v3282 = vsel %vm1495, %v3250, %v2516
      %v3283 = vsel %vm1495, %v3251, %v2518
      %v3284 = vsel %vm1495, %v3252, %v2520
      %v3285 = vsel %vm1495, %v3253, %v2522
      %v3286 = vsel %vm1495, %v3254, %v2524
      %v3287 = vsel %vm1495, %v3255, %v2526
      %v3288 = vsel %vm1495, %v3256, %v2528
      %v3289 = vsel %vm1495, %v3257, %v2530
      %v3290 = vsel %vm1495, %v3258, %v2532
      %v3291 = vsel %vm1495, %v3259, %v2534
      %v3292 = vsel %vm1495, %v3260, %v2536
      %v3293 = vsel %vm1495, %v3261, %v2538
      %v3294 = vsel %vm1495, %v3262, %v2540
      %v3295 = vsel %vm1495, %v3263, %v2542
      %v3296 = vsel %vm1495, %v3264, %v2544
      %v3297 = vsel %vm1495, %v3265, %v2546
      %v3298 = vsel %vm1495, %v3266, %v2548
      %v3299 = vsel %vm1495, %v3267, %v2550
      %v3300 = vsel %vm1495, %v3268, %v2552
      %v3301 = vsel %vm1495, %v3269, %v2554
      %v3302 = vsel %vm1495, %v3270, %v2556
      %v3303 = vsel %vm1495, %v3271, %v2558
      %v3304 = vsel %vm1495, %v3272, %v2560
      %v3305 = vsel %vm1495, %v3273, %v2562
      %v3306 = vsel %vm1495, %v3274, %v2564
      %v3307 = vsel %vm1495, %v3275, %v2566
      %v3308 = vsel %vm1495, %v3276, %v2568
      %v3309 = vsel %vm1495, %v3277, %v2570
      %v3310 = vsel %vm1495, %v3278, %v2572
      %v3311 = vsel %vm1495, %v3279, %v2574
      %v3312 = vsel %vm1495, %v3280, %v2576
      %v3313 = vsel %vm1561, %v3281, %v2610
      %v3314 = vsel %vm1561, %v3282, %v2612
      %v3315 = vsel %vm1561, %v3283, %v2614
      %v3316 = vsel %vm1561, %v3284, %v2616
      %v3317 = vsel %vm1561, %v3285, %v2618
      %v3318 = vsel %vm1561, %v3286, %v2620
      %v3319 = vsel %vm1561, %v3287, %v2622
      %v3320 = vsel %vm1561, %v3288, %v2624
      %v3321 = vsel %vm1561, %v3289, %v2626
      %v3322 = vsel %vm1561, %v3290, %v2628
      %v3323 = vsel %vm1561, %v3291, %v2630
      %v3324 = vsel %vm1561, %v3292, %v2632
      %v3325 = vsel %vm1561, %v3293, %v2634
      %v3326 = vsel %vm1561, %v3294, %v2636
      %v3327 = vsel %vm1561, %v3295, %v2638
      %v3328 = vsel %vm1561, %v3296, %v2640
      %v3329 = vsel %vm1561, %v3297, %v2642
      %v3330 = vsel %vm1561, %v3298, %v2644
      %v3331 = vsel %vm1561, %v3299, %v2646
      %v3332 = vsel %vm1561, %v3300, %v2648
      %v3333 = vsel %vm1561, %v3301, %v2650
      %v3334 = vsel %vm1561, %v3302, %v2652
      %v3335 = vsel %vm1561, %v3303, %v2654
      %v3336 = vsel %vm1561, %v3304, %v2656
      %v3337 = vsel %vm1561, %v3305, %v2658
      %v3338 = vsel %vm1561, %v3306, %v2660
      %v3339 = vsel %vm1561, %v3307, %v2662
      %v3340 = vsel %vm1561, %v3308, %v2664
      %v3341 = vsel %vm1561, %v3309, %v2666
      %v3342 = vsel %vm1561, %v3310, %v2668
      %v3343 = vsel %vm1561, %v3311, %v2670
      %v3344 = vsel %vm1561, %v3312, %v2672
      %vm3345 = vcmask 326656
      %v3346 = vsel %vm3345, %v3313, %v2706
      %v3347 = vsel %vm3345, %v3314, %v2708
      %v3348 = vsel %vm3345, %v3315, %v2710
      %v3349 = vsel %vm3345, %v3316, %v2712
      %v3350 = vsel %vm3345, %v3317, %v2714
      %v3351 = vsel %vm3345, %v3318, %v2716
      %v3352 = vsel %vm3345, %v3319, %v2718
      %v3353 = vsel %vm3345, %v3320, %v2720
      %v3354 = vsel %vm3345, %v3321, %v2722
      %v3355 = vsel %vm3345, %v3322, %v2724
      %v3356 = vsel %vm3345, %v3323, %v2726
      %v3357 = vsel %vm3345, %v3324, %v2728
      %v3358 = vsel %vm3345, %v3325, %v2730
      %v3359 = vsel %vm3345, %v3326, %v2732
      %v3360 = vsel %vm3345, %v3327, %v2734
      %v3361 = vsel %vm3345, %v3328, %v2736
      %v3362 = vsel %vm3345, %v3329, %v2738
      %v3363 = vsel %vm3345, %v3330, %v2740
      %v3364 = vsel %vm3345, %v3331, %v2742
      %v3365 = vsel %vm3345, %v3332, %v2744
      %v3366 = vsel %vm3345, %v3333, %v2746
      %v3367 = vsel %vm3345, %v3334, %v2748
      %v3368 = vsel %vm3345, %v3335, %v2750
      %v3369 = vsel %vm3345, %v3336, %v2752
      %v3370 = vsel %vm3345, %v3337, %v2754
      %v3371 = vsel %vm3345, %v3338, %v2756
      %v3372 = vsel %vm3345, %v3339, %v2758
      %v3373 = vsel %vm3345, %v3340, %v2760
      %v3374 = vsel %vm3345, %v3341, %v2762
      %v3375 = vsel %vm3345, %v3342, %v2764
      %v3376 = vsel %vm3345, %v3343, %v2766
      %v3377 = vsel %vm3345, %v3344, %v2768
      %vm3378 = vcmask 392192
      %v3379 = vsel %vm3378, %v3346, %v2802
      %v3380 = vsel %vm3378, %v3347, %v2804
      %v3381 = vsel %vm3378, %v3348, %v2806
      %v3382 = vsel %vm3378, %v3349, %v2808
      %v3383 = vsel %vm3378, %v3350, %v2810
      %v3384 = vsel %vm3378, %v3351, %v2812
      %v3385 = vsel %vm3378, %v3352, %v2814
      %v3386 = vsel %vm3378, %v3353, %v2816
      %v3387 = vsel %vm3378, %v3354, %v2818
      %v3388 = vsel %vm3378, %v3355, %v2820
      %v3389 = vsel %vm3378, %v3356, %v2822
      %v3390 = vsel %vm3378, %v3357, %v2824
      %v3391 = vsel %vm3378, %v3358, %v2826
      %v3392 = vsel %vm3378, %v3359, %v2828
      %v3393 = vsel %vm3378, %v3360, %v2830
      %v3394 = vsel %vm3378, %v3361, %v2832
      %v3395 = vsel %vm3378, %v3362, %v2834
      %v3396 = vsel %vm3378, %v3363, %v2836
      %v3397 = vsel %vm3378, %v3364, %v2838
      %v3398 = vsel %vm3378, %v3365, %v2840
      %v3399 = vsel %vm3378, %v3366, %v2842
      %v3400 = vsel %vm3378, %v3367, %v2844
      %v3401 = vsel %vm3378, %v3368, %v2846
      %v3402 = vsel %vm3378, %v3369, %v2848
      %v3403 = vsel %vm3378, %v3370, %v2850
      %v3404 = vsel %vm3378, %v3371, %v2852
      %v3405 = vsel %vm3378, %v3372, %v2854
      %v3406 = vsel %vm3378, %v3373, %v2856
      %v3407 = vsel %vm3378, %v3374, %v2858
      %v3408 = vsel %vm3378, %v3375, %v2860
      %v3409 = vsel %vm3378, %v3376, %v2862
      %v3410 = vsel %vm3378, %v3377, %v2864
      %vm3411 = vcmask 457728
      %v3412 = vsel %vm3411, %v3379, %v2898
      %v3413 = vsel %vm3411, %v3380, %v2900
      %v3414 = vsel %vm3411, %v3381, %v2902
      %v3415 = vsel %vm3411, %v3382, %v2904
      %v3416 = vsel %vm3411, %v3383, %v2906
      %v3417 = vsel %vm3411, %v3384, %v2908
      %v3418 = vsel %vm3411, %v3385, %v2910
      %v3419 = vsel %vm3411, %v3386, %v2912
      %v3420 = vsel %vm3411, %v3387, %v2914
      %v3421 = vsel %vm3411, %v3388, %v2916
      %v3422 = vsel %vm3411, %v3389, %v2918
      %v3423 = vsel %vm3411, %v3390, %v2920
      %v3424 = vsel %vm3411, %v3391, %v2922
      %v3425 = vsel %vm3411, %v3392, %v2924
      %v3426 = vsel %vm3411, %v3393, %v2926
      %v3427 = vsel %vm3411, %v3394, %v2928
      %v3428 = vsel %vm3411, %v3395, %v2930
      %v3429 = vsel %vm3411, %v3396, %v2932
      %v3430 = vsel %vm3411, %v3397, %v2934
      %v3431 = vsel %vm3411, %v3398, %v2936
      %v3432 = vsel %vm3411, %v3399, %v2938
      %v3433 = vsel %vm3411, %v3400, %v2940
      %v3434 = vsel %vm3411, %v3401, %v2942
      %v3435 = vsel %vm3411, %v3402, %v2944
      %v3436 = vsel %vm3411, %v3403, %v2946
      %v3437 = vsel %vm3411, %v3404, %v2948
      %v3438 = vsel %vm3411, %v3405, %v2950
      %v3439 = vsel %vm3411, %v3406, %v2952
      %v3440 = vsel %vm3411, %v3407, %v2954
      %v3441 = vsel %vm3411, %v3408, %v2956
      %v3442 = vsel %vm3411, %v3409, %v2958
      %v3443 = vsel %vm3411, %v3410, %v2960
      %vm3444 = vcmask 523264
      %v3445 = vsel %vm3444, %v3412, %v2994
      %v3446 = vsel %vm3444, %v3413, %v2996
      %v3447 = vsel %vm3444, %v3414, %v2998
      %v3448 = vsel %vm3444, %v3415, %v3000
      %v3449 = vsel %vm3444, %v3416, %v3002
      %v3450 = vsel %vm3444, %v3417, %v3004
      %v3451 = vsel %vm3444, %v3418, %v3006
      %v3452 = vsel %vm3444, %v3419, %v3008
      %v3453 = vsel %vm3444, %v3420, %v3010
      %v3454 = vsel %vm3444, %v3421, %v3012
      %v3455 = vsel %vm3444, %v3422, %v3014
      %v3456 = vsel %vm3444, %v3423, %v3016
      %v3457 = vsel %vm3444, %v3424, %v3018
      %v3458 = vsel %vm3444, %v3425, %v3020
      %v3459 = vsel %vm3444, %v3426, %v3022
      %v3460 = vsel %vm3444, %v3427, %v3024
      %v3461 = vsel %vm3444, %v3428, %v3026
      %v3462 = vsel %vm3444, %v3429, %v3028
      %v3463 = vsel %vm3444, %v3430, %v3030
      %v3464 = vsel %vm3444, %v3431, %v3032
      %v3465 = vsel %vm3444, %v3432, %v3034
      %v3466 = vsel %vm3444, %v3433, %v3036
      %v3467 = vsel %vm3444, %v3434, %v3038
      %v3468 = vsel %vm3444, %v3435, %v3040
      %v3469 = vsel %vm3444, %v3436, %v3042
      %v3470 = vsel %vm3444, %v3437, %v3044
      %v3471 = vsel %vm3444, %v3438, %v3046
      %v3472 = vsel %vm3444, %v3439, %v3048
      %v3473 = vsel %vm3444, %v3440, %v3050
      %v3474 = vsel %vm3444, %v3441, %v3052
      %v3475 = vsel %vm3444, %v3442, %v3054
      %v3476 = vsel %vm3444, %v3443, %v3056
      %vm3477 = vcmask 588800
      %v3478 = vsel %vm3477, %v3445, %v3122
      %v3479 = vsel %vm3477, %v3446, %v3124
      %v3480 = vsel %vm3477, %v3447, %v3126
      %v3481 = vsel %vm3477, %v3448, %v3128
      %v3482 = vsel %vm3477, %v3449, %v3130
      %v3483 = vsel %vm3477, %v3450, %v3132
      %v3484 = vsel %vm3477, %v3451, %v3134
      %v3485 = vsel %vm3477, %v3452, %v3136
      %v3486 = vsel %vm3477, %v3453, %v3138
      %v3487 = vsel %vm3477, %v3454, %v3140
      %v3488 = vsel %vm3477, %v3455, %v3142
      %v3489 = vsel %vm3477, %v3456, %v3144
      %v3490 = vsel %vm3477, %v3457, %v3146
      %v3491 = vsel %vm3477, %v3458, %v3148
      %v3492 = vsel %vm3477, %v3459, %v3150
      %v3493 = vsel %vm3477, %v3460, %v3152
      %v3494 = vsel %vm3477, %v3461, %v3154
      %v3495 = vsel %vm3477, %v3462, %v3156
      %v3496 = vsel %vm3477, %v3463, %v3158
      %v3497 = vsel %vm3477, %v3464, %v3160
      %v3498 = vsel %vm3477, %v3465, %v3162
      %v3499 = vsel %vm3477, %v3466, %v3164
      %v3500 = vsel %vm3477, %v3467, %v3166
      %v3501 = vsel %vm3477, %v3468, %v3168
      %v3502 = vsel %vm3477, %v3469, %v3170
      %v3503 = vsel %vm3477, %v3470, %v3172
      %v3504 = vsel %vm3477, %v3471, %v3174
      %v3505 = vsel %vm3477, %v3472, %v3176
      %v3506 = vsel %vm3477, %v3473, %v3178
      %v3507 = vsel %vm3477, %v3474, %v3180
      %v3508 = vsel %vm3477, %v3475, %v3182
      %v3509 = vsel %vm3477, %v3476, %v3184
      %v3510 = vld [vmem:[%s4] sm:$0xff]
      %v3511 = vld [vmem:[%s4 + $0x8] sm:$0xff]
      %v3512 = vld [vmem:[%s4 + $0x10] sm:$0xff]
      %v3513 = vld [vmem:[%s4 + $0x18] sm:$0xff]
      %v3514 = vld [vmem:[%s4 + $0x20] sm:$0xff]
      %v3515 = vld [vmem:[%s4 + $0x28] sm:$0xff]
      %v3516 = vld [vmem:[%s4 + $0x30] sm:$0xff]
      %v3517 = vld [vmem:[%s4 + $0x38] sm:$0xff]
      %v3518 = vld [vmem:[%s4 + $0x40] sm:$0xff]
      %v3519 = vld [vmem:[%s4 + $0x48] sm:$0xf]
      %v3520 = vld [vmem:[%s5] sm:$0x1]
      %v3522 = vperm.slane %v3520, 0
      %vm3524 = vcmask 621568
      %v3526 = vsel %vm3524, %v3478, 0
      %v3529 = vsel %vm3524, %v3479, 0
      %v3532 = vsel %vm3524, %v3480, 0
      %v3535 = vsel %vm3524, %v3481, 0
      %v3538 = vsel %vm3524, %v3482, 0
      %v3541 = vsel %vm3524, %v3483, 0
      %v3544 = vsel %vm3524, %v3484, 0
      %v3547 = vsel %vm3524, %v3485, 0
      %v3550 = vsel %vm3524, %v3486, 0
      %v3553 = vsel %vm3524, %v3487, 0
      %v3556 = vsel %vm3524, %v3488, 0
      %v3559 = vsel %vm3524, %v3489, 0
      %v3562 = vsel %vm3524, %v3490, 0
      %v3565 = vsel %vm3524, %v3491, 0
      %v3568 = vsel %vm3524, %v3492, 0
      %v3571 = vsel %vm3524, %v3493, 0
      %v3574 = vsel %vm3524, %v3494, 0
      %v3577 = vsel %vm3524, %v3495, 0
      %v3580 = vsel %vm3524, %v3496, 0
      %v3583 = vsel %vm3524, %v3497, 0
      %v3586 = vsel %vm3524, %v3498, 0
      %v3589 = vsel %vm3524, %v3499, 0
      %v3592 = vsel %vm3524, %v3500, 0
      %v3595 = vsel %vm3524, %v3501, 0
      %v3598 = vsel %vm3524, %v3502, 0
      %v3601 = vsel %vm3524, %v3503, 0
      %v3604 = vsel %vm3524, %v3504, 0
      %v3607 = vsel %vm3524, %v3505, 0
      %v3610 = vsel %vm3524, %v3506, 0
      %v3613 = vsel %vm3524, %v3507, 0
      %v3616 = vsel %vm3524, %v3508, 0
      %v3619 = vsel %vm3524, %v3509, 0
      %v3622 = vsel %vm1700, %v3519, 0
      %3624 = vmatpush.msra.mxu0 0.0
      %3625 = vmatpush.msra.mxu0 0.0
      %3626 = vmatpush.msra.mxu0 0.0
      %3627 = vmatpush.msra.mxu0 0.0
      %3628 = vmatpush.msra.mxu0 0.0
      %3629 = vmatpush.msra.mxu0 0.0
      %3630 = vmatpush.msra.mxu0 %v3622
      %3631 = vmatpush.msra.mxu0 %v3518
      %3632 = vmatpush.msra.mxu0 %v3517
      %3633 = vmatpush.msra.mxu0 %v3516
      %3634 = vmatpush.msra.mxu0 %v3515
      %3635 = vmatpush.msra.mxu0 %v3514
      %3636 = vmatpush.msra.mxu0 %v3513
      %3637 = vmatpush.msra.mxu0 %v3512
      %3638 = vmatpush.msra.mxu0 %v3511
      %3639 = vmatpush.msra.mxu0 %v3510
      %3640 = vmatmul.f32.gmra.mxu0 %v3526
      %v3641 = vpop.f32.mrf.mxu0
      %v3642 = vadd.f32 %v3522, %v3641
      %3643 = vmatmul.f32.gmra.mxu0 %v3529
      %v3644 = vpop.f32.mrf.mxu0
      %v3645 = vadd.f32 %v3522, %v3644
      %3646 = vmatmul.f32.gmra.mxu0 %v3532
      %v3647 = vpop.f32.mrf.mxu0
      %v3648 = vadd.f32 %v3522, %v3647
      %3649 = vmatmul.f32.gmra.mxu0 %v3535
      %v3650 = vpop.f32.mrf.mxu0
      %v3651 = vadd.f32 %v3522, %v3650
      %3652 = vmatmul.f32.gmra.mxu0 %v3538
      %v3653 = vpop.f32.mrf.mxu0
      %v3654 = vadd.f32 %v3522, %v3653
      %3655 = vmatmul.f32.gmra.mxu0 %v3541
      %v3656 = vpop.f32.mrf.mxu0
      %v3657 = vadd.f32 %v3522, %v3656
      %3658 = vmatmul.f32.gmra.mxu0 %v3544
      %v3659 = vpop.f32.mrf.mxu0
      %v3660 = vadd.f32 %v3522, %v3659
      %3661 = vmatmul.f32.gmra.mxu0 %v3547
      %v3662 = vpop.f32.mrf.mxu0
      %v3663 = vadd.f32 %v3522, %v3662
      %3664 = vmatmul.f32.gmra.mxu0 %v3550
      %v3665 = vpop.f32.mrf.mxu0
      %v3666 = vadd.f32 %v3522, %v3665
      %3667 = vmatmul.f32.gmra.mxu0 %v3553
      %v3668 = vpop.f32.mrf.mxu0
      %v3669 = vadd.f32 %v3522, %v3668
      %3670 = vmatmul.f32.gmra.mxu0 %v3556
      %v3671 = vpop.f32.mrf.mxu0
      %v3672 = vadd.f32 %v3522, %v3671
      %3673 = vmatmul.f32.gmra.mxu0 %v3559
      %v3674 = vpop.f32.mrf.mxu0
      %v3675 = vadd.f32 %v3522, %v3674
      %3676 = vmatmul.f32.gmra.mxu0 %v3562
      %v3677 = vpop.f32.mrf.mxu0
      %v3678 = vadd.f32 %v3522, %v3677
      %3679 = vmatmul.f32.gmra.mxu0 %v3565
      %v3680 = vpop.f32.mrf.mxu0
      %v3681 = vadd.f32 %v3522, %v3680
      %3682 = vmatmul.f32.gmra.mxu0 %v3568
      %v3683 = vpop.f32.mrf.mxu0
      %v3684 = vadd.f32 %v3522, %v3683
      %3685 = vmatmul.f32.gmra.mxu0 %v3571
      %v3686 = vpop.f32.mrf.mxu0
      %v3687 = vadd.f32 %v3522, %v3686
      %3688 = vmatmul.f32.gmra.mxu0 %v3574
      %v3689 = vpop.f32.mrf.mxu0
      %v3690 = vadd.f32 %v3522, %v3689
      %3691 = vmatmul.f32.gmra.mxu0 %v3577
      %v3692 = vpop.f32.mrf.mxu0
      %v3693 = vadd.f32 %v3522, %v3692
      %3694 = vmatmul.f32.gmra.mxu0 %v3580
      %v3695 = vpop.f32.mrf.mxu0
      %v3696 = vadd.f32 %v3522, %v3695
      %3697 = vmatmul.f32.gmra.mxu0 %v3583
      %v3698 = vpop.f32.mrf.mxu0
      %v3699 = vadd.f32 %v3522, %v3698
      %3700 = vmatmul.f32.gmra.mxu0 %v3586
      %v3701 = vpop.f32.mrf.mxu0
      %v3702 = vadd.f32 %v3522, %v3701
      %3703 = vmatmul.f32.gmra.mxu0 %v3589
      %v3704 = vpop.f32.mrf.mxu0
      %v3705 = vadd.f32 %v3522, %v3704
      %3706 = vmatmul.f32.gmra.mxu0 %v3592
      %v3707 = vpop.f32.mrf.mxu0
      %v3708 = vadd.f32 %v3522, %v3707
      %3709 = vmatmul.f32.gmra.mxu0 %v3595
      %v3710 = vpop.f32.mrf.mxu0
      %v3711 = vadd.f32 %v3522, %v3710
      %3712 = vmatmul.f32.gmra.mxu0 %v3598
      %v3713 = vpop.f32.mrf.mxu0
      %v3714 = vadd.f32 %v3522, %v3713
      %3715 = vmatmul.f32.gmra.mxu0 %v3601
      %v3716 = vpop.f32.mrf.mxu0
      %v3717 = vadd.f32 %v3522, %v3716
      %3718 = vmatmul.f32.gmra.mxu0 %v3604
      %v3719 = vpop.f32.mrf.mxu0
      %v3720 = vadd.f32 %v3522, %v3719
      %3721 = vmatmul.f32.gmra.mxu0 %v3607
      %v3722 = vpop.f32.mrf.mxu0
      %v3723 = vadd.f32 %v3522, %v3722
      %3724 = vmatmul.f32.gmra.mxu0 %v3610
      %v3725 = vpop.f32.mrf.mxu0
      %v3726 = vadd.f32 %v3522, %v3725
      %3727 = vmatmul.f32.gmra.mxu0 %v3613
      %v3728 = vpop.f32.mrf.mxu0
      %v3729 = vadd.f32 %v3522, %v3728
      %3730 = vmatmul.f32.gmra.mxu0 %v3616
      %v3731 = vpop.f32.mrf.mxu0
      %v3732 = vadd.f32 %v3522, %v3731
      %3733 = vmatmul.f32.gmra.mxu0 %v3619
      %v3734 = vpop.f32.mrf.mxu0
      %v3735 = vadd.f32 %v3522, %v3734
      %3736 = vdwg.mxu0
      %3737 = vst.msk [vmem:[%s271] sm:$0xff] %vm1363, %v3642
      %3738 = vst.msk [vmem:[%s271 + $0x8] sm:$0xff] %vm1363, %v3645
      %3739 = vst.msk [vmem:[%s271 + $0x10] sm:$0xff] %vm1363, %v3648
      %3740 = vst.msk [vmem:[%s271 + $0x18] sm:$0xff] %vm1363, %v3651
      %3741 = vst.msk [vmem:[%s271 + $0x20] sm:$0xff] %vm1363, %v3654
      %3742 = vst.msk [vmem:[%s271 + $0x28] sm:$0xff] %vm1363, %v3657
      %3743 = vst.msk [vmem:[%s271 + $0x30] sm:$0xff] %vm1363, %v3660
      %3744 = vst.msk [vmem:[%s271 + $0x38] sm:$0xff] %vm1363, %v3663
      %3745 = vst.msk [vmem:[%s271 + $0x40] sm:$0xff] %vm1363, %v3666
      %3746 = vst.msk [vmem:[%s271 + $0x48] sm:$0xff] %vm1363, %v3669
      %3747 = vst.msk [vmem:[%s271 + $0x50] sm:$0xff] %vm1363, %v3672
      %3748 = vst.msk [vmem:[%s271 + $0x58] sm:$0xff] %vm1363, %v3675
      %3749 = vst.msk [vmem:[%s271 + $0x60] sm:$0xff] %vm1363, %v3678
      %3750 = vst.msk [vmem:[%s271 + $0x68] sm:$0xff] %vm1363, %v3681
      %3751 = vst.msk [vmem:[%s271 + $0x70] sm:$0xff] %vm1363, %v3684
      %3752 = vst.msk [vmem:[%s271 + $0x78] sm:$0xff] %vm1363, %v3687
      %3753 = vst.msk [vmem:[%s271 + $0x80] sm:$0xff] %vm1363, %v3690
      %3754 = vst.msk [vmem:[%s271 + $0x88] sm:$0xff] %vm1363, %v3693
      %3755 = vst.msk [vmem:[%s271 + $0x90] sm:$0xff] %vm1363, %v3696
      %3756 = vst.msk [vmem:[%s271 + $0x98] sm:$0xff] %vm1363, %v3699
      %3757 = vst.msk [vmem:[%s271 + $0xa0] sm:$0xff] %vm1363, %v3702
      %3758 = vst.msk [vmem:[%s271 + $0xa8] sm:$0xff] %vm1363, %v3705
      %3759 = vst.msk [vmem:[%s271 + $0xb0] sm:$0xff] %vm1363, %v3708
      %3760 = vst.msk [vmem:[%s271 + $0xb8] sm:$0xff] %vm1363, %v3711
      %3761 = vst.msk [vmem:[%s271 + $0xc0] sm:$0xff] %vm1363, %v3714
      %3762 = vst.msk [vmem:[%s271 + $0xc8] sm:$0xff] %vm1363, %v3717
      %3763 = vst.msk [vmem:[%s271 + $0xd0] sm:$0xff] %vm1363, %v3720
      %3764 = vst.msk [vmem:[%s271 + $0xd8] sm:$0xff] %vm1363, %v3723
      %3765 = vst.msk [vmem:[%s271 + $0xe0] sm:$0xff] %vm1363, %v3726
      %3766 = vst.msk [vmem:[%s271 + $0xe8] sm:$0xff] %vm1363, %v3729
      %3767 = vst.msk [vmem:[%s271 + $0xf0] sm:$0xff] %vm1363, %v3732
      %3768 = vst.msk [vmem:[%s271 + $0xf8] sm:$0xff] %vm1363, %v3735
      %p3769 = scmp.lt.s32.totalorder %s17, 1
      %s3770 = scalar_select %p3769, %s17, 1
      %s3771 = smul.addr %s3770, 32
      %s3772 = smul.addr %s3771, 8
      %s3773 = scalar_lea.vmem %s6, %s3772
      // Predicated region
      $region45: #{res_block.1} parent=43 // pred_check
        %p3774 = pneg %p171
      $region46: #{res_block.1} parent=43 // pred_check_branch
        %3776 = sbr.rel (%p3774) target = $region48
      $region47: #{res_block.1} parent=43 // pred_region
        _
      $region48: #{res_block.1} parent=43 // pred_fallthru
        _
    $region44: #{res_block.1} parent=5 // pred_fallthru
      _
    %p3777 = scmp.le.s32.totalorder 2, %s12
    // Predicated region
    $region49: #{res_block.1} parent=5 // pred_check
      %p3778 = pneg %p3777
    $region50: #{res_block.1} parent=5 // pred_check_branch
      %3780 = sbr.rel (%p3778) target = $region52
    $region51: #{res_block.1} parent=5 // pred_region
      %s3781 = ssub.s32 %s12, 2
      // Predicated region
      $region53: #{res_block.1} parent=51 // pred_check
        %p3782 = pneg %p177
      $region54: #{res_block.1} parent=51 // pred_check_branch
        %3784 = sbr.rel (%p3782) target = $region56
      $region55: #{res_block.1} parent=51 // pred_region
        %p3785 = scmp.lt.s32.totalorder %s18, 1
        %s3786 = scalar_select %p3785, %s18, 1
        %s3787 = smul.addr %s3786, 32
        %s3788 = smul.addr %s3787, 8
        %s3789 = scalar_lea.vmem %s6, %s3788
      $region56: #{res_block.1} parent=51 // pred_fallthru
        _
    $region52: #{res_block.1} parent=5 // pred_fallthru
      _
  $region6: #{res_block.1} parent=0 // loop_footer
    %s16 = sadd.s32 1, %s12
  $region7: #{res_block.1} parent=0 // loop_footer_branch
    %11 = sbr.rel target = $region3
  $region8: #{res_block.1} parent=0 // loop_exit
    _

</llo_original>
